<compile_context>
chip_gen: v7x
topology: tpu7x:2x2x1
jax: 0.10.0
libtpu: 0.0.40
codegen_flags: <defaults>
</compile_context>

<pallas_src>
import functools
import math

import jax
import jax.numpy as jnp
from jax import lax
from jax.experimental import pallas as pl
from jax.experimental.pallas import tpu as pltpu


# ----------------------------------------------------------------------------
# helpers
# ----------------------------------------------------------------------------
def _round_up(x, m):
    return ((x + m - 1) // m) * m


def _weight_spec(shape, single_buffer):
    """Full-array spec with constant block index; optionally single-buffered."""
    zeros = (0,) * len(shape)
    imap = lambda m, _z=zeros: _z
    if single_buffer:
        # Constant-index weights never change block -> no need to double-buffer.
        return pl.BlockSpec(shape, imap, pipeline_mode=pl.Buffered(1))
    return pl.BlockSpec(shape, imap)


def _valid_mask(kp, kf):
    """[1, kp] f32 mask, 1.0 for frames < kf (kf is a static Python int)."""
    return (lax.broadcasted_iota(jnp.int32, (1, kp), 1) < kf).astype(jnp.float32)


def _gln(y, gamma, beta, mask, inv_count):
    """GlobalLayerNorm over (channels, valid frames); one-pass statistics."""
    ym = y * mask
    s1 = jnp.sum(ym)
    s2 = jnp.sum(ym * ym)
    mu = s1 * inv_count
    var = s2 * inv_count - mu * mu
    return gamma * (y - mu) * lax.rsqrt(var + 1e-7) + beta


@functools.lru_cache(maxsize=1)
def _vmem_limit_bytes():
    """Per-generation VMEM budget (v5e/v6e: ~112 MiB, v7x: ~48 MiB)."""
    default = 32 * 1024 * 1024
    try:
        info = pltpu.get_tpu_info()
    except Exception:
        return default
    cap = None
    for attr in ("vmem_capacity_bytes", "vmem_size_bytes", "vmem_bytes"):
        cap = getattr(info, attr, None)
        if cap:
            break
    if not cap:
        return default
    return int(max(default, min(int(cap) - (16 << 20), 112 << 20)))


# ----------------------------------------------------------------------------
# fused kernel: front (enc+BN+l1) -> R*X TCN blocks -> mask head
# ----------------------------------------------------------------------------
def _ctn_kernel(Kf, P, X, R, dil_x, S, Nout,
                frames_ref, wf_ref, bf_ref,
                w1_ref, b1_ref, a1_ref, g1_ref, be1_ref,
                dw_ref, db_ref, a2_ref, g2_ref, be2_ref,
                w2_ref, b2_ref, wm_ref, bm_ref, o_ref):
    fr = frames_ref[0]                                       # [L, Kp] f32
    kp = fr.shape[-1]
    mask = _valid_mask(kp, Kf)                               # [1, Kp]

    # --- front: folded encoder Conv1d + BatchNorm(eval) + l1 (1x1) ---
    x = jnp.dot(wf_ref[...], fr.astype(jnp.bfloat16),
                preferred_element_type=jnp.float32) + bf_ref[...]
    x = x * mask                                             # [B, Kp]

    H = w1_ref.shape[1]
    inv_cnt = 1.0 / float(H * Kf)

    # --- TCN stack: fori_loop over R repeats, static unroll over X dilations ---
    def tcn_repeat(r, x):
        for xi, D in enumerate(dil_x):                       # static inner unroll
            blk = r * X + xi                                 # dynamic weight index
            pad = D * (P - 1) // 2

            # 1x1 conv B->H, PReLU, gLN
            y = jnp.dot(w1_ref[blk], x.astype(jnp.bfloat16),
                        preferred_element_type=jnp.float32) + b1_ref[blk]
            a1 = a1_ref[blk]
            y = jnp.where(y > 0, y, a1 * y)
            y = _gln(y, g1_ref[blk], be1_ref[blk], mask, inv_cnt)
            y = y * mask                                     # zero beyond Kf

            # depthwise dilated conv via per-tap lane rotations (XLU slot)
            dw = dw_ref[blk]                                 # [H, P]
            sh0 = pad % kp                                   # tap 0: off = -pad
            yp0 = pltpu.roll(y, shift=sh0, axis=1) if sh0 != 0 else y
            acc = dw[:, 0:1] * yp0                           # seed (no zeros pass)
            for tp in range(1, P):
                off = tp * D - pad                           # static per (xi, tp)
                sh = (-off) % kp
                yp = pltpu.roll(y, shift=sh, axis=1) if sh != 0 else y
                acc = acc + dw[:, tp:tp + 1] * yp
            z = acc + db_ref[blk]

            # PReLU, gLN, 1x1 conv H->B, residual
            a2 = a2_ref[blk]
            z = jnp.where(z > 0, z, a2 * z)
            z = _gln(z, g2_ref[blk], be2_ref[blk], mask, inv_cnt)
            out = jnp.dot(w2_ref[blk], z.astype(jnp.bfloat16),
                          preferred_element_type=jnp.float32) + b2_ref[blk]
            x = (x + out) * mask
        return x

    x = lax.fori_loop(0, R, tcn_repeat, x)

    # --- mask head: folded out_reshape + BN(eval) + banded Conv2d, ReLU, softmax
    ym = jnp.dot(wm_ref[...], x.astype(jnp.bfloat16),
                 preferred_element_type=jnp.float32) + bm_ref[...]  # [S*Nout, Kp]
    ym = jnp.maximum(ym, 0.0)                                # ReLU
    logits = [ym[s * Nout:(s + 1) * Nout, :] for s in range(S)]
    m = logits[0]
    for s in range(1, S):
        m = jnp.maximum(m, logits[s])
    exps = [jnp.exp(l - m) for l in logits]
    den = exps[0]
    for s in range(1, S):
        den = den + exps[s]
    inv = pl.reciprocal(den, approx=True)                    # EUP slot
    inv = inv * (2.0 - den * inv)                            # one Newton step
    for s in range(S):
        o_ref[0, s] = exps[s] * inv


# ----------------------------------------------------------------------------
# pallas_call wrapper (single fused call, batch grid axis)
# ----------------------------------------------------------------------------
def ctn_fused(frames, params, Kf, Kp):
    M, L, _ = frames.shape
    B, P, X, R = params["B"], params["P"], params["X"], params["R"]
    S, Nout = params["S"], params["n_out"]
    dil_x = tuple(params["dil_x"])
    stk = params["tcn"]
    H = stk["w1"].shape[1]
    n_blocks = R * X

    kern = functools.partial(_ctn_kernel, Kf, P, X, R, dil_x, S, Nout)

    weights = [params["w_front"], params["b_front"],
               stk["w1"], stk["b1"], stk["a1"], stk["g1"], stk["be1"],
               stk["dw"], stk["db"], stk["a2"], stk["g2"], stk["be2"],
               stk["w2"], stk["b2"],
               params["w_mask"], params["b_mask"]]

    frames_spec = pl.BlockSpec((1, L, Kp), lambda m: (m, 0, 0))
    out_spec = pl.BlockSpec((1, S, Nout, Kp), lambda m: (m, 0, 0, 0))

    # advisory cost estimate so XLA can overlap the custom call with framing/slice
    mm_flops = (2 * B * L * Kp
                + n_blocks * (2 * H * B * Kp + 2 * H * P * Kp + 2 * B * H * Kp)
                + 2 * S * Nout * B * Kp)
    weight_bytes = sum(int(a.size) * a.dtype.itemsize for a in weights)
    cost = pl.CostEstimate(
        flops=int(M * mm_flops),
        transcendentals=int(M * (S * Nout * Kp + 2 * n_blocks)),
        bytes_accessed=int(M * (L * Kp * 4 + S * Nout * Kp * 4) + weight_bytes))

    def build(single_buffer):
        in_specs = ([frames_spec]
                    + [_weight_spec(a.shape, single_buffer) for a in weights])
        return pl.pallas_call(
            kern,
            out_shape=jax.ShapeDtypeStruct((M, S, Nout, Kp), jnp.float32),
            grid=(M,),
            in_specs=in_specs,
            out_specs=out_spec,
            compiler_params=pltpu.CompilerParams(
                dimension_semantics=("parallel",),
                vmem_limit_bytes=_vmem_limit_bytes()),
            cost_estimate=cost,
        )

    try:
        return build(True)(frames, *weights)
    except Exception:
        # pipeline_mode=pl.Buffered(1) unsupported in this JAX build -> default specs
        return build(False)(frames, *weights)


# ----------------------------------------------------------------------------
# parameter construction (deterministic, synthetic) + offline folding
# ----------------------------------------------------------------------------
def init_ctn_params(seed, N, L, B, H, P, X, R, n_sources):
    assert P % 2 == 1, "odd P required for same-length depthwise conv"
    keys = iter(jax.random.split(jax.random.PRNGKey(seed), 256))

    def uni(shape, fan_in):
        bound = 1.0 / math.sqrt(fan_in)
        return jax.random.uniform(next(keys), shape, jnp.float32, -bound, bound)

    bn_scale = 1.0 / math.sqrt(1.0 + 1e-5)   # eval-mode BN with default init

    # --- raw parameters (PyTorch layout) ---
    enc_w = uni((N, L), L)                   # TODO(synk): synthetic AFE encoder
    enc_b = uni((N, 1), L)
    l1_w = uni((B, N), N)
    l1_b = uni((B, 1), N)
    ln_in_s = jnp.full((N, 1), bn_scale, jnp.float32)
    ln_in_t = jnp.zeros((N, 1), jnp.float32)

    # fold encoder -> BN(eval) -> l1 into a single [B, L] affine
    w_front = l1_w @ (ln_in_s * enc_w)                           # [B, L]
    b_front = l1_w @ (ln_in_s * enc_b + ln_in_t) + l1_b          # [B, 1]

    dil_x = [2 ** d for d in range(X)]
    dilations = [d for _ in range(R) for d in dil_x]

    w1l, b1l, a1l, g1l, be1l = [], [], [], [], []
    dwl, dbl, a2l, g2l, be2l, w2l, b2l = [], [], [], [], [], [], []
    for _ in dilations:
        w1l.append(uni((H, B), B)); b1l.append(uni((H, 1), B))
        a1l.append(jnp.full((1, 1), 0.25, jnp.float32))
        g1l.append(jnp.ones((H, 1), jnp.float32))
        be1l.append(jnp.zeros((H, 1), jnp.float32))
        dwl.append(uni((H, P), P)); dbl.append(uni((H, 1), P))
        a2l.append(jnp.full((1, 1), 0.25, jnp.float32))
        g2l.append(jnp.ones((H, 1), jnp.float32))
        be2l.append(jnp.zeros((H, 1), jnp.float32))
        w2l.append(uni((B, H), H)); b2l.append(uni((B, 1), H))
    tcn = {
        "w1": jnp.stack(w1l).astype(jnp.bfloat16), "b1": jnp.stack(b1l),
        "a1": jnp.stack(a1l), "g1": jnp.stack(g1l), "be1": jnp.stack(be1l),
        "dw": jnp.stack(dwl), "db": jnp.stack(dbl),
        "a2": jnp.stack(a2l), "g2": jnp.stack(g2l), "be2": jnp.stack(be2l),
        "w2": jnp.stack(w2l).astype(jnp.bfloat16), "b2": jnp.stack(b2l),
    }

    if B != N:
        out_w = uni((N, B), B)
        out_b = uni((N, 1), B)
    else:
        out_w = jnp.eye(N, dtype=jnp.float32)
        out_b = jnp.zeros((N, 1), jnp.float32)
    ln_m_s = jnp.full((N, 1), bn_scale, jnp.float32)
    ln_m_t = jnp.zeros((N, 1), jnp.float32)

    # Conv2d(1, S, (N+1, 1), padding=(N - N//2, 0)) along the channel axis:
    # banded matrix restricted to the N un-padded channel columns.
    Wm = uni((n_sources, N + 1), N + 1)
    bm = uni((n_sources,), N + 1)
    pad_c = N - N // 2
    n_out = 2 * pad_c
    rows = jnp.arange(n_out)[:, None]
    cols = jnp.arange(N)[None, :]
    q = cols + pad_c - rows
    valid = (q >= 0) & (q <= N)
    A_c = jnp.where(valid[None], Wm[:, jnp.clip(q, 0, N)], 0.0)  # [S, n_out, N]

    # fold out_reshape -> BN(eval) -> banded mask conv into one affine
    w_on = ln_m_s * out_w                                        # [N, B]
    b_on = ln_m_s * out_b + ln_m_t                               # [N, 1]
    w_mask = jnp.einsum("src,cb->srb", A_c, w_on)                # [S, n_out, B]
    b_mask = jnp.einsum("src,cd->srd", A_c, b_on) + bm[:, None, None]

    return {
        "N": N, "L": L, "B": B, "P": P, "X": X, "R": R,
        "S": n_sources, "n_out": n_out,
        "dil_x": dil_x, "dilations": dilations,
        "w_front": w_front.astype(jnp.bfloat16), "b_front": b_front,
        "tcn": tcn,
        "w_mask": w_mask.reshape(n_sources * n_out, B).astype(jnp.bfloat16),
        "b_mask": b_mask.reshape(n_sources * n_out, 1),
    }


# ----------------------------------------------------------------------------
# full CTN forward
# ----------------------------------------------------------------------------
def ctn_forward(params, wav):
    L, P = params["L"], params["P"]
    dil_x = params["dil_x"]
    stride = L // 2
    M, T = wav.shape
    Kf = (T - L) // stride + 1

    pad_max = max(dil_x) * (P - 1) // 2
    Kp = _round_up(Kf + pad_max, 128)          # lane-dense frame axis
    # roll-based depthwise conv needs the wrapped lanes to land in the zero tail
    assert Kp - Kf >= pad_max, (Kp, Kf, pad_max)

    # encoder framing (Conv1d stride-L//2 windows) directly as [M, L, Kf]
    # (no transpose), then pad the frame axis to Kp.
    # TODO(synk): framing could be built in-kernel with strided reads to avoid
    # the ~2x duplicated waveform copy in HBM.
    idx = jnp.arange(Kf) * stride
    frames = wav[:, jnp.arange(L)[:, None] + idx[None, :]]       # [M, L, Kf]
    frames = jnp.pad(frames, ((0, 0), (0, 0), (0, Kp - Kf)))     # [M, L, Kp]

    masks = ctn_fused(frames, params, Kf, Kp)                    # [M, S, N, Kp]
    return masks[..., :Kf]


# ----------------------------------------------------------------------------
if __name__ == "__main__":
    # Small shape-consistent config: N=16, L=8, B=8, H=16, P=3, X=2, R=1, S=2
    N, L, B, H, P, X, R, S = 16, 8, 8, 16, 3, 2, 1, 2
    M, T = 2, 68                               # -> Kf = (68-8)//4 + 1 = 16

    params = init_ctn_params(0, N, L, B, H, P, X, R, S)
    wav = jax.random.normal(jax.random.PRNGKey(0), (M, T), jnp.float32)

    masks = jax.block_until_ready(ctn_forward(params, wav))

    stride = L // 2
    Kf = (T - L) // stride + 1
    assert masks.shape == (M, S, N, Kf), masks.shape
    # softmax over sources sums to 1 (approx reciprocal + Newton refinement)
    s = jnp.sum(masks, axis=1)
    assert bool(jnp.allclose(s, jnp.ones_like(s), atol=1e-3)), "softmax check failed"
    print("KERNEL_OK")
</pallas_src>

<mosaic_0001>
module attributes {stable_mosaic.version = 11 : i64} {
  func.func @_ctn_kernel(%arg0: i32, %arg1: memref<1x8x128xf32, #tpu.memory_space<vmem>>, %arg2: memref<8x8xbf16, #tpu.memory_space<vmem>>, %arg3: memref<8x1xf32, #tpu.memory_space<vmem>>, %arg4: memref<2x16x8xbf16, #tpu.memory_space<vmem>>, %arg5: memref<2x16x1xf32, #tpu.memory_space<vmem>>, %arg6: memref<2x1x1xf32, #tpu.memory_space<vmem>>, %arg7: memref<2x16x1xf32, #tpu.memory_space<vmem>>, %arg8: memref<2x16x1xf32, #tpu.memory_space<vmem>>, %arg9: memref<2x16x3xf32, #tpu.memory_space<vmem>>, %arg10: memref<2x16x1xf32, #tpu.memory_space<vmem>>, %arg11: memref<2x1x1xf32, #tpu.memory_space<vmem>>, %arg12: memref<2x16x1xf32, #tpu.memory_space<vmem>>, %arg13: memref<2x16x1xf32, #tpu.memory_space<vmem>>, %arg14: memref<2x8x16xbf16, #tpu.memory_space<vmem>>, %arg15: memref<2x8x1xf32, #tpu.memory_space<vmem>>, %arg16: memref<32x8xbf16, #tpu.memory_space<vmem>>, %arg17: memref<32x1xf32, #tpu.memory_space<vmem>>, %arg18: memref<1x2x16x128xf32, #tpu.memory_space<vmem>>) attributes {dimension_semantics = [#tpu.dimension_semantics<parallel>], iteration_bounds = array<i64: 2>, scalar_prefetch = 0 : i64, scratch_operands = 0 : i64, tpu.core_type = #tpu.core_type<tc>, window_params = [{transform_indices = @transform_0, window_bounds = array<i64: 1, 8, 128>}, {pipeline_mode = #tpu.pipeline_mode<synchronous>, transform_indices = @transform_1, window_bounds = array<i64: 8, 8>}, {pipeline_mode = #tpu.pipeline_mode<synchronous>, transform_indices = @transform_2, window_bounds = array<i64: 8, 1>}, {pipeline_mode = #tpu.pipeline_mode<synchronous>, transform_indices = @transform_3, window_bounds = array<i64: 2, 16, 8>}, {pipeline_mode = #tpu.pipeline_mode<synchronous>, transform_indices = @transform_4, window_bounds = array<i64: 2, 16, 1>}, {pipeline_mode = #tpu.pipeline_mode<synchronous>, transform_indices = @transform_5, window_bounds = array<i64: 2, 1, 1>}, {pipeline_mode = #tpu.pipeline_mode<synchronous>, transform_indices = @transform_6, window_bounds = array<i64: 2, 16, 1>}, {pipeline_mode = #tpu.pipeline_mode<synchronous>, transform_indices = @transform_7, window_bounds = array<i64: 2, 16, 1>}, {pipeline_mode = #tpu.pipeline_mode<synchronous>, transform_indices = @transform_8, window_bounds = array<i64: 2, 16, 3>}, {pipeline_mode = #tpu.pipeline_mode<synchronous>, transform_indices = @transform_9, window_bounds = array<i64: 2, 16, 1>}, {pipeline_mode = #tpu.pipeline_mode<synchronous>, transform_indices = @transform_10, window_bounds = array<i64: 2, 1, 1>}, {pipeline_mode = #tpu.pipeline_mode<synchronous>, transform_indices = @transform_11, window_bounds = array<i64: 2, 16, 1>}, {pipeline_mode = #tpu.pipeline_mode<synchronous>, transform_indices = @transform_12, window_bounds = array<i64: 2, 16, 1>}, {pipeline_mode = #tpu.pipeline_mode<synchronous>, transform_indices = @transform_13, window_bounds = array<i64: 2, 8, 16>}, {pipeline_mode = #tpu.pipeline_mode<synchronous>, transform_indices = @transform_14, window_bounds = array<i64: 2, 8, 1>}, {pipeline_mode = #tpu.pipeline_mode<synchronous>, transform_indices = @transform_15, window_bounds = array<i64: 32, 8>}, {pipeline_mode = #tpu.pipeline_mode<synchronous>, transform_indices = @transform_16, window_bounds = array<i64: 32, 1>}, {transform_indices = @transform_17, window_bounds = array<i64: 1, 2, 16, 128>}]} {
    %c0 = arith.constant 0 : index
    %c0_0 = arith.constant 0 : index
    %c0_1 = arith.constant 0 : index
    %0 = vector.load %arg1[%c0, %c0_0, %c0_1] : memref<1x8x128xf32, #tpu.memory_space<vmem>>, vector<1x8x128xf32>
    %1 = vector.shape_cast %0 : vector<1x8x128xf32> to vector<8x128xf32>
    %2 = tpu.iota {dimensions = array<i32: 1>} : vector<1x128xi32>
    %c16_i32 = arith.constant 16 : i32
    %3 = vector.broadcast %c16_i32 : i32 to vector<1x128xi32>
    %4 = arith.cmpi slt, %2, %3 : vector<1x128xi32>
    %5 = arith.extui %4 : vector<1x128xi1> to vector<1x128xi32>
    %6 = arith.sitofp %5 : vector<1x128xi32> to vector<1x128xf32>
    %c0_2 = arith.constant 0 : index
    %c0_3 = arith.constant 0 : index
    %7 = vector.load %arg2[%c0_2, %c0_3] : memref<8x8xbf16, #tpu.memory_space<vmem>>, vector<8x8xbf16>
    %8 = arith.truncf %1 : vector<8x128xf32> to vector<8x128xbf16>
    %cst = arith.constant dense<0.000000e+00> : vector<8x128xf32>
    %9 = tpu.matmul %7, %8, %cst {dimension_numbers = #tpu.dot_dimension_numbers<[1], [0], [0], [1], [0, 0, 1, 1], [], []>} : vector<8x8xbf16>, vector<8x128xbf16>, vector<8x128xf32> -> vector<8x128xf32>
    %c0_4 = arith.constant 0 : index
    %c0_5 = arith.constant 0 : index
    %10 = vector.load %arg3[%c0_4, %c0_5] : memref<8x1xf32, #tpu.memory_space<vmem>>, vector<8x1xf32>
    %11 = vector.broadcast %10 : vector<8x1xf32> to vector<8x128xf32>
    %12 = arith.addf %9, %11 : vector<8x128xf32>
    %13 = vector.broadcast %6 : vector<1x128xf32> to vector<8x128xf32>
    %14 = arith.mulf %12, %13 : vector<8x128xf32>
    %c0_i32 = arith.constant 0 : i32
    %c2_i32 = arith.constant 2 : i32
    %15 = arith.muli %c0_i32, %c2_i32 : i32
    %c0_i32_6 = arith.constant 0 : i32
    %16 = arith.addi %15, %c0_i32_6 : i32
    %17 = arith.index_cast %16 : i32 to index
    %c0_7 = arith.constant 0 : index
    %c0_8 = arith.constant 0 : index
    %18 = vector.load %arg4[%17, %c0_7, %c0_8] : memref<2x16x8xbf16, #tpu.memory_space<vmem>>, vector<1x16x8xbf16>
    %19 = vector.shape_cast %18 : vector<1x16x8xbf16> to vector<16x8xbf16>
    %20 = arith.truncf %14 : vector<8x128xf32> to vector<8x128xbf16>
    %cst_9 = arith.constant dense<0.000000e+00> : vector<16x128xf32>
    %21 = tpu.matmul %19, %20, %cst_9 {dimension_numbers = #tpu.dot_dimension_numbers<[1], [0], [0], [1], [0, 0, 1, 1], [], []>} : vector<16x8xbf16>, vector<8x128xbf16>, vector<16x128xf32> -> vector<16x128xf32>
    %22 = arith.index_cast %16 : i32 to index
    %c0_10 = arith.constant 0 : index
    %c0_11 = arith.constant 0 : index
    %23 = vector.load %arg5[%22, %c0_10, %c0_11] : memref<2x16x1xf32, #tpu.memory_space<vmem>>, vector<1x16x1xf32>
    %24 = vector.shape_cast %23 : vector<1x16x1xf32> to vector<16x1xf32>
    %25 = vector.broadcast %24 : vector<16x1xf32> to vector<16x128xf32>
    %26 = arith.addf %21, %25 : vector<16x128xf32>
    %27 = arith.index_cast %16 : i32 to index
    %c0_12 = arith.constant 0 : index
    %c0_13 = arith.constant 0 : index
    %28 = vector.load %arg6[%27, %c0_12, %c0_13] : memref<2x1x1xf32, #tpu.memory_space<vmem>>, vector<1x1x1xf32>
    %29 = vector.shape_cast %28 : vector<1x1x1xf32> to vector<1x1xf32>
    %cst_14 = arith.constant 0.000000e+00 : f32
    %30 = vector.broadcast %cst_14 : f32 to vector<16x128xf32>
    %31 = arith.cmpf ogt, %26, %30 : vector<16x128xf32>
    %32 = vector.broadcast %29 : vector<1x1xf32> to vector<16x128xf32>
    %33 = arith.mulf %32, %26 : vector<16x128xf32>
    %34 = arith.select %31, %26, %33 : vector<16x128xi1>, vector<16x128xf32>
    %35 = arith.index_cast %16 : i32 to index
    %c0_15 = arith.constant 0 : index
    %c0_16 = arith.constant 0 : index
    %36 = vector.load %arg7[%35, %c0_15, %c0_16] : memref<2x16x1xf32, #tpu.memory_space<vmem>>, vector<1x16x1xf32>
    %37 = vector.shape_cast %36 : vector<1x16x1xf32> to vector<16x1xf32>
    %38 = arith.index_cast %16 : i32 to index
    %c0_17 = arith.constant 0 : index
    %c0_18 = arith.constant 0 : index
    %39 = vector.load %arg8[%38, %c0_17, %c0_18] : memref<2x16x1xf32, #tpu.memory_space<vmem>>, vector<1x16x1xf32>
    %40 = vector.shape_cast %39 : vector<1x16x1xf32> to vector<16x1xf32>
    %41 = vector.broadcast %6 : vector<1x128xf32> to vector<16x128xf32>
    %42 = arith.mulf %34, %41 : vector<16x128xf32>
    %43 = vector.shape_cast %42 : vector<16x128xf32> to vector<1x16x128xf32>
    %cst_19 = arith.constant dense<0.000000e+00> : vector<1xf32>
    %44 = vector.multi_reduction <add>, %43, %cst_19 [1, 2] : vector<1x16x128xf32> to vector<1xf32>
    %45 = vector.shape_cast %44 : vector<1xf32> to vector<1x1x1xf32>
    %46 = vector.extract %45[0, 0, 0] : f32 from vector<1x1x1xf32>
    %47 = arith.mulf %42, %42 : vector<16x128xf32>
    %48 = vector.shape_cast %47 : vector<16x128xf32> to vector<1x16x128xf32>
    %cst_20 = arith.constant dense<0.000000e+00> : vector<1xf32>
    %49 = vector.multi_reduction <add>, %48, %cst_20 [1, 2] : vector<1x16x128xf32> to vector<1xf32>
    %50 = vector.shape_cast %49 : vector<1xf32> to vector<1x1x1xf32>
    %51 = vector.extract %50[0, 0, 0] : f32 from vector<1x1x1xf32>
    %cst_21 = arith.constant 3.906250e-03 : f32
    %52 = arith.mulf %46, %cst_21 : f32
    %cst_22 = arith.constant 3.906250e-03 : f32
    %53 = arith.mulf %51, %cst_22 : f32
    %54 = arith.mulf %52, %52 : f32
    %55 = arith.subf %53, %54 : f32
    %56 = vector.broadcast %52 : f32 to vector<16x128xf32>
    %57 = arith.subf %34, %56 : vector<16x128xf32>
    %58 = vector.broadcast %37 : vector<16x1xf32> to vector<16x128xf32>
    %59 = arith.mulf %58, %57 : vector<16x128xf32>
    %cst_23 = arith.constant 1.000000e-07 : f32
    %60 = arith.addf %55, %cst_23 : f32
    %61 = math.rsqrt %60 : f32
    %62 = vector.broadcast %61 : f32 to vector<16x128xf32>
    %63 = arith.mulf %59, %62 : vector<16x128xf32>
    %64 = vector.broadcast %40 : vector<16x1xf32> to vector<16x128xf32>
    %65 = arith.addf %63, %64 : vector<16x128xf32>
    %66 = vector.broadcast %6 : vector<1x128xf32> to vector<16x128xf32>
    %67 = arith.mulf %65, %66 : vector<16x128xf32>
    %68 = arith.index_cast %16 : i32 to index
    %c0_24 = arith.constant 0 : index
    %c0_25 = arith.constant 0 : index
    %69 = vector.load %arg9[%68, %c0_24, %c0_25] : memref<2x16x3xf32, #tpu.memory_space<vmem>>, vector<1x16x3xf32>
    %70 = vector.shape_cast %69 : vector<1x16x3xf32> to vector<16x3xf32>
    %c1_i32 = arith.constant 1 : i32
    %71 = tpu.dynamic_rotate %67 by %c1_i32 dim 1 : vector<16x128xf32>, i32 -> vector<16x128xf32>
    %72 = vector.extract_strided_slice %70 {offsets = [0, 0], sizes = [16, 1], strides = [1, 1]} : vector<16x3xf32> to vector<16x1xf32>
    %73 = vector.broadcast %72 : vector<16x1xf32> to vector<16x128xf32>
    %74 = arith.mulf %73, %71 : vector<16x128xf32>
    %75 = vector.extract_strided_slice %70 {offsets = [0, 1], sizes = [16, 1], strides = [1, 1]} : vector<16x3xf32> to vector<16x1xf32>
    %76 = vector.broadcast %75 : vector<16x1xf32> to vector<16x128xf32>
    %77 = arith.mulf %76, %67 : vector<16x128xf32>
    %78 = arith.addf %74, %77 : vector<16x128xf32>
    %c127_i32 = arith.constant 127 : i32
    %79 = tpu.dynamic_rotate %67 by %c127_i32 dim 1 : vector<16x128xf32>, i32 -> vector<16x128xf32>
    %80 = vector.extract_strided_slice %70 {offsets = [0, 2], sizes = [16, 1], strides = [1, 1]} : vector<16x3xf32> to vector<16x1xf32>
    %81 = vector.broadcast %80 : vector<16x1xf32> to vector<16x128xf32>
    %82 = arith.mulf %81, %79 : vector<16x128xf32>
    %83 = arith.addf %78, %82 : vector<16x128xf32>
    %84 = arith.index_cast %16 : i32 to index
    %c0_26 = arith.constant 0 : index
    %c0_27 = arith.constant 0 : index
    %85 = vector.load %arg10[%84, %c0_26, %c0_27] : memref<2x16x1xf32, #tpu.memory_space<vmem>>, vector<1x16x1xf32>
    %86 = vector.shape_cast %85 : vector<1x16x1xf32> to vector<16x1xf32>
    %87 = vector.broadcast %86 : vector<16x1xf32> to vector<16x128xf32>
    %88 = arith.addf %83, %87 : vector<16x128xf32>
    %89 = arith.index_cast %16 : i32 to index
    %c0_28 = arith.constant 0 : index
    %c0_29 = arith.constant 0 : index
    %90 = vector.load %arg11[%89, %c0_28, %c0_29] : memref<2x1x1xf32, #tpu.memory_space<vmem>>, vector<1x1x1xf32>
    %91 = vector.shape_cast %90 : vector<1x1x1xf32> to vector<1x1xf32>
    %cst_30 = arith.constant 0.000000e+00 : f32
    %92 = vector.broadcast %cst_30 : f32 to vector<16x128xf32>
    %93 = arith.cmpf ogt, %88, %92 : vector<16x128xf32>
    %94 = vector.broadcast %91 : vector<1x1xf32> to vector<16x128xf32>
    %95 = arith.mulf %94, %88 : vector<16x128xf32>
    %96 = arith.select %93, %88, %95 : vector<16x128xi1>, vector<16x128xf32>
    %97 = arith.index_cast %16 : i32 to index
    %c0_31 = arith.constant 0 : index
    %c0_32 = arith.constant 0 : index
    %98 = vector.load %arg12[%97, %c0_31, %c0_32] : memref<2x16x1xf32, #tpu.memory_space<vmem>>, vector<1x16x1xf32>
    %99 = vector.shape_cast %98 : vector<1x16x1xf32> to vector<16x1xf32>
    %100 = arith.index_cast %16 : i32 to index
    %c0_33 = arith.constant 0 : index
    %c0_34 = arith.constant 0 : index
    %101 = vector.load %arg13[%100, %c0_33, %c0_34] : memref<2x16x1xf32, #tpu.memory_space<vmem>>, vector<1x16x1xf32>
    %102 = vector.shape_cast %101 : vector<1x16x1xf32> to vector<16x1xf32>
    %103 = vector.broadcast %6 : vector<1x128xf32> to vector<16x128xf32>
    %104 = arith.mulf %96, %103 : vector<16x128xf32>
    %105 = vector.shape_cast %104 : vector<16x128xf32> to vector<1x16x128xf32>
    %cst_35 = arith.constant dense<0.000000e+00> : vector<1xf32>
    %106 = vector.multi_reduction <add>, %105, %cst_35 [1, 2] : vector<1x16x128xf32> to vector<1xf32>
    %107 = vector.shape_cast %106 : vector<1xf32> to vector<1x1x1xf32>
    %108 = vector.extract %107[0, 0, 0] : f32 from vector<1x1x1xf32>
    %109 = arith.mulf %104, %104 : vector<16x128xf32>
    %110 = vector.shape_cast %109 : vector<16x128xf32> to vector<1x16x128xf32>
    %cst_36 = arith.constant dense<0.000000e+00> : vector<1xf32>
    %111 = vector.multi_reduction <add>, %110, %cst_36 [1, 2] : vector<1x16x128xf32> to vector<1xf32>
    %112 = vector.shape_cast %111 : vector<1xf32> to vector<1x1x1xf32>
    %113 = vector.extract %112[0, 0, 0] : f32 from vector<1x1x1xf32>
    %cst_37 = arith.constant 3.906250e-03 : f32
    %114 = arith.mulf %108, %cst_37 : f32
    %cst_38 = arith.constant 3.906250e-03 : f32
    %115 = arith.mulf %113, %cst_38 : f32
    %116 = arith.mulf %114, %114 : f32
    %117 = arith.subf %115, %116 : f32
    %118 = vector.broadcast %114 : f32 to vector<16x128xf32>
    %119 = arith.subf %96, %118 : vector<16x128xf32>
    %120 = vector.broadcast %99 : vector<16x1xf32> to vector<16x128xf32>
    %121 = arith.mulf %120, %119 : vector<16x128xf32>
    %cst_39 = arith.constant 1.000000e-07 : f32
    %122 = arith.addf %117, %cst_39 : f32
    %123 = math.rsqrt %122 : f32
    %124 = vector.broadcast %123 : f32 to vector<16x128xf32>
    %125 = arith.mulf %121, %124 : vector<16x128xf32>
    %126 = vector.broadcast %102 : vector<16x1xf32> to vector<16x128xf32>
    %127 = arith.addf %125, %126 : vector<16x128xf32>
    %128 = arith.index_cast %16 : i32 to index
    %c0_40 = arith.constant 0 : index
    %c0_41 = arith.constant 0 : index
    %129 = vector.load %arg14[%128, %c0_40, %c0_41] : memref<2x8x16xbf16, #tpu.memory_space<vmem>>, vector<1x8x16xbf16>
    %130 = vector.shape_cast %129 : vector<1x8x16xbf16> to vector<8x16xbf16>
    %131 = arith.truncf %127 : vector<16x128xf32> to vector<16x128xbf16>
    %cst_42 = arith.constant dense<0.000000e+00> : vector<8x128xf32>
    %132 = tpu.matmul %130, %131, %cst_42 {dimension_numbers = #tpu.dot_dimension_numbers<[1], [0], [0], [1], [0, 0, 1, 1], [], []>} : vector<8x16xbf16>, vector<16x128xbf16>, vector<8x128xf32> -> vector<8x128xf32>
    %133 = arith.index_cast %16 : i32 to index
    %c0_43 = arith.constant 0 : index
    %c0_44 = arith.constant 0 : index
    %134 = vector.load %arg15[%133, %c0_43, %c0_44] : memref<2x8x1xf32, #tpu.memory_space<vmem>>, vector<1x8x1xf32>
    %135 = vector.shape_cast %134 : vector<1x8x1xf32> to vector<8x1xf32>
    %136 = vector.broadcast %135 : vector<8x1xf32> to vector<8x128xf32>
    %137 = arith.addf %132, %136 : vector<8x128xf32>
    %138 = arith.addf %14, %137 : vector<8x128xf32>
    %139 = vector.broadcast %6 : vector<1x128xf32> to vector<8x128xf32>
    %140 = arith.mulf %138, %139 : vector<8x128xf32>
    %c2_i32_45 = arith.constant 2 : i32
    %141 = arith.muli %c0_i32, %c2_i32_45 : i32
    %c1_i32_46 = arith.constant 1 : i32
    %142 = arith.addi %141, %c1_i32_46 : i32
    %143 = arith.index_cast %142 : i32 to index
    %c0_47 = arith.constant 0 : index
    %c0_48 = arith.constant 0 : index
    %144 = vector.load %arg4[%143, %c0_47, %c0_48] : memref<2x16x8xbf16, #tpu.memory_space<vmem>>, vector<1x16x8xbf16>
    %145 = vector.shape_cast %144 : vector<1x16x8xbf16> to vector<16x8xbf16>
    %146 = arith.truncf %140 : vector<8x128xf32> to vector<8x128xbf16>
    %cst_49 = arith.constant dense<0.000000e+00> : vector<16x128xf32>
    %147 = tpu.matmul %145, %146, %cst_49 {dimension_numbers = #tpu.dot_dimension_numbers<[1], [0], [0], [1], [0, 0, 1, 1], [], []>} : vector<16x8xbf16>, vector<8x128xbf16>, vector<16x128xf32> -> vector<16x128xf32>
    %148 = arith.index_cast %142 : i32 to index
    %c0_50 = arith.constant 0 : index
    %c0_51 = arith.constant 0 : index
    %149 = vector.load %arg5[%148, %c0_50, %c0_51] : memref<2x16x1xf32, #tpu.memory_space<vmem>>, vector<1x16x1xf32>
    %150 = vector.shape_cast %149 : vector<1x16x1xf32> to vector<16x1xf32>
    %151 = vector.broadcast %150 : vector<16x1xf32> to vector<16x128xf32>
    %152 = arith.addf %147, %151 : vector<16x128xf32>
    %153 = arith.index_cast %142 : i32 to index
    %c0_52 = arith.constant 0 : index
    %c0_53 = arith.constant 0 : index
    %154 = vector.load %arg6[%153, %c0_52, %c0_53] : memref<2x1x1xf32, #tpu.memory_space<vmem>>, vector<1x1x1xf32>
    %155 = vector.shape_cast %154 : vector<1x1x1xf32> to vector<1x1xf32>
    %cst_54 = arith.constant 0.000000e+00 : f32
    %156 = vector.broadcast %cst_54 : f32 to vector<16x128xf32>
    %157 = arith.cmpf ogt, %152, %156 : vector<16x128xf32>
    %158 = vector.broadcast %155 : vector<1x1xf32> to vector<16x128xf32>
    %159 = arith.mulf %158, %152 : vector<16x128xf32>
    %160 = arith.select %157, %152, %159 : vector<16x128xi1>, vector<16x128xf32>
    %161 = arith.index_cast %142 : i32 to index
    %c0_55 = arith.constant 0 : index
    %c0_56 = arith.constant 0 : index
    %162 = vector.load %arg7[%161, %c0_55, %c0_56] : memref<2x16x1xf32, #tpu.memory_space<vmem>>, vector<1x16x1xf32>
    %163 = vector.shape_cast %162 : vector<1x16x1xf32> to vector<16x1xf32>
    %164 = arith.index_cast %142 : i32 to index
    %c0_57 = arith.constant 0 : index
    %c0_58 = arith.constant 0 : index
    %165 = vector.load %arg8[%164, %c0_57, %c0_58] : memref<2x16x1xf32, #tpu.memory_space<vmem>>, vector<1x16x1xf32>
    %166 = vector.shape_cast %165 : vector<1x16x1xf32> to vector<16x1xf32>
    %167 = vector.broadcast %6 : vector<1x128xf32> to vector<16x128xf32>
    %168 = arith.mulf %160, %167 : vector<16x128xf32>
    %169 = vector.shape_cast %168 : vector<16x128xf32> to vector<1x16x128xf32>
    %cst_59 = arith.constant dense<0.000000e+00> : vector<1xf32>
    %170 = vector.multi_reduction <add>, %169, %cst_59 [1, 2] : vector<1x16x128xf32> to vector<1xf32>
    %171 = vector.shape_cast %170 : vector<1xf32> to vector<1x1x1xf32>
    %172 = vector.extract %171[0, 0, 0] : f32 from vector<1x1x1xf32>
    %173 = arith.mulf %168, %168 : vector<16x128xf32>
    %174 = vector.shape_cast %173 : vector<16x128xf32> to vector<1x16x128xf32>
    %cst_60 = arith.constant dense<0.000000e+00> : vector<1xf32>
    %175 = vector.multi_reduction <add>, %174, %cst_60 [1, 2] : vector<1x16x128xf32> to vector<1xf32>
    %176 = vector.shape_cast %175 : vector<1xf32> to vector<1x1x1xf32>
    %177 = vector.extract %176[0, 0, 0] : f32 from vector<1x1x1xf32>
    %cst_61 = arith.constant 3.906250e-03 : f32
    %178 = arith.mulf %172, %cst_61 : f32
    %cst_62 = arith.constant 3.906250e-03 : f32
    %179 = arith.mulf %177, %cst_62 : f32
    %180 = arith.mulf %178, %178 : f32
    %181 = arith.subf %179, %180 : f32
    %182 = vector.broadcast %178 : f32 to vector<16x128xf32>
    %183 = arith.subf %160, %182 : vector<16x128xf32>
    %184 = vector.broadcast %163 : vector<16x1xf32> to vector<16x128xf32>
    %185 = arith.mulf %184, %183 : vector<16x128xf32>
    %cst_63 = arith.constant 1.000000e-07 : f32
    %186 = arith.addf %181, %cst_63 : f32
    %187 = math.rsqrt %186 : f32
    %188 = vector.broadcast %187 : f32 to vector<16x128xf32>
    %189 = arith.mulf %185, %188 : vector<16x128xf32>
    %190 = vector.broadcast %166 : vector<16x1xf32> to vector<16x128xf32>
    %191 = arith.addf %189, %190 : vector<16x128xf32>
    %192 = vector.broadcast %6 : vector<1x128xf32> to vector<16x128xf32>
    %193 = arith.mulf %191, %192 : vector<16x128xf32>
    %194 = arith.index_cast %142 : i32 to index
    %c0_64 = arith.constant 0 : index
    %c0_65 = arith.constant 0 : index
    %195 = vector.load %arg9[%194, %c0_64, %c0_65] : memref<2x16x3xf32, #tpu.memory_space<vmem>>, vector<1x16x3xf32>
    %196 = vector.shape_cast %195 : vector<1x16x3xf32> to vector<16x3xf32>
    %c2_i32_66 = arith.constant 2 : i32
    %197 = tpu.dynamic_rotate %193 by %c2_i32_66 dim 1 : vector<16x128xf32>, i32 -> vector<16x128xf32>
    %198 = vector.extract_strided_slice %196 {offsets = [0, 0], sizes = [16, 1], strides = [1, 1]} : vector<16x3xf32> to vector<16x1xf32>
    %199 = vector.broadcast %198 : vector<16x1xf32> to vector<16x128xf32>
    %200 = arith.mulf %199, %197 : vector<16x128xf32>
    %201 = vector.extract_strided_slice %196 {offsets = [0, 1], sizes = [16, 1], strides = [1, 1]} : vector<16x3xf32> to vector<16x1xf32>
    %202 = vector.broadcast %201 : vector<16x1xf32> to vector<16x128xf32>
    %203 = arith.mulf %202, %193 : vector<16x128xf32>
    %204 = arith.addf %200, %203 : vector<16x128xf32>
    %c126_i32 = arith.constant 126 : i32
    %205 = tpu.dynamic_rotate %193 by %c126_i32 dim 1 : vector<16x128xf32>, i32 -> vector<16x128xf32>
    %206 = vector.extract_strided_slice %196 {offsets = [0, 2], sizes = [16, 1], strides = [1, 1]} : vector<16x3xf32> to vector<16x1xf32>
    %207 = vector.broadcast %206 : vector<16x1xf32> to vector<16x128xf32>
    %208 = arith.mulf %207, %205 : vector<16x128xf32>
    %209 = arith.addf %204, %208 : vector<16x128xf32>
    %210 = arith.index_cast %142 : i32 to index
    %c0_67 = arith.constant 0 : index
    %c0_68 = arith.constant 0 : index
    %211 = vector.load %arg10[%210, %c0_67, %c0_68] : memref<2x16x1xf32, #tpu.memory_space<vmem>>, vector<1x16x1xf32>
    %212 = vector.shape_cast %211 : vector<1x16x1xf32> to vector<16x1xf32>
    %213 = vector.broadcast %212 : vector<16x1xf32> to vector<16x128xf32>
    %214 = arith.addf %209, %213 : vector<16x128xf32>
    %215 = arith.index_cast %142 : i32 to index
    %c0_69 = arith.constant 0 : index
    %c0_70 = arith.constant 0 : index
    %216 = vector.load %arg11[%215, %c0_69, %c0_70] : memref<2x1x1xf32, #tpu.memory_space<vmem>>, vector<1x1x1xf32>
    %217 = vector.shape_cast %216 : vector<1x1x1xf32> to vector<1x1xf32>
    %cst_71 = arith.constant 0.000000e+00 : f32
    %218 = vector.broadcast %cst_71 : f32 to vector<16x128xf32>
    %219 = arith.cmpf ogt, %214, %218 : vector<16x128xf32>
    %220 = vector.broadcast %217 : vector<1x1xf32> to vector<16x128xf32>
    %221 = arith.mulf %220, %214 : vector<16x128xf32>
    %222 = arith.select %219, %214, %221 : vector<16x128xi1>, vector<16x128xf32>
    %223 = arith.index_cast %142 : i32 to index
    %c0_72 = arith.constant 0 : index
    %c0_73 = arith.constant 0 : index
    %224 = vector.load %arg12[%223, %c0_72, %c0_73] : memref<2x16x1xf32, #tpu.memory_space<vmem>>, vector<1x16x1xf32>
    %225 = vector.shape_cast %224 : vector<1x16x1xf32> to vector<16x1xf32>
    %226 = arith.index_cast %142 : i32 to index
    %c0_74 = arith.constant 0 : index
    %c0_75 = arith.constant 0 : index
    %227 = vector.load %arg13[%226, %c0_74, %c0_75] : memref<2x16x1xf32, #tpu.memory_space<vmem>>, vector<1x16x1xf32>
    %228 = vector.shape_cast %227 : vector<1x16x1xf32> to vector<16x1xf32>
    %229 = vector.broadcast %6 : vector<1x128xf32> to vector<16x128xf32>
    %230 = arith.mulf %222, %229 : vector<16x128xf32>
    %231 = vector.shape_cast %230 : vector<16x128xf32> to vector<1x16x128xf32>
    %cst_76 = arith.constant dense<0.000000e+00> : vector<1xf32>
    %232 = vector.multi_reduction <add>, %231, %cst_76 [1, 2] : vector<1x16x128xf32> to vector<1xf32>
    %233 = vector.shape_cast %232 : vector<1xf32> to vector<1x1x1xf32>
    %234 = vector.extract %233[0, 0, 0] : f32 from vector<1x1x1xf32>
    %235 = arith.mulf %230, %230 : vector<16x128xf32>
    %236 = vector.shape_cast %235 : vector<16x128xf32> to vector<1x16x128xf32>
    %cst_77 = arith.constant dense<0.000000e+00> : vector<1xf32>
    %237 = vector.multi_reduction <add>, %236, %cst_77 [1, 2] : vector<1x16x128xf32> to vector<1xf32>
    %238 = vector.shape_cast %237 : vector<1xf32> to vector<1x1x1xf32>
    %239 = vector.extract %238[0, 0, 0] : f32 from vector<1x1x1xf32>
    %cst_78 = arith.constant 3.906250e-03 : f32
    %240 = arith.mulf %234, %cst_78 : f32
    %cst_79 = arith.constant 3.906250e-03 : f32
    %241 = arith.mulf %239, %cst_79 : f32
    %242 = arith.mulf %240, %240 : f32
    %243 = arith.subf %241, %242 : f32
    %244 = vector.broadcast %240 : f32 to vector<16x128xf32>
    %245 = arith.subf %222, %244 : vector<16x128xf32>
    %246 = vector.broadcast %225 : vector<16x1xf32> to vector<16x128xf32>
    %247 = arith.mulf %246, %245 : vector<16x128xf32>
    %cst_80 = arith.constant 1.000000e-07 : f32
    %248 = arith.addf %243, %cst_80 : f32
    %249 = math.rsqrt %248 : f32
    %250 = vector.broadcast %249 : f32 to vector<16x128xf32>
    %251 = arith.mulf %247, %250 : vector<16x128xf32>
    %252 = vector.broadcast %228 : vector<16x1xf32> to vector<16x128xf32>
    %253 = arith.addf %251, %252 : vector<16x128xf32>
    %254 = arith.index_cast %142 : i32 to index
    %c0_81 = arith.constant 0 : index
    %c0_82 = arith.constant 0 : index
    %255 = vector.load %arg14[%254, %c0_81, %c0_82] : memref<2x8x16xbf16, #tpu.memory_space<vmem>>, vector<1x8x16xbf16>
    %256 = vector.shape_cast %255 : vector<1x8x16xbf16> to vector<8x16xbf16>
    %257 = arith.truncf %253 : vector<16x128xf32> to vector<16x128xbf16>
    %cst_83 = arith.constant dense<0.000000e+00> : vector<8x128xf32>
    %258 = tpu.matmul %256, %257, %cst_83 {dimension_numbers = #tpu.dot_dimension_numbers<[1], [0], [0], [1], [0, 0, 1, 1], [], []>} : vector<8x16xbf16>, vector<16x128xbf16>, vector<8x128xf32> -> vector<8x128xf32>
    %259 = arith.index_cast %142 : i32 to index
    %c0_84 = arith.constant 0 : index
    %c0_85 = arith.constant 0 : index
    %260 = vector.load %arg15[%259, %c0_84, %c0_85] : memref<2x8x1xf32, #tpu.memory_space<vmem>>, vector<1x8x1xf32>
    %261 = vector.shape_cast %260 : vector<1x8x1xf32> to vector<8x1xf32>
    %262 = vector.broadcast %261 : vector<8x1xf32> to vector<8x128xf32>
    %263 = arith.addf %258, %262 : vector<8x128xf32>
    %264 = arith.addf %140, %263 : vector<8x128xf32>
    %265 = vector.broadcast %6 : vector<1x128xf32> to vector<8x128xf32>
    %266 = arith.mulf %264, %265 : vector<8x128xf32>
    %c1_i32_86 = arith.constant 1 : i32
    %c0_87 = arith.constant 0 : index
    %c0_88 = arith.constant 0 : index
    %267 = vector.load %arg16[%c0_87, %c0_88] : memref<32x8xbf16, #tpu.memory_space<vmem>>, vector<32x8xbf16>
    %268 = arith.truncf %266 : vector<8x128xf32> to vector<8x128xbf16>
    %cst_89 = arith.constant dense<0.000000e+00> : vector<32x128xf32>
    %269 = tpu.matmul %267, %268, %cst_89 {dimension_numbers = #tpu.dot_dimension_numbers<[1], [0], [0], [1], [0, 0, 1, 1], [], []>} : vector<32x8xbf16>, vector<8x128xbf16>, vector<32x128xf32> -> vector<32x128xf32>
    %c0_90 = arith.constant 0 : index
    %c0_91 = arith.constant 0 : index
    %270 = vector.load %arg17[%c0_90, %c0_91] : memref<32x1xf32, #tpu.memory_space<vmem>>, vector<32x1xf32>
    %271 = vector.broadcast %270 : vector<32x1xf32> to vector<32x128xf32>
    %272 = arith.addf %269, %271 : vector<32x128xf32>
    %cst_92 = arith.constant 0.000000e+00 : f32
    %273 = vector.broadcast %cst_92 : f32 to vector<32x128xf32>
    %274 = arith.maximumf %272, %273 : vector<32x128xf32>
    %275 = vector.extract_strided_slice %274 {offsets = [0, 0], sizes = [16, 128], strides = [1, 1]} : vector<32x128xf32> to vector<16x128xf32>
    %276 = vector.extract_strided_slice %274 {offsets = [16, 0], sizes = [16, 128], strides = [1, 1]} : vector<32x128xf32> to vector<16x128xf32>
    %277 = arith.maximumf %275, %276 : vector<16x128xf32>
    %278 = arith.subf %275, %277 : vector<16x128xf32>
    %279 = math.exp %278 : vector<16x128xf32>
    %280 = arith.subf %276, %277 : vector<16x128xf32>
    %281 = math.exp %280 : vector<16x128xf32>
    %282 = arith.addf %279, %281 : vector<16x128xf32>
    %283 = tpu.reciprocal %282 {approx = true} : vector<16x128xf32> -> vector<16x128xf32>
    %284 = arith.mulf %282, %283 : vector<16x128xf32>
    %cst_93 = arith.constant 2.000000e+00 : f32
    %285 = vector.broadcast %cst_93 : f32 to vector<16x128xf32>
    %286 = arith.subf %285, %284 : vector<16x128xf32>
    %287 = arith.mulf %283, %286 : vector<16x128xf32>
    %288 = arith.mulf %279, %287 : vector<16x128xf32>
    %c0_94 = arith.constant 0 : index
    %c0_95 = arith.constant 0 : index
    %c0_96 = arith.constant 0 : index
    %c0_97 = arith.constant 0 : index
    %289 = vector.load %arg18[%c0_94, %c0_95, %c0_96, %c0_97] : memref<1x2x16x128xf32, #tpu.memory_space<vmem>>, vector<1x1x16x128xf32>
    %290 = vector.shape_cast %289 : vector<1x1x16x128xf32> to vector<16x128xf32>
    %291 = vector.shape_cast %288 : vector<16x128xf32> to vector<1x1x16x128xf32>
    tpu.vector_store %arg18[%c0_94, %c0_95, %c0_96, %c0_97], %291 {strides = array<i32>} : memref<1x2x16x128xf32, #tpu.memory_space<vmem>>, vector<1x1x16x128xf32>,
    %292 = arith.mulf %281, %287 : vector<16x128xf32>
    %c0_98 = arith.constant 0 : index
    %c1 = arith.constant 1 : index
    %c0_99 = arith.constant 0 : index
    %c0_100 = arith.constant 0 : index
    %293 = vector.load %arg18[%c0_98, %c1, %c0_99, %c0_100] : memref<1x2x16x128xf32, #tpu.memory_space<vmem>>, vector<1x1x16x128xf32>
    %294 = vector.shape_cast %293 : vector<1x1x16x128xf32> to vector<16x128xf32>
    %295 = vector.shape_cast %292 : vector<16x128xf32> to vector<1x1x16x128xf32>
    tpu.vector_store %arg18[%c0_98, %c1, %c0_99, %c0_100], %295 {strides = array<i32>} : memref<1x2x16x128xf32, #tpu.memory_space<vmem>>, vector<1x1x16x128xf32>,
    return
  }
  func.func @transform_0(%arg0: i32) -> (i32, i32, i32) {
    %c0_i32 = arith.constant 0 : i32
    %c0_i32_0 = arith.constant 0 : i32
    %c0_i32_1 = arith.constant 0 : i32
    return %arg0, %c0_i32, %c0_i32_0 : i32, i32, i32
  }
  func.func @transform_1(%arg0: i32) -> (i32, i32) {
    %c0_i32 = arith.constant 0 : i32
    %c0_i32_0 = arith.constant 0 : i32
    %c0_i32_1 = arith.constant 0 : i32
    return %c0_i32, %c0_i32_0 : i32, i32
  }
  func.func @transform_2(%arg0: i32) -> (i32, i32) {
    %c0_i32 = arith.constant 0 : i32
    %c0_i32_0 = arith.constant 0 : i32
    %c0_i32_1 = arith.constant 0 : i32
    return %c0_i32, %c0_i32_0 : i32, i32
  }
  func.func @transform_3(%arg0: i32) -> (i32, i32, i32) {
    %c0_i32 = arith.constant 0 : i32
    %c0_i32_0 = arith.constant 0 : i32
    %c0_i32_1 = arith.constant 0 : i32
    %c0_i32_2 = arith.constant 0 : i32
    return %c0_i32, %c0_i32_0, %c0_i32_1 : i32, i32, i32
  }
  func.func @transform_4(%arg0: i32) -> (i32, i32, i32) {
    %c0_i32 = arith.constant 0 : i32
    %c0_i32_0 = arith.constant 0 : i32
    %c0_i32_1 = arith.constant 0 : i32
    %c0_i32_2 = arith.constant 0 : i32
    return %c0_i32, %c0_i32_0, %c0_i32_1 : i32, i32, i32
  }
  func.func @transform_5(%arg0: i32) -> (i32, i32, i32) {
    %c0_i32 = arith.constant 0 : i32
    %c0_i32_0 = arith.constant 0 : i32
    %c0_i32_1 = arith.constant 0 : i32
    %c0_i32_2 = arith.constant 0 : i32
    return %c0_i32, %c0_i32_0, %c0_i32_1 : i32, i32, i32
  }
  func.func @transform_6(%arg0: i32) -> (i32, i32, i32) {
    %c0_i32 = arith.constant 0 : i32
    %c0_i32_0 = arith.constant 0 : i32
    %c0_i32_1 = arith.constant 0 : i32
    %c0_i32_2 = arith.constant 0 : i32
    return %c0_i32, %c0_i32_0, %c0_i32_1 : i32, i32, i32
  }
  func.func @transform_7(%arg0: i32) -> (i32, i32, i32) {
    %c0_i32 = arith.constant 0 : i32
    %c0_i32_0 = arith.constant 0 : i32
    %c0_i32_1 = arith.constant 0 : i32
    %c0_i32_2 = arith.constant 0 : i32
    return %c0_i32, %c0_i32_0, %c0_i32_1 : i32, i32, i32
  }
  func.func @transform_8(%arg0: i32) -> (i32, i32, i32) {
    %c0_i32 = arith.constant 0 : i32
    %c0_i32_0 = arith.constant 0 : i32
    %c0_i32_1 = arith.constant 0 : i32
    %c0_i32_2 = arith.constant 0 : i32
    return %c0_i32, %c0_i32_0, %c0_i32_1 : i32, i32, i32
  }
  func.func @transform_9(%arg0: i32) -> (i32, i32, i32) {
    %c0_i32 = arith.constant 0 : i32
    %c0_i32_0 = arith.constant 0 : i32
    %c0_i32_1 = arith.constant 0 : i32
    %c0_i32_2 = arith.constant 0 : i32
    return %c0_i32, %c0_i32_0, %c0_i32_1 : i32, i32, i32
  }
  func.func @transform_10(%arg0: i32) -> (i32, i32, i32) {
    %c0_i32 = arith.constant 0 : i32
    %c0_i32_0 = arith.constant 0 : i32
    %c0_i32_1 = arith.constant 0 : i32
    %c0_i32_2 = arith.constant 0 : i32
    return %c0_i32, %c0_i32_0, %c0_i32_1 : i32, i32, i32
  }
  func.func @transform_11(%arg0: i32) -> (i32, i32, i32) {
    %c0_i32 = arith.constant 0 : i32
    %c0_i32_0 = arith.constant 0 : i32
    %c0_i32_1 = arith.constant 0 : i32
    %c0_i32_2 = arith.constant 0 : i32
    return %c0_i32, %c0_i32_0, %c0_i32_1 : i32, i32, i32
  }
  func.func @transform_12(%arg0: i32) -> (i32, i32, i32) {
    %c0_i32 = arith.constant 0 : i32
    %c0_i32_0 = arith.constant 0 : i32
    %c0_i32_1 = arith.constant 0 : i32
    %c0_i32_2 = arith.constant 0 : i32
    return %c0_i32, %c0_i32_0, %c0_i32_1 : i32, i32, i32
  }
  func.func @transform_13(%arg0: i32) -> (i32, i32, i32) {
    %c0_i32 = arith.constant 0 : i32
    %c0_i32_0 = arith.constant 0 : i32
    %c0_i32_1 = arith.constant 0 : i32
    %c0_i32_2 = arith.constant 0 : i32
    return %c0_i32, %c0_i32_0, %c0_i32_1 : i32, i32, i32
  }
  func.func @transform_14(%arg0: i32) -> (i32, i32, i32) {
    %c0_i32 = arith.constant 0 : i32
    %c0_i32_0 = arith.constant 0 : i32
    %c0_i32_1 = arith.constant 0 : i32
    %c0_i32_2 = arith.constant 0 : i32
    return %c0_i32, %c0_i32_0, %c0_i32_1 : i32, i32, i32
  }
  func.func @transform_15(%arg0: i32) -> (i32, i32) {
    %c0_i32 = arith.constant 0 : i32
    %c0_i32_0 = arith.constant 0 : i32
    %c0_i32_1 = arith.constant 0 : i32
    return %c0_i32, %c0_i32_0 : i32, i32
  }
  func.func @transform_16(%arg0: i32) -> (i32, i32) {
    %c0_i32 = arith.constant 0 : i32
    %c0_i32_0 = arith.constant 0 : i32
    %c0_i32_1 = arith.constant 0 : i32
    return %c0_i32, %c0_i32_0 : i32, i32
  }
  func.func @transform_17(%arg0: i32) -> (i32, i32, i32, i32) {
    %c0_i32 = arith.constant 0 : i32
    %c0_i32_0 = arith.constant 0 : i32
    %c0_i32_1 = arith.constant 0 : i32
    %c0_i32_2 = arith.constant 0 : i32
    return %arg0, %c0_i32, %c0_i32_0, %c0_i32_1 : i32, i32, i32, i32
  }
}

module attributes {stable_mosaic.version = 11 : i64} {
  func.func @_ctn_kernel(%arg0: i32, %arg1: memref<1x8x128xf32, #tpu.memory_space<vmem>>, %arg2: memref<8x8xbf16, #tpu.memory_space<vmem>>, %arg3: memref<8x1xf32, #tpu.memory_space<vmem>>, %arg4: memref<2x16x8xbf16, #tpu.memory_space<vmem>>, %arg5: memref<2x16x1xf32, #tpu.memory_space<vmem>>, %arg6: memref<2x1x1xf32, #tpu.memory_space<vmem>>, %arg7: memref<2x16x1xf32, #tpu.memory_space<vmem>>, %arg8: memref<2x16x1xf32, #tpu.memory_space<vmem>>, %arg9: memref<2x16x3xf32, #tpu.memory_space<vmem>>, %arg10: memref<2x16x1xf32, #tpu.memory_space<vmem>>, %arg11: memref<2x1x1xf32, #tpu.memory_space<vmem>>, %arg12: memref<2x16x1xf32, #tpu.memory_space<vmem>>, %arg13: memref<2x16x1xf32, #tpu.memory_space<vmem>>, %arg14: memref<2x8x16xbf16, #tpu.memory_space<vmem>>, %arg15: memref<2x8x1xf32, #tpu.memory_space<vmem>>, %arg16: memref<32x8xbf16, #tpu.memory_space<vmem>>, %arg17: memref<32x1xf32, #tpu.memory_space<vmem>>, %arg18: memref<1x2x16x128xf32, #tpu.memory_space<vmem>>) attributes {dimension_semantics = [#tpu.dimension_semantics<parallel>], iteration_bounds = array<i64: 2>, scalar_prefetch = 0 : i64, scratch_operands = 0 : i64, tpu.core_type = #tpu.core_type<tc>, window_params = [{transform_indices = @transform_0, window_bounds = array<i64: 1, 8, 128>}, {pipeline_mode = #tpu.pipeline_mode<synchronous>, transform_indices = @transform_1, window_bounds = array<i64: 8, 8>}, {pipeline_mode = #tpu.pipeline_mode<synchronous>, transform_indices = @transform_2, window_bounds = array<i64: 8, 1>}, {pipeline_mode = #tpu.pipeline_mode<synchronous>, transform_indices = @transform_3, window_bounds = array<i64: 2, 16, 8>}, {pipeline_mode = #tpu.pipeline_mode<synchronous>, transform_indices = @transform_4, window_bounds = array<i64: 2, 16, 1>}, {pipeline_mode = #tpu.pipeline_mode<synchronous>, transform_indices = @transform_5, window_bounds = array<i64: 2, 1, 1>}, {pipeline_mode = #tpu.pipeline_mode<synchronous>, transform_indices = @transform_6, window_bounds = array<i64: 2, 16, 1>}, {pipeline_mode = #tpu.pipeline_mode<synchronous>, transform_indices = @transform_7, window_bounds = array<i64: 2, 16, 1>}, {pipeline_mode = #tpu.pipeline_mode<synchronous>, transform_indices = @transform_8, window_bounds = array<i64: 2, 16, 3>}, {pipeline_mode = #tpu.pipeline_mode<synchronous>, transform_indices = @transform_9, window_bounds = array<i64: 2, 16, 1>}, {pipeline_mode = #tpu.pipeline_mode<synchronous>, transform_indices = @transform_10, window_bounds = array<i64: 2, 1, 1>}, {pipeline_mode = #tpu.pipeline_mode<synchronous>, transform_indices = @transform_11, window_bounds = array<i64: 2, 16, 1>}, {pipeline_mode = #tpu.pipeline_mode<synchronous>, transform_indices = @transform_12, window_bounds = array<i64: 2, 16, 1>}, {pipeline_mode = #tpu.pipeline_mode<synchronous>, transform_indices = @transform_13, window_bounds = array<i64: 2, 8, 16>}, {pipeline_mode = #tpu.pipeline_mode<synchronous>, transform_indices = @transform_14, window_bounds = array<i64: 2, 8, 1>}, {pipeline_mode = #tpu.pipeline_mode<synchronous>, transform_indices = @transform_15, window_bounds = array<i64: 32, 8>}, {pipeline_mode = #tpu.pipeline_mode<synchronous>, transform_indices = @transform_16, window_bounds = array<i64: 32, 1>}, {transform_indices = @transform_17, window_bounds = array<i64: 1, 2, 16, 128>}]} {
    %c0 = arith.constant 0 : index
    %c0_0 = arith.constant 0 : index
    %c0_1 = arith.constant 0 : index
    %0 = vector.load %arg1[%c0, %c0_0, %c0_1] : memref<1x8x128xf32, #tpu.memory_space<vmem>>, vector<1x8x128xf32>
    %1 = vector.shape_cast %0 : vector<1x8x128xf32> to vector<8x128xf32>
    %2 = tpu.iota {dimensions = array<i32: 1>} : vector<1x128xi32>
    %c16_i32 = arith.constant 16 : i32
    %3 = vector.broadcast %c16_i32 : i32 to vector<1x128xi32>
    %4 = arith.cmpi slt, %2, %3 : vector<1x128xi32>
    %5 = arith.extui %4 : vector<1x128xi1> to vector<1x128xi32>
    %6 = arith.sitofp %5 : vector<1x128xi32> to vector<1x128xf32>
    %c0_2 = arith.constant 0 : index
    %c0_3 = arith.constant 0 : index
    %7 = vector.load %arg2[%c0_2, %c0_3] : memref<8x8xbf16, #tpu.memory_space<vmem>>, vector<8x8xbf16>
    %8 = arith.truncf %1 : vector<8x128xf32> to vector<8x128xbf16>
    %cst = arith.constant dense<0.000000e+00> : vector<8x128xf32>
    %9 = tpu.matmul %7, %8, %cst {dimension_numbers = #tpu.dot_dimension_numbers<[1], [0], [0], [1], [0, 0, 1, 1], [], []>} : vector<8x8xbf16>, vector<8x128xbf16>, vector<8x128xf32> -> vector<8x128xf32>
    %c0_4 = arith.constant 0 : index
    %c0_5 = arith.constant 0 : index
    %10 = vector.load %arg3[%c0_4, %c0_5] : memref<8x1xf32, #tpu.memory_space<vmem>>, vector<8x1xf32>
    %11 = vector.broadcast %10 : vector<8x1xf32> to vector<8x128xf32>
    %12 = arith.addf %9, %11 : vector<8x128xf32>
    %13 = vector.broadcast %6 : vector<1x128xf32> to vector<8x128xf32>
    %14 = arith.mulf %12, %13 : vector<8x128xf32>
    %c0_i32 = arith.constant 0 : i32
    %c2_i32 = arith.constant 2 : i32
    %15 = arith.muli %c0_i32, %c2_i32 : i32
    %c0_i32_6 = arith.constant 0 : i32
    %16 = arith.addi %15, %c0_i32_6 : i32
    %17 = arith.index_cast %16 : i32 to index
    %c0_7 = arith.constant 0 : index
    %c0_8 = arith.constant 0 : index
    %18 = vector.load %arg4[%17, %c0_7, %c0_8] : memref<2x16x8xbf16, #tpu.memory_space<vmem>>, vector<1x16x8xbf16>
    %19 = vector.shape_cast %18 : vector<1x16x8xbf16> to vector<16x8xbf16>
    %20 = arith.truncf %14 : vector<8x128xf32> to vector<8x128xbf16>
    %cst_9 = arith.constant dense<0.000000e+00> : vector<16x128xf32>
    %21 = tpu.matmul %19, %20, %cst_9 {dimension_numbers = #tpu.dot_dimension_numbers<[1], [0], [0], [1], [0, 0, 1, 1], [], []>} : vector<16x8xbf16>, vector<8x128xbf16>, vector<16x128xf32> -> vector<16x128xf32>
    %22 = arith.index_cast %16 : i32 to index
    %c0_10 = arith.constant 0 : index
    %c0_11 = arith.constant 0 : index
    %23 = vector.load %arg5[%22, %c0_10, %c0_11] : memref<2x16x1xf32, #tpu.memory_space<vmem>>, vector<1x16x1xf32>
    %24 = vector.shape_cast %23 : vector<1x16x1xf32> to vector<16x1xf32>
    %25 = vector.broadcast %24 : vector<16x1xf32> to vector<16x128xf32>
    %26 = arith.addf %21, %25 : vector<16x128xf32>
    %27 = arith.index_cast %16 : i32 to index
    %c0_12 = arith.constant 0 : index
    %c0_13 = arith.constant 0 : index
    %28 = vector.load %arg6[%27, %c0_12, %c0_13] : memref<2x1x1xf32, #tpu.memory_space<vmem>>, vector<1x1x1xf32>
    %29 = vector.shape_cast %28 : vector<1x1x1xf32> to vector<1x1xf32>
    %cst_14 = arith.constant 0.000000e+00 : f32
    %30 = vector.broadcast %cst_14 : f32 to vector<16x128xf32>
    %31 = arith.cmpf ogt, %26, %30 : vector<16x128xf32>
    %32 = vector.broadcast %29 : vector<1x1xf32> to vector<16x128xf32>
    %33 = arith.mulf %32, %26 : vector<16x128xf32>
    %34 = arith.select %31, %26, %33 : vector<16x128xi1>, vector<16x128xf32>
    %35 = arith.index_cast %16 : i32 to index
    %c0_15 = arith.constant 0 : index
    %c0_16 = arith.constant 0 : index
    %36 = vector.load %arg7[%35, %c0_15, %c0_16] : memref<2x16x1xf32, #tpu.memory_space<vmem>>, vector<1x16x1xf32>
    %37 = vector.shape_cast %36 : vector<1x16x1xf32> to vector<16x1xf32>
    %38 = arith.index_cast %16 : i32 to index
    %c0_17 = arith.constant 0 : index
    %c0_18 = arith.constant 0 : index
    %39 = vector.load %arg8[%38, %c0_17, %c0_18] : memref<2x16x1xf32, #tpu.memory_space<vmem>>, vector<1x16x1xf32>
    %40 = vector.shape_cast %39 : vector<1x16x1xf32> to vector<16x1xf32>
    %41 = vector.broadcast %6 : vector<1x128xf32> to vector<16x128xf32>
    %42 = arith.mulf %34, %41 : vector<16x128xf32>
    %43 = vector.shape_cast %42 : vector<16x128xf32> to vector<1x16x128xf32>
    %cst_19 = arith.constant dense<0.000000e+00> : vector<1xf32>
    %44 = vector.multi_reduction <add>, %43, %cst_19 [1, 2] : vector<1x16x128xf32> to vector<1xf32>
    %45 = vector.shape_cast %44 : vector<1xf32> to vector<1x1x1xf32>
    %46 = vector.extract %45[0, 0, 0] : f32 from vector<1x1x1xf32>
    %47 = arith.mulf %42, %42 : vector<16x128xf32>
    %48 = vector.shape_cast %47 : vector<16x128xf32> to vector<1x16x128xf32>
    %cst_20 = arith.constant dense<0.000000e+00> : vector<1xf32>
    %49 = vector.multi_reduction <add>, %48, %cst_20 [1, 2] : vector<1x16x128xf32> to vector<1xf32>
    %50 = vector.shape_cast %49 : vector<1xf32> to vector<1x1x1xf32>
    %51 = vector.extract %50[0, 0, 0] : f32 from vector<1x1x1xf32>
    %cst_21 = arith.constant 3.906250e-03 : f32
    %52 = arith.mulf %46, %cst_21 : f32
    %cst_22 = arith.constant 3.906250e-03 : f32
    %53 = arith.mulf %51, %cst_22 : f32
    %54 = arith.mulf %52, %52 : f32
    %55 = arith.subf %53, %54 : f32
    %56 = vector.broadcast %52 : f32 to vector<16x128xf32>
    %57 = arith.subf %34, %56 : vector<16x128xf32>
    %58 = vector.broadcast %37 : vector<16x1xf32> to vector<16x128xf32>
    %59 = arith.mulf %58, %57 : vector<16x128xf32>
    %cst_23 = arith.constant 1.000000e-07 : f32
    %60 = arith.addf %55, %cst_23 : f32
    %61 = math.rsqrt %60 : f32
    %62 = vector.broadcast %61 : f32 to vector<16x128xf32>
    %63 = arith.mulf %59, %62 : vector<16x128xf32>
    %64 = vector.broadcast %40 : vector<16x1xf32> to vector<16x128xf32>
    %65 = arith.addf %63, %64 : vector<16x128xf32>
    %66 = vector.broadcast %6 : vector<1x128xf32> to vector<16x128xf32>
    %67 = arith.mulf %65, %66 : vector<16x128xf32>
    %68 = arith.index_cast %16 : i32 to index
    %c0_24 = arith.constant 0 : index
    %c0_25 = arith.constant 0 : index
    %69 = vector.load %arg9[%68, %c0_24, %c0_25] : memref<2x16x3xf32, #tpu.memory_space<vmem>>, vector<1x16x3xf32>
    %70 = vector.shape_cast %69 : vector<1x16x3xf32> to vector<16x3xf32>
    %c1_i32 = arith.constant 1 : i32
    %71 = tpu.dynamic_rotate %67 by %c1_i32 dim 1 : vector<16x128xf32>, i32 -> vector<16x128xf32>
    %72 = vector.extract_strided_slice %70 {offsets = [0, 0], sizes = [16, 1], strides = [1, 1]} : vector<16x3xf32> to vector<16x1xf32>
    %73 = vector.broadcast %72 : vector<16x1xf32> to vector<16x128xf32>
    %74 = arith.mulf %73, %71 : vector<16x128xf32>
    %75 = vector.extract_strided_slice %70 {offsets = [0, 1], sizes = [16, 1], strides = [1, 1]} : vector<16x3xf32> to vector<16x1xf32>
    %76 = vector.broadcast %75 : vector<16x1xf32> to vector<16x128xf32>
    %77 = arith.mulf %76, %67 : vector<16x128xf32>
    %78 = arith.addf %74, %77 : vector<16x128xf32>
    %c127_i32 = arith.constant 127 : i32
    %79 = tpu.dynamic_rotate %67 by %c127_i32 dim 1 : vector<16x128xf32>, i32 -> vector<16x128xf32>
    %80 = vector.extract_strided_slice %70 {offsets = [0, 2], sizes = [16, 1], strides = [1, 1]} : vector<16x3xf32> to vector<16x1xf32>
    %81 = vector.broadcast %80 : vector<16x1xf32> to vector<16x128xf32>
    %82 = arith.mulf %81, %79 : vector<16x128xf32>
    %83 = arith.addf %78, %82 : vector<16x128xf32>
    %84 = arith.index_cast %16 : i32 to index
    %c0_26 = arith.constant 0 : index
    %c0_27 = arith.constant 0 : index
    %85 = vector.load %arg10[%84, %c0_26, %c0_27] : memref<2x16x1xf32, #tpu.memory_space<vmem>>, vector<1x16x1xf32>
    %86 = vector.shape_cast %85 : vector<1x16x1xf32> to vector<16x1xf32>
    %87 = vector.broadcast %86 : vector<16x1xf32> to vector<16x128xf32>
    %88 = arith.addf %83, %87 : vector<16x128xf32>
    %89 = arith.index_cast %16 : i32 to index
    %c0_28 = arith.constant 0 : index
    %c0_29 = arith.constant 0 : index
    %90 = vector.load %arg11[%89, %c0_28, %c0_29] : memref<2x1x1xf32, #tpu.memory_space<vmem>>, vector<1x1x1xf32>
    %91 = vector.shape_cast %90 : vector<1x1x1xf32> to vector<1x1xf32>
    %cst_30 = arith.constant 0.000000e+00 : f32
    %92 = vector.broadcast %cst_30 : f32 to vector<16x128xf32>
    %93 = arith.cmpf ogt, %88, %92 : vector<16x128xf32>
    %94 = vector.broadcast %91 : vector<1x1xf32> to vector<16x128xf32>
    %95 = arith.mulf %94, %88 : vector<16x128xf32>
    %96 = arith.select %93, %88, %95 : vector<16x128xi1>, vector<16x128xf32>
    %97 = arith.index_cast %16 : i32 to index
    %c0_31 = arith.constant 0 : index
    %c0_32 = arith.constant 0 : index
    %98 = vector.load %arg12[%97, %c0_31, %c0_32] : memref<2x16x1xf32, #tpu.memory_space<vmem>>, vector<1x16x1xf32>
    %99 = vector.shape_cast %98 : vector<1x16x1xf32> to vector<16x1xf32>
    %100 = arith.index_cast %16 : i32 to index
    %c0_33 = arith.constant 0 : index
    %c0_34 = arith.constant 0 : index
    %101 = vector.load %arg13[%100, %c0_33, %c0_34] : memref<2x16x1xf32, #tpu.memory_space<vmem>>, vector<1x16x1xf32>
    %102 = vector.shape_cast %101 : vector<1x16x1xf32> to vector<16x1xf32>
    %103 = vector.broadcast %6 : vector<1x128xf32> to vector<16x128xf32>
    %104 = arith.mulf %96, %103 : vector<16x128xf32>
    %105 = vector.shape_cast %104 : vector<16x128xf32> to vector<1x16x128xf32>
    %cst_35 = arith.constant dense<0.000000e+00> : vector<1xf32>
    %106 = vector.multi_reduction <add>, %105, %cst_35 [1, 2] : vector<1x16x128xf32> to vector<1xf32>
    %107 = vector.shape_cast %106 : vector<1xf32> to vector<1x1x1xf32>
    %108 = vector.extract %107[0, 0, 0] : f32 from vector<1x1x1xf32>
    %109 = arith.mulf %104, %104 : vector<16x128xf32>
    %110 = vector.shape_cast %109 : vector<16x128xf32> to vector<1x16x128xf32>
    %cst_36 = arith.constant dense<0.000000e+00> : vector<1xf32>
    %111 = vector.multi_reduction <add>, %110, %cst_36 [1, 2] : vector<1x16x128xf32> to vector<1xf32>
    %112 = vector.shape_cast %111 : vector<1xf32> to vector<1x1x1xf32>
    %113 = vector.extract %112[0, 0, 0] : f32 from vector<1x1x1xf32>
    %cst_37 = arith.constant 3.906250e-03 : f32
    %114 = arith.mulf %108, %cst_37 : f32
    %cst_38 = arith.constant 3.906250e-03 : f32
    %115 = arith.mulf %113, %cst_38 : f32
    %116 = arith.mulf %114, %114 : f32
    %117 = arith.subf %115, %116 : f32
    %118 = vector.broadcast %114 : f32 to vector<16x128xf32>
    %119 = arith.subf %96, %118 : vector<16x128xf32>
    %120 = vector.broadcast %99 : vector<16x1xf32> to vector<16x128xf32>
    %121 = arith.mulf %120, %119 : vector<16x128xf32>
    %cst_39 = arith.constant 1.000000e-07 : f32
    %122 = arith.addf %117, %cst_39 : f32
    %123 = math.rsqrt %122 : f32
    %124 = vector.broadcast %123 : f32 to vector<16x128xf32>
    %125 = arith.mulf %121, %124 : vector<16x128xf32>
    %126 = vector.broadcast %102 : vector<16x1xf32> to vector<16x128xf32>
    %127 = arith.addf %125, %126 : vector<16x128xf32>
    %128 = arith.index_cast %16 : i32 to index
    %c0_40 = arith.constant 0 : index
    %c0_41 = arith.constant 0 : index
    %129 = vector.load %arg14[%128, %c0_40, %c0_41] : memref<2x8x16xbf16, #tpu.memory_space<vmem>>, vector<1x8x16xbf16>
    %130 = vector.shape_cast %129 : vector<1x8x16xbf16> to vector<8x16xbf16>
    %131 = arith.truncf %127 : vector<16x128xf32> to vector<16x128xbf16>
    %cst_42 = arith.constant dense<0.000000e+00> : vector<8x128xf32>
    %132 = tpu.matmul %130, %131, %cst_42 {dimension_numbers = #tpu.dot_dimension_numbers<[1], [0], [0], [1], [0, 0, 1, 1], [], []>} : vector<8x16xbf16>, vector<16x128xbf16>, vector<8x128xf32> -> vector<8x128xf32>
    %133 = arith.index_cast %16 : i32 to index
    %c0_43 = arith.constant 0 : index
    %c0_44 = arith.constant 0 : index
    %134 = vector.load %arg15[%133, %c0_43, %c0_44] : memref<2x8x1xf32, #tpu.memory_space<vmem>>, vector<1x8x1xf32>
    %135 = vector.shape_cast %134 : vector<1x8x1xf32> to vector<8x1xf32>
    %136 = vector.broadcast %135 : vector<8x1xf32> to vector<8x128xf32>
    %137 = arith.addf %132, %136 : vector<8x128xf32>
    %138 = arith.addf %14, %137 : vector<8x128xf32>
    %139 = vector.broadcast %6 : vector<1x128xf32> to vector<8x128xf32>
    %140 = arith.mulf %138, %139 : vector<8x128xf32>
    %c2_i32_45 = arith.constant 2 : i32
    %141 = arith.muli %c0_i32, %c2_i32_45 : i32
    %c1_i32_46 = arith.constant 1 : i32
    %142 = arith.addi %141, %c1_i32_46 : i32
    %143 = arith.index_cast %142 : i32 to index
    %c0_47 = arith.constant 0 : index
    %c0_48 = arith.constant 0 : index
    %144 = vector.load %arg4[%143, %c0_47, %c0_48] : memref<2x16x8xbf16, #tpu.memory_space<vmem>>, vector<1x16x8xbf16>
    %145 = vector.shape_cast %144 : vector<1x16x8xbf16> to vector<16x8xbf16>
    %146 = arith.truncf %140 : vector<8x128xf32> to vector<8x128xbf16>
    %cst_49 = arith.constant dense<0.000000e+00> : vector<16x128xf32>
    %147 = tpu.matmul %145, %146, %cst_49 {dimension_numbers = #tpu.dot_dimension_numbers<[1], [0], [0], [1], [0, 0, 1, 1], [], []>} : vector<16x8xbf16>, vector<8x128xbf16>, vector<16x128xf32> -> vector<16x128xf32>
    %148 = arith.index_cast %142 : i32 to index
    %c0_50 = arith.constant 0 : index
    %c0_51 = arith.constant 0 : index
    %149 = vector.load %arg5[%148, %c0_50, %c0_51] : memref<2x16x1xf32, #tpu.memory_space<vmem>>, vector<1x16x1xf32>
    %150 = vector.shape_cast %149 : vector<1x16x1xf32> to vector<16x1xf32>
    %151 = vector.broadcast %150 : vector<16x1xf32> to vector<16x128xf32>
    %152 = arith.addf %147, %151 : vector<16x128xf32>
    %153 = arith.index_cast %142 : i32 to index
    %c0_52 = arith.constant 0 : index
    %c0_53 = arith.constant 0 : index
    %154 = vector.load %arg6[%153, %c0_52, %c0_53] : memref<2x1x1xf32, #tpu.memory_space<vmem>>, vector<1x1x1xf32>
    %155 = vector.shape_cast %154 : vector<1x1x1xf32> to vector<1x1xf32>
    %cst_54 = arith.constant 0.000000e+00 : f32
    %156 = vector.broadcast %cst_54 : f32 to vector<16x128xf32>
    %157 = arith.cmpf ogt, %152, %156 : vector<16x128xf32>
    %158 = vector.broadcast %155 : vector<1x1xf32> to vector<16x128xf32>
    %159 = arith.mulf %158, %152 : vector<16x128xf32>
    %160 = arith.select %157, %152, %159 : vector<16x128xi1>, vector<16x128xf32>
    %161 = arith.index_cast %142 : i32 to index
    %c0_55 = arith.constant 0 : index
    %c0_56 = arith.constant 0 : index
    %162 = vector.load %arg7[%161, %c0_55, %c0_56] : memref<2x16x1xf32, #tpu.memory_space<vmem>>, vector<1x16x1xf32>
    %163 = vector.shape_cast %162 : vector<1x16x1xf32> to vector<16x1xf32>
    %164 = arith.index_cast %142 : i32 to index
    %c0_57 = arith.constant 0 : index
    %c0_58 = arith.constant 0 : index
    %165 = vector.load %arg8[%164, %c0_57, %c0_58] : memref<2x16x1xf32, #tpu.memory_space<vmem>>, vector<1x16x1xf32>
    %166 = vector.shape_cast %165 : vector<1x16x1xf32> to vector<16x1xf32>
    %167 = vector.broadcast %6 : vector<1x128xf32> to vector<16x128xf32>
    %168 = arith.mulf %160, %167 : vector<16x128xf32>
    %169 = vector.shape_cast %168 : vector<16x128xf32> to vector<1x16x128xf32>
    %cst_59 = arith.constant dense<0.000000e+00> : vector<1xf32>
    %170 = vector.multi_reduction <add>, %169, %cst_59 [1, 2] : vector<1x16x128xf32> to vector<1xf32>
    %171 = vector.shape_cast %170 : vector<1xf32> to vector<1x1x1xf32>
    %172 = vector.extract %171[0, 0, 0] : f32 from vector<1x1x1xf32>
    %173 = arith.mulf %168, %168 : vector<16x128xf32>
    %174 = vector.shape_cast %173 : vector<16x128xf32> to vector<1x16x128xf32>
    %cst_60 = arith.constant dense<0.000000e+00> : vector<1xf32>
    %175 = vector.multi_reduction <add>, %174, %cst_60 [1, 2] : vector<1x16x128xf32> to vector<1xf32>
    %176 = vector.shape_cast %175 : vector<1xf32> to vector<1x1x1xf32>
    %177 = vector.extract %176[0, 0, 0] : f32 from vector<1x1x1xf32>
    %cst_61 = arith.constant 3.906250e-03 : f32
    %178 = arith.mulf %172, %cst_61 : f32
    %cst_62 = arith.constant 3.906250e-03 : f32
    %179 = arith.mulf %177, %cst_62 : f32
    %180 = arith.mulf %178, %178 : f32
    %181 = arith.subf %179, %180 : f32
    %182 = vector.broadcast %178 : f32 to vector<16x128xf32>
    %183 = arith.subf %160, %182 : vector<16x128xf32>
    %184 = vector.broadcast %163 : vector<16x1xf32> to vector<16x128xf32>
    %185 = arith.mulf %184, %183 : vector<16x128xf32>
    %cst_63 = arith.constant 1.000000e-07 : f32
    %186 = arith.addf %181, %cst_63 : f32
    %187 = math.rsqrt %186 : f32
    %188 = vector.broadcast %187 : f32 to vector<16x128xf32>
    %189 = arith.mulf %185, %188 : vector<16x128xf32>
    %190 = vector.broadcast %166 : vector<16x1xf32> to vector<16x128xf32>
    %191 = arith.addf %189, %190 : vector<16x128xf32>
    %192 = vector.broadcast %6 : vector<1x128xf32> to vector<16x128xf32>
    %193 = arith.mulf %191, %192 : vector<16x128xf32>
    %194 = arith.index_cast %142 : i32 to index
    %c0_64 = arith.constant 0 : index
    %c0_65 = arith.constant 0 : index
    %195 = vector.load %arg9[%194, %c0_64, %c0_65] : memref<2x16x3xf32, #tpu.memory_space<vmem>>, vector<1x16x3xf32>
    %196 = vector.shape_cast %195 : vector<1x16x3xf32> to vector<16x3xf32>
    %c2_i32_66 = arith.constant 2 : i32
    %197 = tpu.dynamic_rotate %193 by %c2_i32_66 dim 1 : vector<16x128xf32>, i32 -> vector<16x128xf32>
    %198 = vector.extract_strided_slice %196 {offsets = [0, 0], sizes = [16, 1], strides = [1, 1]} : vector<16x3xf32> to vector<16x1xf32>
    %199 = vector.broadcast %198 : vector<16x1xf32> to vector<16x128xf32>
    %200 = arith.mulf %199, %197 : vector<16x128xf32>
    %201 = vector.extract_strided_slice %196 {offsets = [0, 1], sizes = [16, 1], strides = [1, 1]} : vector<16x3xf32> to vector<16x1xf32>
    %202 = vector.broadcast %201 : vector<16x1xf32> to vector<16x128xf32>
    %203 = arith.mulf %202, %193 : vector<16x128xf32>
    %204 = arith.addf %200, %203 : vector<16x128xf32>
    %c126_i32 = arith.constant 126 : i32
    %205 = tpu.dynamic_rotate %193 by %c126_i32 dim 1 : vector<16x128xf32>, i32 -> vector<16x128xf32>
    %206 = vector.extract_strided_slice %196 {offsets = [0, 2], sizes = [16, 1], strides = [1, 1]} : vector<16x3xf32> to vector<16x1xf32>
    %207 = vector.broadcast %206 : vector<16x1xf32> to vector<16x128xf32>
    %208 = arith.mulf %207, %205 : vector<16x128xf32>
    %209 = arith.addf %204, %208 : vector<16x128xf32>
    %210 = arith.index_cast %142 : i32 to index
    %c0_67 = arith.constant 0 : index
    %c0_68 = arith.constant 0 : index
    %211 = vector.load %arg10[%210, %c0_67, %c0_68] : memref<2x16x1xf32, #tpu.memory_space<vmem>>, vector<1x16x1xf32>
    %212 = vector.shape_cast %211 : vector<1x16x1xf32> to vector<16x1xf32>
    %213 = vector.broadcast %212 : vector<16x1xf32> to vector<16x128xf32>
    %214 = arith.addf %209, %213 : vector<16x128xf32>
    %215 = arith.index_cast %142 : i32 to index
    %c0_69 = arith.constant 0 : index
    %c0_70 = arith.constant 0 : index
    %216 = vector.load %arg11[%215, %c0_69, %c0_70] : memref<2x1x1xf32, #tpu.memory_space<vmem>>, vector<1x1x1xf32>
    %217 = vector.shape_cast %216 : vector<1x1x1xf32> to vector<1x1xf32>
    %cst_71 = arith.constant 0.000000e+00 : f32
    %218 = vector.broadcast %cst_71 : f32 to vector<16x128xf32>
    %219 = arith.cmpf ogt, %214, %218 : vector<16x128xf32>
    %220 = vector.broadcast %217 : vector<1x1xf32> to vector<16x128xf32>
    %221 = arith.mulf %220, %214 : vector<16x128xf32>
    %222 = arith.select %219, %214, %221 : vector<16x128xi1>, vector<16x128xf32>
    %223 = arith.index_cast %142 : i32 to index
    %c0_72 = arith.constant 0 : index
    %c0_73 = arith.constant 0 : index
    %224 = vector.load %arg12[%223, %c0_72, %c0_73] : memref<2x16x1xf32, #tpu.memory_space<vmem>>, vector<1x16x1xf32>
    %225 = vector.shape_cast %224 : vector<1x16x1xf32> to vector<16x1xf32>
    %226 = arith.index_cast %142 : i32 to index
    %c0_74 = arith.constant 0 : index
    %c0_75 = arith.constant 0 : index
    %227 = vector.load %arg13[%226, %c0_74, %c0_75] : memref<2x16x1xf32, #tpu.memory_space<vmem>>, vector<1x16x1xf32>
    %228 = vector.shape_cast %227 : vector<1x16x1xf32> to vector<16x1xf32>
    %229 = vector.broadcast %6 : vector<1x128xf32> to vector<16x128xf32>
    %230 = arith.mulf %222, %229 : vector<16x128xf32>
    %231 = vector.shape_cast %230 : vector<16x128xf32> to vector<1x16x128xf32>
    %cst_76 = arith.constant dense<0.000000e+00> : vector<1xf32>
    %232 = vector.multi_reduction <add>, %231, %cst_76 [1, 2] : vector<1x16x128xf32> to vector<1xf32>
    %233 = vector.shape_cast %232 : vector<1xf32> to vector<1x1x1xf32>
    %234 = vector.extract %233[0, 0, 0] : f32 from vector<1x1x1xf32>
    %235 = arith.mulf %230, %230 : vector<16x128xf32>
    %236 = vector.shape_cast %235 : vector<16x128xf32> to vector<1x16x128xf32>
    %cst_77 = arith.constant dense<0.000000e+00> : vector<1xf32>
    %237 = vector.multi_reduction <add>, %236, %cst_77 [1, 2] : vector<1x16x128xf32> to vector<1xf32>
    %238 = vector.shape_cast %237 : vector<1xf32> to vector<1x1x1xf32>
    %239 = vector.extract %238[0, 0, 0] : f32 from vector<1x1x1xf32>
    %cst_78 = arith.constant 3.906250e-03 : f32
    %240 = arith.mulf %234, %cst_78 : f32
    %cst_79 = arith.constant 3.906250e-03 : f32
    %241 = arith.mulf %239, %cst_79 : f32
    %242 = arith.mulf %240, %240 : f32
    %243 = arith.subf %241, %242 : f32
    %244 = vector.broadcast %240 : f32 to vector<16x128xf32>
    %245 = arith.subf %222, %244 : vector<16x128xf32>
    %246 = vector.broadcast %225 : vector<16x1xf32> to vector<16x128xf32>
    %247 = arith.mulf %246, %245 : vector<16x128xf32>
    %cst_80 = arith.constant 1.000000e-07 : f32
    %248 = arith.addf %243, %cst_80 : f32
    %249 = math.rsqrt %248 : f32
    %250 = vector.broadcast %249 : f32 to vector<16x128xf32>
    %251 = arith.mulf %247, %250 : vector<16x128xf32>
    %252 = vector.broadcast %228 : vector<16x1xf32> to vector<16x128xf32>
    %253 = arith.addf %251, %252 : vector<16x128xf32>
    %254 = arith.index_cast %142 : i32 to index
    %c0_81 = arith.constant 0 : index
    %c0_82 = arith.constant 0 : index
    %255 = vector.load %arg14[%254, %c0_81, %c0_82] : memref<2x8x16xbf16, #tpu.memory_space<vmem>>, vector<1x8x16xbf16>
    %256 = vector.shape_cast %255 : vector<1x8x16xbf16> to vector<8x16xbf16>
    %257 = arith.truncf %253 : vector<16x128xf32> to vector<16x128xbf16>
    %cst_83 = arith.constant dense<0.000000e+00> : vector<8x128xf32>
    %258 = tpu.matmul %256, %257, %cst_83 {dimension_numbers = #tpu.dot_dimension_numbers<[1], [0], [0], [1], [0, 0, 1, 1], [], []>} : vector<8x16xbf16>, vector<16x128xbf16>, vector<8x128xf32> -> vector<8x128xf32>
    %259 = arith.index_cast %142 : i32 to index
    %c0_84 = arith.constant 0 : index
    %c0_85 = arith.constant 0 : index
    %260 = vector.load %arg15[%259, %c0_84, %c0_85] : memref<2x8x1xf32, #tpu.memory_space<vmem>>, vector<1x8x1xf32>
    %261 = vector.shape_cast %260 : vector<1x8x1xf32> to vector<8x1xf32>
    %262 = vector.broadcast %261 : vector<8x1xf32> to vector<8x128xf32>
    %263 = arith.addf %258, %262 : vector<8x128xf32>
    %264 = arith.addf %140, %263 : vector<8x128xf32>
    %265 = vector.broadcast %6 : vector<1x128xf32> to vector<8x128xf32>
    %266 = arith.mulf %264, %265 : vector<8x128xf32>
    %c1_i32_86 = arith.constant 1 : i32
    %c0_87 = arith.constant 0 : index
    %c0_88 = arith.constant 0 : index
    %267 = vector.load %arg16[%c0_87, %c0_88] : memref<32x8xbf16, #tpu.memory_space<vmem>>, vector<32x8xbf16>
    %268 = arith.truncf %266 : vector<8x128xf32> to vector<8x128xbf16>
    %cst_89 = arith.constant dense<0.000000e+00> : vector<32x128xf32>
    %269 = tpu.matmul %267, %268, %cst_89 {dimension_numbers = #tpu.dot_dimension_numbers<[1], [0], [0], [1], [0, 0, 1, 1], [], []>} : vector<32x8xbf16>, vector<8x128xbf16>, vector<32x128xf32> -> vector<32x128xf32>
    %c0_90 = arith.constant 0 : index
    %c0_91 = arith.constant 0 : index
    %270 = vector.load %arg17[%c0_90, %c0_91] : memref<32x1xf32, #tpu.memory_space<vmem>>, vector<32x1xf32>
    %271 = vector.broadcast %270 : vector<32x1xf32> to vector<32x128xf32>
    %272 = arith.addf %269, %271 : vector<32x128xf32>
    %cst_92 = arith.constant 0.000000e+00 : f32
    %273 = vector.broadcast %cst_92 : f32 to vector<32x128xf32>
    %274 = arith.maximumf %272, %273 : vector<32x128xf32>
    %275 = vector.extract_strided_slice %274 {offsets = [0, 0], sizes = [16, 128], strides = [1, 1]} : vector<32x128xf32> to vector<16x128xf32>
    %276 = vector.extract_strided_slice %274 {offsets = [16, 0], sizes = [16, 128], strides = [1, 1]} : vector<32x128xf32> to vector<16x128xf32>
    %277 = arith.maximumf %275, %276 : vector<16x128xf32>
    %278 = arith.subf %275, %277 : vector<16x128xf32>
    %279 = math.exp %278 : vector<16x128xf32>
    %280 = arith.subf %276, %277 : vector<16x128xf32>
    %281 = math.exp %280 : vector<16x128xf32>
    %282 = arith.addf %279, %281 : vector<16x128xf32>
    %283 = tpu.reciprocal %282 {approx = true} : vector<16x128xf32> -> vector<16x128xf32>
    %284 = arith.mulf %282, %283 : vector<16x128xf32>
    %cst_93 = arith.constant 2.000000e+00 : f32
    %285 = vector.broadcast %cst_93 : f32 to vector<16x128xf32>
    %286 = arith.subf %285, %284 : vector<16x128xf32>
    %287 = arith.mulf %283, %286 : vector<16x128xf32>
    %288 = arith.mulf %279, %287 : vector<16x128xf32>
    %c0_94 = arith.constant 0 : index
    %c0_95 = arith.constant 0 : index
    %c0_96 = arith.constant 0 : index
    %c0_97 = arith.constant 0 : index
    %289 = vector.load %arg18[%c0_94, %c0_95, %c0_96, %c0_97] : memref<1x2x16x128xf32, #tpu.memory_space<vmem>>, vector<1x1x16x128xf32>
    %290 = vector.shape_cast %289 : vector<1x1x16x128xf32> to vector<16x128xf32>
    %291 = vector.shape_cast %288 : vector<16x128xf32> to vector<1x1x16x128xf32>
    tpu.vector_store %arg18[%c0_94, %c0_95, %c0_96, %c0_97], %291 {strides = array<i32>} : memref<1x2x16x128xf32, #tpu.memory_space<vmem>>, vector<1x1x16x128xf32>,
    %292 = arith.mulf %281, %287 : vector<16x128xf32>
    %c0_98 = arith.constant 0 : index
    %c1 = arith.constant 1 : index
    %c0_99 = arith.constant 0 : index
    %c0_100 = arith.constant 0 : index
    %293 = vector.load %arg18[%c0_98, %c1, %c0_99, %c0_100] : memref<1x2x16x128xf32, #tpu.memory_space<vmem>>, vector<1x1x16x128xf32>
    %294 = vector.shape_cast %293 : vector<1x1x16x128xf32> to vector<16x128xf32>
    %295 = vector.shape_cast %292 : vector<16x128xf32> to vector<1x1x16x128xf32>
    tpu.vector_store %arg18[%c0_98, %c1, %c0_99, %c0_100], %295 {strides = array<i32>} : memref<1x2x16x128xf32, #tpu.memory_space<vmem>>, vector<1x1x16x128xf32>,
    return
  }
  func.func @transform_0(%arg0: i32) -> (i32, i32, i32) {
    %c0_i32 = arith.constant 0 : i32
    %c0_i32_0 = arith.constant 0 : i32
    %c0_i32_1 = arith.constant 0 : i32
    return %arg0, %c0_i32, %c0_i32_0 : i32, i32, i32
  }
  func.func @transform_1(%arg0: i32) -> (i32, i32) {
    %c0_i32 = arith.constant 0 : i32
    %c0_i32_0 = arith.constant 0 : i32
    %c0_i32_1 = arith.constant 0 : i32
    return %c0_i32, %c0_i32_0 : i32, i32
  }
  func.func @transform_2(%arg0: i32) -> (i32, i32) {
    %c0_i32 = arith.constant 0 : i32
    %c0_i32_0 = arith.constant 0 : i32
    %c0_i32_1 = arith.constant 0 : i32
    return %c0_i32, %c0_i32_0 : i32, i32
  }
  func.func @transform_3(%arg0: i32) -> (i32, i32, i32) {
    %c0_i32 = arith.constant 0 : i32
    %c0_i32_0 = arith.constant 0 : i32
    %c0_i32_1 = arith.constant 0 : i32
    %c0_i32_2 = arith.constant 0 : i32
    return %c0_i32, %c0_i32_0, %c0_i32_1 : i32, i32, i32
  }
  func.func @transform_4(%arg0: i32) -> (i32, i32, i32) {
    %c0_i32 = arith.constant 0 : i32
    %c0_i32_0 = arith.constant 0 : i32
    %c0_i32_1 = arith.constant 0 : i32
    %c0_i32_2 = arith.constant 0 : i32
    return %c0_i32, %c0_i32_0, %c0_i32_1 : i32, i32, i32
  }
  func.func @transform_5(%arg0: i32) -> (i32, i32, i32) {
    %c0_i32 = arith.constant 0 : i32
    %c0_i32_0 = arith.constant 0 : i32
    %c0_i32_1 = arith.constant 0 : i32
    %c0_i32_2 = arith.constant 0 : i32
    return %c0_i32, %c0_i32_0, %c0_i32_1 : i32, i32, i32
  }
  func.func @transform_6(%arg0: i32) -> (i32, i32, i32) {
    %c0_i32 = arith.constant 0 : i32
    %c0_i32_0 = arith.constant 0 : i32
    %c0_i32_1 = arith.constant 0 : i32
    %c0_i32_2 = arith.constant 0 : i32
    return %c0_i32, %c0_i32_0, %c0_i32_1 : i32, i32, i32
  }
  func.func @transform_7(%arg0: i32) -> (i32, i32, i32) {
    %c0_i32 = arith.constant 0 : i32
    %c0_i32_0 = arith.constant 0 : i32
    %c0_i32_1 = arith.constant 0 : i32
    %c0_i32_2 = arith.constant 0 : i32
    return %c0_i32, %c0_i32_0, %c0_i32_1 : i32, i32, i32
  }
  func.func @transform_8(%arg0: i32) -> (i32, i32, i32) {
    %c0_i32 = arith.constant 0 : i32
    %c0_i32_0 = arith.constant 0 : i32
    %c0_i32_1 = arith.constant 0 : i32
    %c0_i32_2 = arith.constant 0 : i32
    return %c0_i32, %c0_i32_0, %c0_i32_1 : i32, i32, i32
  }
  func.func @transform_9(%arg0: i32) -> (i32, i32, i32) {
    %c0_i32 = arith.constant 0 : i32
    %c0_i32_0 = arith.constant 0 : i32
    %c0_i32_1 = arith.constant 0 : i32
    %c0_i32_2 = arith.constant 0 : i32
    return %c0_i32, %c0_i32_0, %c0_i32_1 : i32, i32, i32
  }
  func.func @transform_10(%arg0: i32) -> (i32, i32, i32) {
    %c0_i32 = arith.constant 0 : i32
    %c0_i32_0 = arith.constant 0 : i32
    %c0_i32_1 = arith.constant 0 : i32
    %c0_i32_2 = arith.constant 0 : i32
    return %c0_i32, %c0_i32_0, %c0_i32_1 : i32, i32, i32
  }
  func.func @transform_11(%arg0: i32) -> (i32, i32, i32) {
    %c0_i32 = arith.constant 0 : i32
    %c0_i32_0 = arith.constant 0 : i32
    %c0_i32_1 = arith.constant 0 : i32
    %c0_i32_2 = arith.constant 0 : i32
    return %c0_i32, %c0_i32_0, %c0_i32_1 : i32, i32, i32
  }
  func.func @transform_12(%arg0: i32) -> (i32, i32, i32) {
    %c0_i32 = arith.constant 0 : i32
    %c0_i32_0 = arith.constant 0 : i32
    %c0_i32_1 = arith.constant 0 : i32
    %c0_i32_2 = arith.constant 0 : i32
    return %c0_i32, %c0_i32_0, %c0_i32_1 : i32, i32, i32
  }
  func.func @transform_13(%arg0: i32) -> (i32, i32, i32) {
    %c0_i32 = arith.constant 0 : i32
    %c0_i32_0 = arith.constant 0 : i32
    %c0_i32_1 = arith.constant 0 : i32
    %c0_i32_2 = arith.constant 0 : i32
    return %c0_i32, %c0_i32_0, %c0_i32_1 : i32, i32, i32
  }
  func.func @transform_14(%arg0: i32) -> (i32, i32, i32) {
    %c0_i32 = arith.constant 0 : i32
    %c0_i32_0 = arith.constant 0 : i32
    %c0_i32_1 = arith.constant 0 : i32
    %c0_i32_2 = arith.constant 0 : i32
    return %c0_i32, %c0_i32_0, %c0_i32_1 : i32, i32, i32
  }
  func.func @transform_15(%arg0: i32) -> (i32, i32) {
    %c0_i32 = arith.constant 0 : i32
    %c0_i32_0 = arith.constant 0 : i32
    %c0_i32_1 = arith.constant 0 : i32
    return %c0_i32, %c0_i32_0 : i32, i32
  }
  func.func @transform_16(%arg0: i32) -> (i32, i32) {
    %c0_i32 = arith.constant 0 : i32
    %c0_i32_0 = arith.constant 0 : i32
    %c0_i32_1 = arith.constant 0 : i32
    return %c0_i32, %c0_i32_0 : i32, i32
  }
  func.func @transform_17(%arg0: i32) -> (i32, i32, i32, i32) {
    %c0_i32 = arith.constant 0 : i32
    %c0_i32_0 = arith.constant 0 : i32
    %c0_i32_1 = arith.constant 0 : i32
    %c0_i32_2 = arith.constant 0 : i32
    return %arg0, %c0_i32, %c0_i32_0, %c0_i32_1 : i32, i32, i32, i32
  }
}

</mosaic_0001>

<llo_original>
// kernel: tpu_custom_call.1
$region0: #{tpu_custom_call.1}
  #allocation0 [shape = 'u32[]', space=smem, size = 0x4, offset = 0x4, fixed_abs, tag = 'smem constant byte address 0x4 - core index']
  #allocation1 [shape = 'u32[144,128]{1,0:T(1,128)}', space=vmem, size = 0x12000, scoped, tag = 'internal scratch']
  %s0 = inlined_call_operand.vmem [shape: f32[2,8,128], index: 0, kind: input, shape index: {}]
  %s1 = inlined_call_operand.vmem [shape: bf16[8,8], index: 1, kind: input, shape index: {}]
  %s2 = inlined_call_operand.vmem [shape: f32[8,1], index: 2, kind: input, shape index: {}]
  %s3 = inlined_call_operand.vmem [shape: bf16[2,16,8], index: 3, kind: input, shape index: {}]
  %s4 = inlined_call_operand.vmem [shape: f32[2,16,1], index: 4, kind: input, shape index: {}]
  %s5 = inlined_call_operand.vmem [shape: f32[2,1,1], index: 5, kind: input, shape index: {}]
  %s6 = inlined_call_operand.vmem [shape: f32[2,16,1], index: 6, kind: input, shape index: {}]
  %s7 = inlined_call_operand.vmem [shape: f32[2,16,1], index: 7, kind: input, shape index: {}]
  %s8 = inlined_call_operand.vmem [shape: f32[2,16,3], index: 8, kind: input, shape index: {}]
  %s9 = inlined_call_operand.vmem [shape: f32[2,16,1], index: 9, kind: input, shape index: {}]
  %s10 = inlined_call_operand.vmem [shape: f32[2,1,1], index: 10, kind: input, shape index: {}]
  %s11 = inlined_call_operand.vmem [shape: f32[2,16,1], index: 11, kind: input, shape index: {}]
  %s12 = inlined_call_operand.vmem [shape: f32[2,16,1], index: 12, kind: input, shape index: {}]
  %s13 = inlined_call_operand.vmem [shape: bf16[2,8,16], index: 13, kind: input, shape index: {}]
  %s14 = inlined_call_operand.vmem [shape: f32[2,8,1], index: 14, kind: input, shape index: {}]
  %s15 = inlined_call_operand.vmem [shape: bf16[32,8], index: 15, kind: input, shape index: {}]
  %s16 = inlined_call_operand.vmem [shape: f32[32,1], index: 16, kind: input, shape index: {}]
  %s17 = inlined_call_operand.hbm [shape: f32[2,2,16,128], index: 17, kind: output, shape index: {}]
  %s18 = sld [smem:[#allocation0]]
  $region101: #{tpu_custom_call.1} parent=0
    _
  %s20 = ssub.s32 1, %s18
  %s21 = scalar_select 0, %s20, %s18
  $region1: #{tpu_custom_call.1} parent=0
    #allocation2 [shape = 'u8[32768]{0}', space=vmem, size = 0x8000, scoped, tag = 'output window, operand 0']
    #allocation3 [shape = 's32[2]{0}', space=sflag, size = 0x8, scoped, tag = 'scoped memory for tpu_custom_call.1']
    %22 = vsyncpa [#allocation3], 0
    %s23 = scalar_lea.sflag [#allocation3], 1
    %24 = vsyncpa %s23, 0
    loop: start=0, step=1, limit=4
    $region2: #{tpu_custom_call.1} parent=1 // loop_pre_header
      _
    $region3: #{tpu_custom_call.1} parent=1 // loop_header
      %s26 = sphi 0, %s30
      %p27 = scmp.ge.s32.totalorder %s26, 4
      %s36 = sphi 0, %s38
      %s39 = sphi 0, %s36
      %s40 = sphi 0, %s39
      %s56 = sphi 0, %s40
      %s60 = sphi 0, %s60
      %s62 = sphi 0, %s60
      %s63 = sphi 0, %s62
      %s77 = sphi 0, %s63
      %s81 = sphi 0, %s81
      %s83 = sphi 0, %s81
      %s84 = sphi 0, %s83
      %s98 = sphi 0, %s84
      %s102 = sphi 0, %s102
      %s104 = sphi 0, %s102
      %s105 = sphi 0, %s104
      %s119 = sphi 0, %s105
      %s123 = sphi 0, %s123
      %s125 = sphi 0, %s123
      %s126 = sphi 0, %s125
      %s140 = sphi 0, %s126
      %s144 = sphi 0, %s144
      %s146 = sphi 0, %s144
      %s147 = sphi 0, %s146
      %s161 = sphi 0, %s147
      %s165 = sphi 0, %s165
      %s167 = sphi 0, %s165
      %s168 = sphi 0, %s167
      %s182 = sphi 0, %s168
      %s186 = sphi 0, %s186
      %s188 = sphi 0, %s186
      %s189 = sphi 0, %s188
      %s203 = sphi 0, %s189
      %s207 = sphi 0, %s207
      %s209 = sphi 0, %s207
      %s210 = sphi 0, %s209
      %s224 = sphi 0, %s210
      %s228 = sphi 0, %s228
      %s230 = sphi 0, %s228
      %s231 = sphi 0, %s230
      %s245 = sphi 0, %s231
      %s249 = sphi 0, %s249
      %s251 = sphi 0, %s249
      %s252 = sphi 0, %s251
      %s266 = sphi 0, %s252
      %s270 = sphi 0, %s270
      %s272 = sphi 0, %s270
      %s273 = sphi 0, %s272
      %s287 = sphi 0, %s273
      %s291 = sphi 0, %s291
      %s293 = sphi 0, %s291
      %s294 = sphi 0, %s293
      %s308 = sphi 0, %s294
      %s312 = sphi 0, %s312
      %s314 = sphi 0, %s312
      %s315 = sphi 0, %s314
      %s329 = sphi 0, %s315
      %s333 = sphi 0, %s333
      %s335 = sphi 0, %s333
      %s336 = sphi 0, %s335
      %s350 = sphi 0, %s336
      %s354 = sphi 0, %s354
      %s356 = sphi 0, %s354
      %s357 = sphi 0, %s356
      %s371 = sphi 0, %s357
      %s375 = sphi 0, %s375
      %s377 = sphi 0, %s375
      %s378 = sphi 0, %s377
      %s392 = sphi 0, %s378
      %s398 = sphi 0, %s400
      %s401 = sphi 0, %s398
      %s402 = sphi 0, %s401
      %s418 = sphi 0, %s402
    $region4: #{tpu_custom_call.1} parent=1 // loop_header_branch
      %29 = sbr.rel (%p27) target = $region8
    $region5: #{tpu_custom_call.1} parent=1 // loop_body
      %s31 = ssub.s32 %s26, 1
      %s32 = ssub.s32 %s26, 2
      %s33 = sadd.s32 %s26, 1
      %s34 = ssub.s32 %s26, %s33
      %p35 = scmp.eq.s32.totalorder %s34, 0
      %s37 = sadd.s32 %s36, 1
      %s38 = scalar_select %p35, %s36, %s37
      %p41 = pneg %p35
      %p42 = scmp.eq.s32.totalorder %s26, 1
      %p43 = por %p41, %p42
      %p44 = scmp.ne.s32.totalorder %s36, %s39
      %p45 = scmp.eq.s32.totalorder %s26, 0
      %p46 = por %p44, %p45
      %p47 = scmp.ne.s32.totalorder %s36, %s39
      %p48 = scmp.eq.s32.totalorder %s31, 1
      %p49 = por %p47, %p48
      %p50 = scmp.ne.s32.totalorder %s39, %s40
      %p51 = scmp.eq.s32.totalorder %s31, 0
      %p52 = por %p50, %p51
      %p53 = scmp.ne.s32.totalorder %s39, %s40
      %p54 = scmp.eq.s32.totalorder %s32, 1
      %p55 = por %p53, %p54
      %p57 = scmp.ne.s32.totalorder %s40, %s56
      %p58 = scmp.eq.s32.totalorder %s32, 0
      %p59 = por %p57, %p58
      %s61 = sadd.s32 %s60, 1
      %p64 = scmp.eq.s32.totalorder %s26, 1
      %p65 = scmp.ne.s32.totalorder %s60, %s62
      %p66 = scmp.eq.s32.totalorder %s26, 0
      %p67 = por %p65, %p66
      %p68 = scmp.ne.s32.totalorder %s60, %s62
      %p69 = scmp.eq.s32.totalorder %s31, 1
      %p70 = por %p68, %p69
      %p71 = scmp.ne.s32.totalorder %s62, %s63
      %p72 = scmp.eq.s32.totalorder %s31, 0
      %p73 = por %p71, %p72
      %p74 = scmp.ne.s32.totalorder %s62, %s63
      %p75 = scmp.eq.s32.totalorder %s32, 1
      %p76 = por %p74, %p75
      %p78 = scmp.ne.s32.totalorder %s63, %s77
      %p79 = scmp.eq.s32.totalorder %s32, 0
      %p80 = por %p78, %p79
      %s82 = sadd.s32 %s81, 1
      %p85 = scmp.eq.s32.totalorder %s26, 1
      %p86 = scmp.ne.s32.totalorder %s81, %s83
      %p87 = scmp.eq.s32.totalorder %s26, 0
      %p88 = por %p86, %p87
      %p89 = scmp.ne.s32.totalorder %s81, %s83
      %p90 = scmp.eq.s32.totalorder %s31, 1
      %p91 = por %p89, %p90
      %p92 = scmp.ne.s32.totalorder %s83, %s84
      %p93 = scmp.eq.s32.totalorder %s31, 0
      %p94 = por %p92, %p93
      %p95 = scmp.ne.s32.totalorder %s83, %s84
      %p96 = scmp.eq.s32.totalorder %s32, 1
      %p97 = por %p95, %p96
      %p99 = scmp.ne.s32.totalorder %s84, %s98
      %p100 = scmp.eq.s32.totalorder %s32, 0
      %p101 = por %p99, %p100
      %s103 = sadd.s32 %s102, 1
      %p106 = scmp.eq.s32.totalorder %s26, 1
      %p107 = scmp.ne.s32.totalorder %s102, %s104
      %p108 = scmp.eq.s32.totalorder %s26, 0
      %p109 = por %p107, %p108
      %p110 = scmp.ne.s32.totalorder %s102, %s104
      %p111 = scmp.eq.s32.totalorder %s31, 1
      %p112 = por %p110, %p111
      %p113 = scmp.ne.s32.totalorder %s104, %s105
      %p114 = scmp.eq.s32.totalorder %s31, 0
      %p115 = por %p113, %p114
      %p116 = scmp.ne.s32.totalorder %s104, %s105
      %p117 = scmp.eq.s32.totalorder %s32, 1
      %p118 = por %p116, %p117
      %p120 = scmp.ne.s32.totalorder %s105, %s119
      %p121 = scmp.eq.s32.totalorder %s32, 0
      %p122 = por %p120, %p121
      %s124 = sadd.s32 %s123, 1
      %p127 = scmp.eq.s32.totalorder %s26, 1
      %p128 = scmp.ne.s32.totalorder %s123, %s125
      %p129 = scmp.eq.s32.totalorder %s26, 0
      %p130 = por %p128, %p129
      %p131 = scmp.ne.s32.totalorder %s123, %s125
      %p132 = scmp.eq.s32.totalorder %s31, 1
      %p133 = por %p131, %p132
      %p134 = scmp.ne.s32.totalorder %s125, %s126
      %p135 = scmp.eq.s32.totalorder %s31, 0
      %p136 = por %p134, %p135
      %p137 = scmp.ne.s32.totalorder %s125, %s126
      %p138 = scmp.eq.s32.totalorder %s32, 1
      %p139 = por %p137, %p138
      %p141 = scmp.ne.s32.totalorder %s126, %s140
      %p142 = scmp.eq.s32.totalorder %s32, 0
      %p143 = por %p141, %p142
      %s145 = sadd.s32 %s144, 1
      %p148 = scmp.eq.s32.totalorder %s26, 1
      %p149 = scmp.ne.s32.totalorder %s144, %s146
      %p150 = scmp.eq.s32.totalorder %s26, 0
      %p151 = por %p149, %p150
      %p152 = scmp.ne.s32.totalorder %s144, %s146
      %p153 = scmp.eq.s32.totalorder %s31, 1
      %p154 = por %p152, %p153
      %p155 = scmp.ne.s32.totalorder %s146, %s147
      %p156 = scmp.eq.s32.totalorder %s31, 0
      %p157 = por %p155, %p156
      %p158 = scmp.ne.s32.totalorder %s146, %s147
      %p159 = scmp.eq.s32.totalorder %s32, 1
      %p160 = por %p158, %p159
      %p162 = scmp.ne.s32.totalorder %s147, %s161
      %p163 = scmp.eq.s32.totalorder %s32, 0
      %p164 = por %p162, %p163
      %s166 = sadd.s32 %s165, 1
      %p169 = scmp.eq.s32.totalorder %s26, 1
      %p170 = scmp.ne.s32.totalorder %s165, %s167
      %p171 = scmp.eq.s32.totalorder %s26, 0
      %p172 = por %p170, %p171
      %p173 = scmp.ne.s32.totalorder %s165, %s167
      %p174 = scmp.eq.s32.totalorder %s31, 1
      %p175 = por %p173, %p174
      %p176 = scmp.ne.s32.totalorder %s167, %s168
      %p177 = scmp.eq.s32.totalorder %s31, 0
      %p178 = por %p176, %p177
      %p179 = scmp.ne.s32.totalorder %s167, %s168
      %p180 = scmp.eq.s32.totalorder %s32, 1
      %p181 = por %p179, %p180
      %p183 = scmp.ne.s32.totalorder %s168, %s182
      %p184 = scmp.eq.s32.totalorder %s32, 0
      %p185 = por %p183, %p184
      %s187 = sadd.s32 %s186, 1
      %p190 = scmp.eq.s32.totalorder %s26, 1
      %p191 = scmp.ne.s32.totalorder %s186, %s188
      %p192 = scmp.eq.s32.totalorder %s26, 0
      %p193 = por %p191, %p192
      %p194 = scmp.ne.s32.totalorder %s186, %s188
      %p195 = scmp.eq.s32.totalorder %s31, 1
      %p196 = por %p194, %p195
      %p197 = scmp.ne.s32.totalorder %s188, %s189
      %p198 = scmp.eq.s32.totalorder %s31, 0
      %p199 = por %p197, %p198
      %p200 = scmp.ne.s32.totalorder %s188, %s189
      %p201 = scmp.eq.s32.totalorder %s32, 1
      %p202 = por %p200, %p201
      %p204 = scmp.ne.s32.totalorder %s189, %s203
      %p205 = scmp.eq.s32.totalorder %s32, 0
      %p206 = por %p204, %p205
      %s208 = sadd.s32 %s207, 1
      %p211 = scmp.eq.s32.totalorder %s26, 1
      %p212 = scmp.ne.s32.totalorder %s207, %s209
      %p213 = scmp.eq.s32.totalorder %s26, 0
      %p214 = por %p212, %p213
      %p215 = scmp.ne.s32.totalorder %s207, %s209
      %p216 = scmp.eq.s32.totalorder %s31, 1
      %p217 = por %p215, %p216
      %p218 = scmp.ne.s32.totalorder %s209, %s210
      %p219 = scmp.eq.s32.totalorder %s31, 0
      %p220 = por %p218, %p219
      %p221 = scmp.ne.s32.totalorder %s209, %s210
      %p222 = scmp.eq.s32.totalorder %s32, 1
      %p223 = por %p221, %p222
      %p225 = scmp.ne.s32.totalorder %s210, %s224
      %p226 = scmp.eq.s32.totalorder %s32, 0
      %p227 = por %p225, %p226
      %s229 = sadd.s32 %s228, 1
      %p232 = scmp.eq.s32.totalorder %s26, 1
      %p233 = scmp.ne.s32.totalorder %s228, %s230
      %p234 = scmp.eq.s32.totalorder %s26, 0
      %p235 = por %p233, %p234
      %p236 = scmp.ne.s32.totalorder %s228, %s230
      %p237 = scmp.eq.s32.totalorder %s31, 1
      %p238 = por %p236, %p237
      %p239 = scmp.ne.s32.totalorder %s230, %s231
      %p240 = scmp.eq.s32.totalorder %s31, 0
      %p241 = por %p239, %p240
      %p242 = scmp.ne.s32.totalorder %s230, %s231
      %p243 = scmp.eq.s32.totalorder %s32, 1
      %p244 = por %p242, %p243
      %p246 = scmp.ne.s32.totalorder %s231, %s245
      %p247 = scmp.eq.s32.totalorder %s32, 0
      %p248 = por %p246, %p247
      %s250 = sadd.s32 %s249, 1
      %p253 = scmp.eq.s32.totalorder %s26, 1
      %p254 = scmp.ne.s32.totalorder %s249, %s251
      %p255 = scmp.eq.s32.totalorder %s26, 0
      %p256 = por %p254, %p255
      %p257 = scmp.ne.s32.totalorder %s249, %s251
      %p258 = scmp.eq.s32.totalorder %s31, 1
      %p259 = por %p257, %p258
      %p260 = scmp.ne.s32.totalorder %s251, %s252
      %p261 = scmp.eq.s32.totalorder %s31, 0
      %p262 = por %p260, %p261
      %p263 = scmp.ne.s32.totalorder %s251, %s252
      %p264 = scmp.eq.s32.totalorder %s32, 1
      %p265 = por %p263, %p264
      %p267 = scmp.ne.s32.totalorder %s252, %s266
      %p268 = scmp.eq.s32.totalorder %s32, 0
      %p269 = por %p267, %p268
      %s271 = sadd.s32 %s270, 1
      %p274 = scmp.eq.s32.totalorder %s26, 1
      %p275 = scmp.ne.s32.totalorder %s270, %s272
      %p276 = scmp.eq.s32.totalorder %s26, 0
      %p277 = por %p275, %p276
      %p278 = scmp.ne.s32.totalorder %s270, %s272
      %p279 = scmp.eq.s32.totalorder %s31, 1
      %p280 = por %p278, %p279
      %p281 = scmp.ne.s32.totalorder %s272, %s273
      %p282 = scmp.eq.s32.totalorder %s31, 0
      %p283 = por %p281, %p282
      %p284 = scmp.ne.s32.totalorder %s272, %s273
      %p285 = scmp.eq.s32.totalorder %s32, 1
      %p286 = por %p284, %p285
      %p288 = scmp.ne.s32.totalorder %s273, %s287
      %p289 = scmp.eq.s32.totalorder %s32, 0
      %p290 = por %p288, %p289
      %s292 = sadd.s32 %s291, 1
      %p295 = scmp.eq.s32.totalorder %s26, 1
      %p296 = scmp.ne.s32.totalorder %s291, %s293
      %p297 = scmp.eq.s32.totalorder %s26, 0
      %p298 = por %p296, %p297
      %p299 = scmp.ne.s32.totalorder %s291, %s293
      %p300 = scmp.eq.s32.totalorder %s31, 1
      %p301 = por %p299, %p300
      %p302 = scmp.ne.s32.totalorder %s293, %s294
      %p303 = scmp.eq.s32.totalorder %s31, 0
      %p304 = por %p302, %p303
      %p305 = scmp.ne.s32.totalorder %s293, %s294
      %p306 = scmp.eq.s32.totalorder %s32, 1
      %p307 = por %p305, %p306
      %p309 = scmp.ne.s32.totalorder %s294, %s308
      %p310 = scmp.eq.s32.totalorder %s32, 0
      %p311 = por %p309, %p310
      %s313 = sadd.s32 %s312, 1
      %p316 = scmp.eq.s32.totalorder %s26, 1
      %p317 = scmp.ne.s32.totalorder %s312, %s314
      %p318 = scmp.eq.s32.totalorder %s26, 0
      %p319 = por %p317, %p318
      %p320 = scmp.ne.s32.totalorder %s312, %s314
      %p321 = scmp.eq.s32.totalorder %s31, 1
      %p322 = por %p320, %p321
      %p323 = scmp.ne.s32.totalorder %s314, %s315
      %p324 = scmp.eq.s32.totalorder %s31, 0
      %p325 = por %p323, %p324
      %p326 = scmp.ne.s32.totalorder %s314, %s315
      %p327 = scmp.eq.s32.totalorder %s32, 1
      %p328 = por %p326, %p327
      %p330 = scmp.ne.s32.totalorder %s315, %s329
      %p331 = scmp.eq.s32.totalorder %s32, 0
      %p332 = por %p330, %p331
      %s334 = sadd.s32 %s333, 1
      %p337 = scmp.eq.s32.totalorder %s26, 1
      %p338 = scmp.ne.s32.totalorder %s333, %s335
      %p339 = scmp.eq.s32.totalorder %s26, 0
      %p340 = por %p338, %p339
      %p341 = scmp.ne.s32.totalorder %s333, %s335
      %p342 = scmp.eq.s32.totalorder %s31, 1
      %p343 = por %p341, %p342
      %p344 = scmp.ne.s32.totalorder %s335, %s336
      %p345 = scmp.eq.s32.totalorder %s31, 0
      %p346 = por %p344, %p345
      %p347 = scmp.ne.s32.totalorder %s335, %s336
      %p348 = scmp.eq.s32.totalorder %s32, 1
      %p349 = por %p347, %p348
      %p351 = scmp.ne.s32.totalorder %s336, %s350
      %p352 = scmp.eq.s32.totalorder %s32, 0
      %p353 = por %p351, %p352
      %s355 = sadd.s32 %s354, 1
      %p358 = scmp.eq.s32.totalorder %s26, 1
      %p359 = scmp.ne.s32.totalorder %s354, %s356
      %p360 = scmp.eq.s32.totalorder %s26, 0
      %p361 = por %p359, %p360
      %p362 = scmp.ne.s32.totalorder %s354, %s356
      %p363 = scmp.eq.s32.totalorder %s31, 1
      %p364 = por %p362, %p363
      %p365 = scmp.ne.s32.totalorder %s356, %s357
      %p366 = scmp.eq.s32.totalorder %s31, 0
      %p367 = por %p365, %p366
      %p368 = scmp.ne.s32.totalorder %s356, %s357
      %p369 = scmp.eq.s32.totalorder %s32, 1
      %p370 = por %p368, %p369
      %p372 = scmp.ne.s32.totalorder %s357, %s371
      %p373 = scmp.eq.s32.totalorder %s32, 0
      %p374 = por %p372, %p373
      %s376 = sadd.s32 %s375, 1
      %p379 = scmp.eq.s32.totalorder %s26, 1
      %p380 = scmp.ne.s32.totalorder %s375, %s377
      %p381 = scmp.eq.s32.totalorder %s26, 0
      %p382 = por %p380, %p381
      %p383 = scmp.ne.s32.totalorder %s375, %s377
      %p384 = scmp.eq.s32.totalorder %s31, 1
      %p385 = por %p383, %p384
      %p386 = scmp.ne.s32.totalorder %s377, %s378
      %p387 = scmp.eq.s32.totalorder %s31, 0
      %p388 = por %p386, %p387
      %p389 = scmp.ne.s32.totalorder %s377, %s378
      %p390 = scmp.eq.s32.totalorder %s32, 1
      %p391 = por %p389, %p390
      %p393 = scmp.ne.s32.totalorder %s378, %s392
      %p394 = scmp.eq.s32.totalorder %s32, 0
      %p395 = por %p393, %p394
      %s396 = ssub.s32 %s26, %s33
      %p397 = scmp.eq.s32.totalorder %s396, 0
      %s399 = sadd.s32 %s398, 1
      %s400 = scalar_select %p397, %s398, %s399
      %p403 = pneg %p397
      %p404 = scmp.eq.s32.totalorder %s26, 1
      %p405 = por %p403, %p404
      %p406 = scmp.ne.s32.totalorder %s398, %s401
      %p407 = scmp.eq.s32.totalorder %s26, 0
      %p408 = por %p406, %p407
      %p409 = scmp.ne.s32.totalorder %s398, %s401
      %p410 = scmp.eq.s32.totalorder %s31, 1
      %p411 = por %p409, %p410
      %p412 = scmp.ne.s32.totalorder %s401, %s402
      %p413 = scmp.eq.s32.totalorder %s31, 0
      %p414 = por %p412, %p413
      %p415 = scmp.ne.s32.totalorder %s401, %s402
      %p416 = scmp.eq.s32.totalorder %s32, 1
      %p417 = por %p415, %p416
      %p419 = scmp.ne.s32.totalorder %s402, %s418
      %p420 = scmp.eq.s32.totalorder %s32, 0
      %p421 = por %p419, %p420
      %p422 = scmp.le.s32.totalorder 1, %s26
      %p423 = scmp.lt.s32.totalorder %s26, 3
      %p424 = pnand %p422, %p423
      %p425 = pneg %p424
      // Predicated region
      $region9: #{tpu_custom_call.1} parent=5 // pred_check
        _
      $region10: #{tpu_custom_call.1} parent=5 // pred_check_branch
        %427 = sbr.rel (%p424) target = $region12
      $region11: #{tpu_custom_call.1} parent=5 // pred_region
        %s428 = ssub.s32 %s26, 1
        // Predicated region
        $region13: #{tpu_custom_call.1} parent=11 // pred_check
          %p429 = pneg %p73
        $region14: #{tpu_custom_call.1} parent=11 // pred_check_branch
          %431 = sbr.rel (%p429) target = $region16
        $region15: #{tpu_custom_call.1} parent=11 // pred_region
          _
        $region16: #{tpu_custom_call.1} parent=11 // pred_fallthru
          _
        // Predicated region
        $region17: #{tpu_custom_call.1} parent=11 // pred_check
          %p432 = pneg %p94
        $region18: #{tpu_custom_call.1} parent=11 // pred_check_branch
          %434 = sbr.rel (%p432) target = $region20
        $region19: #{tpu_custom_call.1} parent=11 // pred_region
          _
        $region20: #{tpu_custom_call.1} parent=11 // pred_fallthru
          _
        // Predicated region
        $region21: #{tpu_custom_call.1} parent=11 // pred_check
          %p435 = pneg %p115
        $region22: #{tpu_custom_call.1} parent=11 // pred_check_branch
          %437 = sbr.rel (%p435) target = $region24
        $region23: #{tpu_custom_call.1} parent=11 // pred_region
          _
        $region24: #{tpu_custom_call.1} parent=11 // pred_fallthru
          _
        // Predicated region
        $region25: #{tpu_custom_call.1} parent=11 // pred_check
          %p438 = pneg %p136
        $region26: #{tpu_custom_call.1} parent=11 // pred_check_branch
          %440 = sbr.rel (%p438) target = $region28
        $region27: #{tpu_custom_call.1} parent=11 // pred_region
          _
        $region28: #{tpu_custom_call.1} parent=11 // pred_fallthru
          _
        // Predicated region
        $region29: #{tpu_custom_call.1} parent=11 // pred_check
          %p441 = pneg %p157
        $region30: #{tpu_custom_call.1} parent=11 // pred_check_branch
          %443 = sbr.rel (%p441) target = $region32
        $region31: #{tpu_custom_call.1} parent=11 // pred_region
          _
        $region32: #{tpu_custom_call.1} parent=11 // pred_fallthru
          _
        // Predicated region
        $region33: #{tpu_custom_call.1} parent=11 // pred_check
          %p444 = pneg %p178
        $region34: #{tpu_custom_call.1} parent=11 // pred_check_branch
          %446 = sbr.rel (%p444) target = $region36
        $region35: #{tpu_custom_call.1} parent=11 // pred_region
          _
        $region36: #{tpu_custom_call.1} parent=11 // pred_fallthru
          _
        // Predicated region
        $region37: #{tpu_custom_call.1} parent=11 // pred_check
          %p447 = pneg %p199
        $region38: #{tpu_custom_call.1} parent=11 // pred_check_branch
          %449 = sbr.rel (%p447) target = $region40
        $region39: #{tpu_custom_call.1} parent=11 // pred_region
          _
        $region40: #{tpu_custom_call.1} parent=11 // pred_fallthru
          _
        // Predicated region
        $region41: #{tpu_custom_call.1} parent=11 // pred_check
          %p450 = pneg %p220
        $region42: #{tpu_custom_call.1} parent=11 // pred_check_branch
          %452 = sbr.rel (%p450) target = $region44
        $region43: #{tpu_custom_call.1} parent=11 // pred_region
          _
        $region44: #{tpu_custom_call.1} parent=11 // pred_fallthru
          _
        // Predicated region
        $region45: #{tpu_custom_call.1} parent=11 // pred_check
          %p453 = pneg %p241
        $region46: #{tpu_custom_call.1} parent=11 // pred_check_branch
          %455 = sbr.rel (%p453) target = $region48
        $region47: #{tpu_custom_call.1} parent=11 // pred_region
          _
        $region48: #{tpu_custom_call.1} parent=11 // pred_fallthru
          _
        // Predicated region
        $region49: #{tpu_custom_call.1} parent=11 // pred_check
          %p456 = pneg %p262
        $region50: #{tpu_custom_call.1} parent=11 // pred_check_branch
          %458 = sbr.rel (%p456) target = $region52
        $region51: #{tpu_custom_call.1} parent=11 // pred_region
          _
        $region52: #{tpu_custom_call.1} parent=11 // pred_fallthru
          _
        // Predicated region
        $region53: #{tpu_custom_call.1} parent=11 // pred_check
          %p459 = pneg %p283
        $region54: #{tpu_custom_call.1} parent=11 // pred_check_branch
          %461 = sbr.rel (%p459) target = $region56
        $region55: #{tpu_custom_call.1} parent=11 // pred_region
          _
        $region56: #{tpu_custom_call.1} parent=11 // pred_fallthru
          _
        // Predicated region
        $region57: #{tpu_custom_call.1} parent=11 // pred_check
          %p462 = pneg %p304
        $region58: #{tpu_custom_call.1} parent=11 // pred_check_branch
          %464 = sbr.rel (%p462) target = $region60
        $region59: #{tpu_custom_call.1} parent=11 // pred_region
          _
        $region60: #{tpu_custom_call.1} parent=11 // pred_fallthru
          _
        // Predicated region
        $region61: #{tpu_custom_call.1} parent=11 // pred_check
          %p465 = pneg %p325
        $region62: #{tpu_custom_call.1} parent=11 // pred_check_branch
          %467 = sbr.rel (%p465) target = $region64
        $region63: #{tpu_custom_call.1} parent=11 // pred_region
          _
        $region64: #{tpu_custom_call.1} parent=11 // pred_fallthru
          _
        // Predicated region
        $region65: #{tpu_custom_call.1} parent=11 // pred_check
          %p468 = pneg %p346
        $region66: #{tpu_custom_call.1} parent=11 // pred_check_branch
          %470 = sbr.rel (%p468) target = $region68
        $region67: #{tpu_custom_call.1} parent=11 // pred_region
          _
        $region68: #{tpu_custom_call.1} parent=11 // pred_fallthru
          _
        // Predicated region
        $region69: #{tpu_custom_call.1} parent=11 // pred_check
          %p471 = pneg %p367
        $region70: #{tpu_custom_call.1} parent=11 // pred_check_branch
          %473 = sbr.rel (%p471) target = $region72
        $region71: #{tpu_custom_call.1} parent=11 // pred_region
          _
        $region72: #{tpu_custom_call.1} parent=11 // pred_fallthru
          _
        // Predicated region
        $region73: #{tpu_custom_call.1} parent=11 // pred_check
          %p474 = pneg %p388
        $region74: #{tpu_custom_call.1} parent=11 // pred_check_branch
          %476 = sbr.rel (%p474) target = $region76
        $region75: #{tpu_custom_call.1} parent=11 // pred_region
          _
        $region76: #{tpu_custom_call.1} parent=11 // pred_fallthru
          _
      $region12: #{tpu_custom_call.1} parent=5 // pred_fallthru
        _
      %p477 = scmp.lt.s32.totalorder %s26, 2
      // Predicated region
      $region77: #{tpu_custom_call.1} parent=5 // pred_check
        %p478 = pneg %p477
      $region78: #{tpu_custom_call.1} parent=5 // pred_check_branch
        %480 = sbr.rel (%p478) target = $region80
      $region79: #{tpu_custom_call.1} parent=5 // pred_region
        // Predicated region
        $region81: #{tpu_custom_call.1} parent=79 // pred_check
          %p481 = pneg %p46
        $region82: #{tpu_custom_call.1} parent=79 // pred_check_branch
          %483 = sbr.rel (%p481) target = $region84
        $region83: #{tpu_custom_call.1} parent=79 // pred_region
          %p484 = scmp.lt.s32.totalorder %s26, 1
          %s485 = scalar_select %p484, %s26, 1
          %s486 = smul.addr %s485, 8
          %s487 = scalar_lea.vmem %s0, %s486
        $region84: #{tpu_custom_call.1} parent=79 // pred_fallthru
          _
      $region80: #{tpu_custom_call.1} parent=5 // pred_fallthru
        _
      %p488 = scmp.le.s32.totalorder 1, %s26
      %p489 = scmp.lt.s32.totalorder %s26, 3
      %p490 = pnand %p488, %p489
      %p491 = pneg %p490
      // Predicated region
      $region85: #{tpu_custom_call.1} parent=5 // pred_check
        _
      $region86: #{tpu_custom_call.1} parent=5 // pred_check_branch
        %493 = sbr.rel (%p490) target = $region88
      $region87: #{tpu_custom_call.1} parent=5 // pred_region
        %s494 = ssub.s32 %s26, 1
        %p495 = scmp.lt.s32.totalorder %s31, 1
        %s496 = scalar_select %p495, %s31, 1
        %s497 = smul.addr %s496, 8
        %s498 = scalar_lea.vmem %s0, %s497
        %p499 = pneg %p52
        %p500 = pneg %p49
        %p501 = pneg %p73
        %p502 = pneg %p70
        %p503 = pneg %p94
        %p504 = pneg %p91
        %p505 = pneg %p115
        %p506 = pneg %p112
        %p507 = pneg %p136
        %p508 = pneg %p133
        %p509 = pneg %p157
        %p510 = pneg %p154
        %p511 = pneg %p178
        %p512 = pneg %p175
        %p513 = pneg %p199
        %p514 = pneg %p196
        %p515 = pneg %p220
        %p516 = pneg %p217
        %p517 = pneg %p241
        %p518 = pneg %p238
        %p519 = pneg %p262
        %p520 = pneg %p259
        %p521 = pneg %p283
        %p522 = pneg %p280
        %p523 = pneg %p304
        %p524 = pneg %p301
        %p525 = pneg %p325
        %p526 = pneg %p322
        %p527 = pneg %p346
        %p528 = pneg %p343
        %p529 = pneg %p367
        %p530 = pneg %p364
        %p531 = pneg %p388
        %p532 = pneg %p385
        %p533 = pneg %p414
        %p534 = pneg %p411
        %s535 = sand.u32 %s401, 1
        %s536 = scalar_lea.sflag [#allocation3], %s535
        %s537 = sand.u32 %s401, 1
        %s538 = smul.addr %s537, 32
        %s539 = scalar_lea.vmem [#allocation2], %s538
        %p540 = scmp.lt.s32.totalorder %s31, 1
        %s541 = scalar_select %p540, %s31, 1
        %s542 = smul.addr %s541, 8
        %s543 = scalar_lea.vmem %s0, %s542
        %v545 = vld [vmem:[%s543] sm:$0xff]
        %v546 = vlaneseq
        %v547 = vand.u32 %v546, 127
        %vm548 = vcmp.lt.s32.totalorder %v547, 16
        %v549 = vsel %vm548, 1, 0
        %v550 = vcvt.s32.f32 %v549
        %v551 = vld [vmem:[%s1] sm:$0xf]
        %v552 = vpack.c.bf16 %v545, %v545
        %v553 = vld [vmem:[%s2] sm:$0xff]
        %555 = vset.pattern.permute.xlu0 0
        %556 = vperm.xlu0 %555, %v553
        %v557 = vpop.permute.xlu0 %556
        %vm559 = vcmask 64512
        %v561 = vsel %vm559, %v551, 0
        %vm563 = vcmask 1043456
        %v565 = vsel %vm563, %v552, 0
        %567 = vmatprep.subr.bf16.mxu0 0
        %568 = vmatpush1.bf16.msra.mxu0 %v565
        %569 = vmatprep.subr.bf16.mxu0 0
        %570 = vmatpush1.bf16.msra.mxu0 0
        %571 = vmatprep.subr.bf16.mxu0 0
        %572 = vmatpush1.bf16.msra.mxu0 0
        %573 = vmatprep.subr.bf16.mxu0 0
        %574 = vmatpush1.bf16.msra.mxu0 0
        %575 = vmatprep.subr.bf16.mxu0 0
        %576 = vmatpush1.bf16.msra.mxu0 0
        %577 = vmatprep.subr.bf16.mxu0 0
        %578 = vmatpush1.bf16.msra.mxu0 0
        %579 = vmatprep.subr.bf16.mxu0 0
        %580 = vmatpush1.bf16.msra.mxu0 0
        %581 = vmatprep.subr.bf16.mxu0 0
        %582 = vmatpush1.bf16.msra.mxu0 0
        %583 = vmatprep.subr.bf16.mxu0 0
        %584 = vmatpush1.bf16.msra.mxu0 0
        %585 = vmatprep.subr.bf16.mxu0 0
        %586 = vmatpush1.bf16.msra.mxu0 0
        %587 = vmatprep.subr.bf16.mxu0 0
        %588 = vmatpush1.bf16.msra.mxu0 0
        %589 = vmatprep.subr.bf16.mxu0 0
        %590 = vmatpush1.bf16.msra.mxu0 0
        %591 = vmatprep.subr.bf16.mxu0 0
        %592 = vmatpush1.bf16.msra.mxu0 0
        %593 = vmatprep.subr.bf16.mxu0 0
        %594 = vmatpush1.bf16.msra.mxu0 0
        %595 = vmatprep.subr.bf16.mxu0 0
        %596 = vmatpush1.bf16.msra.mxu0 0
        %597 = vmatprep.subr.bf16.mxu0 0
        %598 = vmatpush1.bf16.msra.mxu0 0
        %599 = vmatprep.mubr.bf16.mxu0 0
        %600 = vmatmul.mubr.bf16.gmra.mrb[0].mxu0 %v561
        %v601 = vpop.f32.mrb[0].mxu0
        %v602 = vadd.f32 %v557, %v601
        %v603 = vpop.f32.mrb[0].mxu0
        %v604 = vpop.f32.mrb[0].mxu0
        %v605 = vpop.f32.mrb[0].mxu0
        %606 = vdwg.mxu0
        %v607 = vmul.f32 %v602, %v550
        %v608 = vld [vmem:[%s3] sm:$0xf]
        %v609 = vld [vmem:[%s3 + $0x4] sm:$0xf]
        %v610 = vpack.c.bf16 %v607, %v607
        %v611 = vld [vmem:[%s4] sm:$0xff]
        %v612 = vld [vmem:[%s4 + $0x8] sm:$0xff]
        %614 = vset.pattern.permute.xlu0 0
        %615 = vperm.xlu0 %614, %v611
        %v616 = vpop.permute.xlu0 %615
        %619 = vset.pattern.permute.xlu0 0
        %620 = vperm.xlu0 %619, %v612
        %v621 = vpop.permute.xlu0 %620
        %v625 = vunpack.c.l.b16 %v608
        %v626 = vunpack.c.l.b16 %v609
        %v627 = vpack.c.b16 %v626, %v625
        %v629 = vsel %vm559, %v627, 0
        %v632 = vsel %vm563, %v610, 0
        %634 = vmatprep.subr.bf16.mxu0 0
        %635 = vmatpush1.bf16.msra.mxu0 %v632
        %636 = vmatprep.subr.bf16.mxu0 0
        %637 = vmatpush1.bf16.msra.mxu0 0
        %638 = vmatprep.subr.bf16.mxu0 0
        %639 = vmatpush1.bf16.msra.mxu0 0
        %640 = vmatprep.subr.bf16.mxu0 0
        %641 = vmatpush1.bf16.msra.mxu0 0
        %642 = vmatprep.subr.bf16.mxu0 0
        %643 = vmatpush1.bf16.msra.mxu0 0
        %644 = vmatprep.subr.bf16.mxu0 0
        %645 = vmatpush1.bf16.msra.mxu0 0
        %646 = vmatprep.subr.bf16.mxu0 0
        %647 = vmatpush1.bf16.msra.mxu0 0
        %648 = vmatprep.subr.bf16.mxu0 0
        %649 = vmatpush1.bf16.msra.mxu0 0
        %650 = vmatprep.subr.bf16.mxu0 0
        %651 = vmatpush1.bf16.msra.mxu0 0
        %652 = vmatprep.subr.bf16.mxu0 0
        %653 = vmatpush1.bf16.msra.mxu0 0
        %654 = vmatprep.subr.bf16.mxu0 0
        %655 = vmatpush1.bf16.msra.mxu0 0
        %656 = vmatprep.subr.bf16.mxu0 0
        %657 = vmatpush1.bf16.msra.mxu0 0
        %658 = vmatprep.subr.bf16.mxu0 0
        %659 = vmatpush1.bf16.msra.mxu0 0
        %660 = vmatprep.subr.bf16.mxu0 0
        %661 = vmatpush1.bf16.msra.mxu0 0
        %662 = vmatprep.subr.bf16.mxu0 0
        %663 = vmatpush1.bf16.msra.mxu0 0
        %664 = vmatprep.subr.bf16.mxu0 0
        %665 = vmatpush1.bf16.msra.mxu0 0
        %666 = vmatprep.mubr.bf16.mxu0 0
        %667 = vmatmul.mubr.bf16.gmra.mrb[0].mxu0 %v629
        %v668 = vpop.f32.mrb[0].mxu0
        %v669 = vadd.f32 %v616, %v668
        %v670 = vpop.f32.mrb[0].mxu0
        %v671 = vpop.f32.mrb[0].mxu0
        %v672 = vadd.f32 %v621, %v671
        %v673 = vpop.f32.mrb[0].mxu0
        %674 = vdwg.mxu0
        %v675 = vld [vmem:[%s5] sm:$0x1]
        %vm676 = vcmp.gt.f32.partialorder %v669, 0.0
        %vm677 = vcmp.gt.f32.partialorder %v672, 0.0
        %v679 = vlaneseq
        %v680 = vshrl.u32 %v679, 7
        %v681 = vsub.s32 0, %v680
        %v682 = vrot.slane %v675, %v681
        %683 = vset.pattern.permute.xlu0 0
        %684 = vperm.xlu0 %683, %v682
        %v685 = vpop.permute.xlu0 %684
        %v687 = vmul.f32 %v685, %v669
        %v688 = vmul.f32 %v685, %v672
        %v689 = vsel %vm676, %v669, %v687
        %v690 = vsel %vm677, %v672, %v688
        %v691 = vld [vmem:[%s6] sm:$0xff]
        %v692 = vld [vmem:[%s6 + $0x8] sm:$0xff]
        %v693 = vld [vmem:[%s7] sm:$0xff]
        %v694 = vld [vmem:[%s7 + $0x8] sm:$0xff]
        %v695 = vmul.f32 %v689, %v550
        %v696 = vmul.f32 %v690, %v550
        %v697 = vadd.f32 %v695, %v696
        %698 = vadd.xlane.f32.xlu0 %v697
        %v699 = vpop.xlane.xlu0 %698
        %v700 = vrot.slane %v699, 4
        %v701 = vadd.f32 %v699, %v700
        %v702 = vrot.slane %v701, 2
        %v703 = vadd.f32 %v701, %v702
        %v704 = vrot.slane %v703, 1
        %v705 = vadd.f32 %v703, %v704
        %s706 = vtos %v705
        %v707 = vmul.f32 %v695, %v695
        %v708 = vmul.f32 %v696, %v696
        %v709 = vadd.f32 %v707, %v708
        %710 = vadd.xlane.f32.xlu0 %v709
        %v711 = vpop.xlane.xlu0 %710
        %v712 = vrot.slane %v711, 4
        %v713 = vadd.f32 %v711, %v712
        %v714 = vrot.slane %v713, 2
        %v715 = vadd.f32 %v713, %v714
        %v716 = vrot.slane %v715, 1
        %v717 = vadd.f32 %v715, %v716
        %s718 = vtos %v717
        %s719 = smul.f32 %s706, 0.00390625
        %s720 = smul.f32 %s718, 0.00390625
        %s721 = smul.f32 %s719, %s719
        %s722 = ssub.f32 %s720, %s721
        %v723 = vstv %s719
        %v724 = vsub.f32 %v689, %v723
        %v725 = vsub.f32 %v690, %v723
        %727 = vset.pattern.permute.xlu0 0
        %728 = vperm.xlu0 %727, %v691
        %v729 = vpop.permute.xlu0 %728
        %732 = vset.pattern.permute.xlu0 0
        %733 = vperm.xlu0 %732, %v692
        %v734 = vpop.permute.xlu0 %733
        %v736 = vmul.f32 %v729, %v724
        %v737 = vmul.f32 %v734, %v725
        %s738 = sadd.f32 %s722, 1e-07
        %v739 = vstv %s738
        %v740 = vrsqrt.pop %v739
        %s741 = vtos %v740
        %v742 = vstv %s741
        %v743 = vmul.f32 %v736, %v742
        %v744 = vmul.f32 %v737, %v742
        %746 = vset.pattern.permute.xlu0 0
        %747 = vperm.xlu0 %746, %v693
        %v748 = vpop.permute.xlu0 %747
        %751 = vset.pattern.permute.xlu0 0
        %752 = vperm.xlu0 %751, %v694
        %v753 = vpop.permute.xlu0 %752
        %v755 = vadd.f32 %v743, %v748
        %v756 = vadd.f32 %v744, %v753
        %v757 = vmul.f32 %v755, %v550
        %v758 = vmul.f32 %v756, %v550
        %v759 = vld [vmem:[%s8] sm:$0xff]
        %v760 = vld [vmem:[%s8 + $0x8] sm:$0xff]
        %761 = vrot.lane.b32.xlu0 %v757, 1
        %v762 = vpop.permute.xlu0 %761
        %763 = vrot.lane.b32.xlu0 %v758, 1
        %v764 = vpop.permute.xlu0 %763
        %766 = vset.pattern.permute.xlu0 0
        %767 = vperm.xlu0 %766, %v759
        %v768 = vpop.permute.xlu0 %767
        %771 = vset.pattern.permute.xlu0 0
        %772 = vperm.xlu0 %771, %v760
        %v773 = vpop.permute.xlu0 %772
        %v775 = vmul.f32 %v768, %v762
        %v776 = vmul.f32 %v773, %v764
        %777 = vset.pattern.permute.xlu0 1
        %778 = vperm.xlu0 %777, %v759
        %v779 = vpop.permute.xlu0 %778
        %781 = vset.pattern.permute.xlu0 1
        %782 = vperm.xlu0 %781, %v760
        %v783 = vpop.permute.xlu0 %782
        %v785 = vmul.f32 %v779, %v757
        %v786 = vmul.f32 %v783, %v758
        %v787 = vadd.f32 %v775, %v785
        %v788 = vadd.f32 %v776, %v786
        %789 = vrot.lane.b32.xlu0 %v757, 127
        %v790 = vpop.permute.xlu0 %789
        %791 = vrot.lane.b32.xlu0 %v758, 127
        %v792 = vpop.permute.xlu0 %791
        %793 = vset.pattern.permute.xlu0 2
        %794 = vperm.xlu0 %793, %v759
        %v795 = vpop.permute.xlu0 %794
        %797 = vset.pattern.permute.xlu0 2
        %798 = vperm.xlu0 %797, %v760
        %v799 = vpop.permute.xlu0 %798
        %v801 = vmul.f32 %v795, %v790
        %v802 = vmul.f32 %v799, %v792
        %v803 = vadd.f32 %v787, %v801
        %v804 = vadd.f32 %v788, %v802
        %v805 = vld [vmem:[%s9] sm:$0xff]
        %v806 = vld [vmem:[%s9 + $0x8] sm:$0xff]
        %808 = vset.pattern.permute.xlu0 0
        %809 = vperm.xlu0 %808, %v805
        %v810 = vpop.permute.xlu0 %809
        %813 = vset.pattern.permute.xlu0 0
        %814 = vperm.xlu0 %813, %v806
        %v815 = vpop.permute.xlu0 %814
        %v817 = vadd.f32 %v803, %v810
        %v818 = vadd.f32 %v804, %v815
        %v819 = vld [vmem:[%s10] sm:$0x1]
        %vm820 = vcmp.gt.f32.partialorder %v817, 0.0
        %vm821 = vcmp.gt.f32.partialorder %v818, 0.0
        %v823 = vlaneseq
        %v824 = vshrl.u32 %v823, 7
        %v825 = vsub.s32 0, %v824
        %v826 = vrot.slane %v819, %v825
        %827 = vset.pattern.permute.xlu0 0
        %828 = vperm.xlu0 %827, %v826
        %v829 = vpop.permute.xlu0 %828
        %v831 = vmul.f32 %v829, %v817
        %v832 = vmul.f32 %v829, %v818
        %v833 = vsel %vm820, %v817, %v831
        %v834 = vsel %vm821, %v818, %v832
        %v835 = vld [vmem:[%s11] sm:$0xff]
        %v836 = vld [vmem:[%s11 + $0x8] sm:$0xff]
        %v837 = vld [vmem:[%s12] sm:$0xff]
        %v838 = vld [vmem:[%s12 + $0x8] sm:$0xff]
        %v839 = vmul.f32 %v833, %v550
        %v840 = vmul.f32 %v834, %v550
        %v841 = vadd.f32 %v839, %v840
        %842 = vadd.xlane.f32.xlu0 %v841
        %v843 = vpop.xlane.xlu0 %842
        %v844 = vrot.slane %v843, 4
        %v845 = vadd.f32 %v843, %v844
        %v846 = vrot.slane %v845, 2
        %v847 = vadd.f32 %v845, %v846
        %v848 = vrot.slane %v847, 1
        %v849 = vadd.f32 %v847, %v848
        %s850 = vtos %v849
        %v851 = vmul.f32 %v839, %v839
        %v852 = vmul.f32 %v840, %v840
        %v853 = vadd.f32 %v851, %v852
        %854 = vadd.xlane.f32.xlu0 %v853
        %v855 = vpop.xlane.xlu0 %854
        %v856 = vrot.slane %v855, 4
        %v857 = vadd.f32 %v855, %v856
        %v858 = vrot.slane %v857, 2
        %v859 = vadd.f32 %v857, %v858
        %v860 = vrot.slane %v859, 1
        %v861 = vadd.f32 %v859, %v860
        %s862 = vtos %v861
        %s863 = smul.f32 %s850, 0.00390625
        %s864 = smul.f32 %s862, 0.00390625
        %s865 = smul.f32 %s863, %s863
        %s866 = ssub.f32 %s864, %s865
        %v867 = vstv %s863
        %v868 = vsub.f32 %v833, %v867
        %v869 = vsub.f32 %v834, %v867
        %871 = vset.pattern.permute.xlu0 0
        %872 = vperm.xlu0 %871, %v835
        %v873 = vpop.permute.xlu0 %872
        %876 = vset.pattern.permute.xlu0 0
        %877 = vperm.xlu0 %876, %v836
        %v878 = vpop.permute.xlu0 %877
        %v880 = vmul.f32 %v873, %v868
        %v881 = vmul.f32 %v878, %v869
        %s882 = sadd.f32 %s866, 1e-07
        %v883 = vstv %s882
        %v884 = vrsqrt.pop %v883
        %s885 = vtos %v884
        %v886 = vstv %s885
        %v887 = vmul.f32 %v880, %v886
        %v888 = vmul.f32 %v881, %v886
        %890 = vset.pattern.permute.xlu0 0
        %891 = vperm.xlu0 %890, %v837
        %v892 = vpop.permute.xlu0 %891
        %895 = vset.pattern.permute.xlu0 0
        %896 = vperm.xlu0 %895, %v838
        %v897 = vpop.permute.xlu0 %896
        %v899 = vadd.f32 %v887, %v892
        %v900 = vadd.f32 %v888, %v897
        %v901 = vld [vmem:[%s13] sm:$0xf]
        %v902 = vpack.c.bf16 %v900, %v899
        %v903 = vld [vmem:[%s14] sm:$0xff]
        %905 = vset.pattern.permute.xlu0 0
        %906 = vperm.xlu0 %905, %v903
        %v907 = vpop.permute.xlu0 %906
        %vm909 = vcmask 130048
        %v911 = vsel %vm909, %v901, 0
        %913 = vmatprep.subr.bf16.mxu0 0
        %914 = vmatpush1.bf16.msra.mxu0 %v902
        %915 = vmatprep.subr.bf16.mxu0 0
        %916 = vmatpush1.bf16.msra.mxu0 0
        %917 = vmatprep.subr.bf16.mxu0 0
        %918 = vmatpush1.bf16.msra.mxu0 0
        %919 = vmatprep.subr.bf16.mxu0 0
        %920 = vmatpush1.bf16.msra.mxu0 0
        %921 = vmatprep.subr.bf16.mxu0 0
        %922 = vmatpush1.bf16.msra.mxu0 0
        %923 = vmatprep.subr.bf16.mxu0 0
        %924 = vmatpush1.bf16.msra.mxu0 0
        %925 = vmatprep.subr.bf16.mxu0 0
        %926 = vmatpush1.bf16.msra.mxu0 0
        %927 = vmatprep.subr.bf16.mxu0 0
        %928 = vmatpush1.bf16.msra.mxu0 0
        %929 = vmatprep.subr.bf16.mxu0 0
        %930 = vmatpush1.bf16.msra.mxu0 0
        %931 = vmatprep.subr.bf16.mxu0 0
        %932 = vmatpush1.bf16.msra.mxu0 0
        %933 = vmatprep.subr.bf16.mxu0 0
        %934 = vmatpush1.bf16.msra.mxu0 0
        %935 = vmatprep.subr.bf16.mxu0 0
        %936 = vmatpush1.bf16.msra.mxu0 0
        %937 = vmatprep.subr.bf16.mxu0 0
        %938 = vmatpush1.bf16.msra.mxu0 0
        %939 = vmatprep.subr.bf16.mxu0 0
        %940 = vmatpush1.bf16.msra.mxu0 0
        %941 = vmatprep.subr.bf16.mxu0 0
        %942 = vmatpush1.bf16.msra.mxu0 0
        %943 = vmatprep.subr.bf16.mxu0 0
        %944 = vmatpush1.bf16.msra.mxu0 0
        %945 = vmatprep.mubr.bf16.mxu0 0
        %946 = vmatmul.mubr.bf16.gmra.mrb[0].mxu0 %v911
        %v947 = vpop.f32.mrb[0].mxu0
        %v948 = vadd.f32 %v907, %v947
        %v949 = vpop.f32.mrb[0].mxu0
        %v950 = vpop.f32.mrb[0].mxu0
        %v951 = vpop.f32.mrb[0].mxu0
        %952 = vdwg.mxu0
        %v953 = vadd.f32 %v607, %v948
        %v954 = vmul.f32 %v953, %v550
        %s955 = scalar_lea.vmem %s3, 8
        %v956 = vld [vmem:[%s955] sm:$0xf]
        %v957 = vld [vmem:[%s955 + $0x4] sm:$0xf]
        %v958 = vpack.c.bf16 %v954, %v954
        %s959 = scalar_lea.vmem %s4, 16
        %v960 = vld [vmem:[%s959] sm:$0xff]
        %v961 = vld [vmem:[%s959 + $0x8] sm:$0xff]
        %963 = vset.pattern.permute.xlu0 0
        %964 = vperm.xlu0 %963, %v960
        %v965 = vpop.permute.xlu0 %964
        %968 = vset.pattern.permute.xlu0 0
        %969 = vperm.xlu0 %968, %v961
        %v970 = vpop.permute.xlu0 %969
        %v974 = vunpack.c.l.b16 %v956
        %v975 = vunpack.c.l.b16 %v957
        %v976 = vpack.c.b16 %v975, %v974
        %v978 = vsel %vm559, %v976, 0
        %v981 = vsel %vm563, %v958, 0
        %983 = vmatprep.subr.bf16.mxu0 0
        %984 = vmatpush1.bf16.msra.mxu0 %v981
        %985 = vmatprep.subr.bf16.mxu0 0
        %986 = vmatpush1.bf16.msra.mxu0 0
        %987 = vmatprep.subr.bf16.mxu0 0
        %988 = vmatpush1.bf16.msra.mxu0 0
        %989 = vmatprep.subr.bf16.mxu0 0
        %990 = vmatpush1.bf16.msra.mxu0 0
        %991 = vmatprep.subr.bf16.mxu0 0
        %992 = vmatpush1.bf16.msra.mxu0 0
        %993 = vmatprep.subr.bf16.mxu0 0
        %994 = vmatpush1.bf16.msra.mxu0 0
        %995 = vmatprep.subr.bf16.mxu0 0
        %996 = vmatpush1.bf16.msra.mxu0 0
        %997 = vmatprep.subr.bf16.mxu0 0
        %998 = vmatpush1.bf16.msra.mxu0 0
        %999 = vmatprep.subr.bf16.mxu0 0
        %1000 = vmatpush1.bf16.msra.mxu0 0
        %1001 = vmatprep.subr.bf16.mxu0 0
        %1002 = vmatpush1.bf16.msra.mxu0 0
        %1003 = vmatprep.subr.bf16.mxu0 0
        %1004 = vmatpush1.bf16.msra.mxu0 0
        %1005 = vmatprep.subr.bf16.mxu0 0
        %1006 = vmatpush1.bf16.msra.mxu0 0
        %1007 = vmatprep.subr.bf16.mxu0 0
        %1008 = vmatpush1.bf16.msra.mxu0 0
        %1009 = vmatprep.subr.bf16.mxu0 0
        %1010 = vmatpush1.bf16.msra.mxu0 0
        %1011 = vmatprep.subr.bf16.mxu0 0
        %1012 = vmatpush1.bf16.msra.mxu0 0
        %1013 = vmatprep.subr.bf16.mxu0 0
        %1014 = vmatpush1.bf16.msra.mxu0 0
        %1015 = vmatprep.mubr.bf16.mxu0 0
        %1016 = vmatmul.mubr.bf16.gmra.mrb[0].mxu0 %v978
        %v1017 = vpop.f32.mrb[0].mxu0
        %v1018 = vadd.f32 %v965, %v1017
        %v1019 = vpop.f32.mrb[0].mxu0
        %v1020 = vpop.f32.mrb[0].mxu0
        %v1021 = vadd.f32 %v970, %v1020
        %v1022 = vpop.f32.mrb[0].mxu0
        %1023 = vdwg.mxu0
        %s1024 = scalar_lea.vmem %s5, 1
        %v1025 = vld [vmem:[%s1024] sm:$0x1]
        %vm1026 = vcmp.gt.f32.partialorder %v1018, 0.0
        %vm1027 = vcmp.gt.f32.partialorder %v1021, 0.0
        %v1029 = vlaneseq
        %v1030 = vshrl.u32 %v1029, 7
        %v1031 = vsub.s32 0, %v1030
        %v1032 = vrot.slane %v1025, %v1031
        %1033 = vset.pattern.permute.xlu0 0
        %1034 = vperm.xlu0 %1033, %v1032
        %v1035 = vpop.permute.xlu0 %1034
        %v1037 = vmul.f32 %v1035, %v1018
        %v1038 = vmul.f32 %v1035, %v1021
        %v1039 = vsel %vm1026, %v1018, %v1037
        %v1040 = vsel %vm1027, %v1021, %v1038
        %s1041 = scalar_lea.vmem %s6, 16
        %v1042 = vld [vmem:[%s1041] sm:$0xff]
        %v1043 = vld [vmem:[%s1041 + $0x8] sm:$0xff]
        %s1044 = scalar_lea.vmem %s7, 16
        %v1045 = vld [vmem:[%s1044] sm:$0xff]
        %v1046 = vld [vmem:[%s1044 + $0x8] sm:$0xff]
        %v1047 = vmul.f32 %v1039, %v550
        %v1048 = vmul.f32 %v1040, %v550
        %v1049 = vadd.f32 %v1047, %v1048
        %1050 = vadd.xlane.f32.xlu0 %v1049
        %v1051 = vpop.xlane.xlu0 %1050
        %v1052 = vrot.slane %v1051, 4
        %v1053 = vadd.f32 %v1051, %v1052
        %v1054 = vrot.slane %v1053, 2
        %v1055 = vadd.f32 %v1053, %v1054
        %v1056 = vrot.slane %v1055, 1
        %v1057 = vadd.f32 %v1055, %v1056
        %s1058 = vtos %v1057
        %v1059 = vmul.f32 %v1047, %v1047
        %v1060 = vmul.f32 %v1048, %v1048
        %v1061 = vadd.f32 %v1059, %v1060
        %1062 = vadd.xlane.f32.xlu0 %v1061
        %v1063 = vpop.xlane.xlu0 %1062
        %v1064 = vrot.slane %v1063, 4
        %v1065 = vadd.f32 %v1063, %v1064
        %v1066 = vrot.slane %v1065, 2
        %v1067 = vadd.f32 %v1065, %v1066
        %v1068 = vrot.slane %v1067, 1
        %v1069 = vadd.f32 %v1067, %v1068
        %s1070 = vtos %v1069
        %s1071 = smul.f32 %s1058, 0.00390625
        %s1072 = smul.f32 %s1070, 0.00390625
        %s1073 = smul.f32 %s1071, %s1071
        %s1074 = ssub.f32 %s1072, %s1073
        %v1075 = vstv %s1071
        %v1076 = vsub.f32 %v1039, %v1075
        %v1077 = vsub.f32 %v1040, %v1075
        %1079 = vset.pattern.permute.xlu0 0
        %1080 = vperm.xlu0 %1079, %v1042
        %v1081 = vpop.permute.xlu0 %1080
        %1084 = vset.pattern.permute.xlu0 0
        %1085 = vperm.xlu0 %1084, %v1043
        %v1086 = vpop.permute.xlu0 %1085
        %v1088 = vmul.f32 %v1081, %v1076
        %v1089 = vmul.f32 %v1086, %v1077
        %s1090 = sadd.f32 %s1074, 1e-07
        %v1091 = vstv %s1090
        %v1092 = vrsqrt.pop %v1091
        %s1093 = vtos %v1092
        %v1094 = vstv %s1093
        %v1095 = vmul.f32 %v1088, %v1094
        %v1096 = vmul.f32 %v1089, %v1094
        %1098 = vset.pattern.permute.xlu0 0
        %1099 = vperm.xlu0 %1098, %v1045
        %v1100 = vpop.permute.xlu0 %1099
        %1103 = vset.pattern.permute.xlu0 0
        %1104 = vperm.xlu0 %1103, %v1046
        %v1105 = vpop.permute.xlu0 %1104
        %v1107 = vadd.f32 %v1095, %v1100
        %v1108 = vadd.f32 %v1096, %v1105
        %v1109 = vmul.f32 %v1107, %v550
        %v1110 = vmul.f32 %v1108, %v550
        %s1111 = scalar_lea.vmem %s8, 16
        %v1112 = vld [vmem:[%s1111] sm:$0xff]
        %v1113 = vld [vmem:[%s1111 + $0x8] sm:$0xff]
        %1114 = vrot.lane.b32.xlu0 %v1109, 2
        %v1115 = vpop.permute.xlu0 %1114
        %1116 = vrot.lane.b32.xlu0 %v1110, 2
        %v1117 = vpop.permute.xlu0 %1116
        %1119 = vset.pattern.permute.xlu0 0
        %1120 = vperm.xlu0 %1119, %v1112
        %v1121 = vpop.permute.xlu0 %1120
        %1124 = vset.pattern.permute.xlu0 0
        %1125 = vperm.xlu0 %1124, %v1113
        %v1126 = vpop.permute.xlu0 %1125
        %v1128 = vmul.f32 %v1121, %v1115
        %v1129 = vmul.f32 %v1126, %v1117
        %1130 = vset.pattern.permute.xlu0 1
        %1131 = vperm.xlu0 %1130, %v1112
        %v1132 = vpop.permute.xlu0 %1131
        %1134 = vset.pattern.permute.xlu0 1
        %1135 = vperm.xlu0 %1134, %v1113
        %v1136 = vpop.permute.xlu0 %1135
        %v1138 = vmul.f32 %v1132, %v1109
        %v1139 = vmul.f32 %v1136, %v1110
        %v1140 = vadd.f32 %v1128, %v1138
        %v1141 = vadd.f32 %v1129, %v1139
        %1142 = vrot.lane.b32.xlu0 %v1109, 126
        %v1143 = vpop.permute.xlu0 %1142
        %1144 = vrot.lane.b32.xlu0 %v1110, 126
        %v1145 = vpop.permute.xlu0 %1144
        %1146 = vset.pattern.permute.xlu0 2
        %1147 = vperm.xlu0 %1146, %v1112
        %v1148 = vpop.permute.xlu0 %1147
        %1150 = vset.pattern.permute.xlu0 2
        %1151 = vperm.xlu0 %1150, %v1113
        %v1152 = vpop.permute.xlu0 %1151
        %v1154 = vmul.f32 %v1148, %v1143
        %v1155 = vmul.f32 %v1152, %v1145
        %v1156 = vadd.f32 %v1140, %v1154
        %v1157 = vadd.f32 %v1141, %v1155
        %s1158 = scalar_lea.vmem %s9, 16
        %v1159 = vld [vmem:[%s1158] sm:$0xff]
        %v1160 = vld [vmem:[%s1158 + $0x8] sm:$0xff]
        %1162 = vset.pattern.permute.xlu0 0
        %1163 = vperm.xlu0 %1162, %v1159
        %v1164 = vpop.permute.xlu0 %1163
        %1167 = vset.pattern.permute.xlu0 0
        %1168 = vperm.xlu0 %1167, %v1160
        %v1169 = vpop.permute.xlu0 %1168
        %v1171 = vadd.f32 %v1156, %v1164
        %v1172 = vadd.f32 %v1157, %v1169
        %s1173 = scalar_lea.vmem %s10, 1
        %v1174 = vld [vmem:[%s1173] sm:$0x1]
        %vm1175 = vcmp.gt.f32.partialorder %v1171, 0.0
        %vm1176 = vcmp.gt.f32.partialorder %v1172, 0.0
        %v1178 = vlaneseq
        %v1179 = vshrl.u32 %v1178, 7
        %v1180 = vsub.s32 0, %v1179
        %v1181 = vrot.slane %v1174, %v1180
        %1182 = vset.pattern.permute.xlu0 0
        %1183 = vperm.xlu0 %1182, %v1181
        %v1184 = vpop.permute.xlu0 %1183
        %v1186 = vmul.f32 %v1184, %v1171
        %v1187 = vmul.f32 %v1184, %v1172
        %v1188 = vsel %vm1175, %v1171, %v1186
        %v1189 = vsel %vm1176, %v1172, %v1187
        %s1190 = scalar_lea.vmem %s11, 16
        %v1191 = vld [vmem:[%s1190] sm:$0xff]
        %v1192 = vld [vmem:[%s1190 + $0x8] sm:$0xff]
        %s1193 = scalar_lea.vmem %s12, 16
        %v1194 = vld [vmem:[%s1193] sm:$0xff]
        %v1195 = vld [vmem:[%s1193 + $0x8] sm:$0xff]
        %v1196 = vmul.f32 %v1188, %v550
        %v1197 = vmul.f32 %v1189, %v550
        %v1198 = vadd.f32 %v1196, %v1197
        %1199 = vadd.xlane.f32.xlu0 %v1198
        %v1200 = vpop.xlane.xlu0 %1199
        %v1201 = vrot.slane %v1200, 4
        %v1202 = vadd.f32 %v1200, %v1201
        %v1203 = vrot.slane %v1202, 2
        %v1204 = vadd.f32 %v1202, %v1203
        %v1205 = vrot.slane %v1204, 1
        %v1206 = vadd.f32 %v1204, %v1205
        %s1207 = vtos %v1206
        %v1208 = vmul.f32 %v1196, %v1196
        %v1209 = vmul.f32 %v1197, %v1197
        %v1210 = vadd.f32 %v1208, %v1209
        %1211 = vadd.xlane.f32.xlu0 %v1210
        %v1212 = vpop.xlane.xlu0 %1211
        %v1213 = vrot.slane %v1212, 4
        %v1214 = vadd.f32 %v1212, %v1213
        %v1215 = vrot.slane %v1214, 2
        %v1216 = vadd.f32 %v1214, %v1215
        %v1217 = vrot.slane %v1216, 1
        %v1218 = vadd.f32 %v1216, %v1217
        %s1219 = vtos %v1218
        %s1220 = smul.f32 %s1207, 0.00390625
        %s1221 = smul.f32 %s1219, 0.00390625
        %s1222 = smul.f32 %s1220, %s1220
        %s1223 = ssub.f32 %s1221, %s1222
        %v1224 = vstv %s1220
        %v1225 = vsub.f32 %v1188, %v1224
        %v1226 = vsub.f32 %v1189, %v1224
        %1228 = vset.pattern.permute.xlu0 0
        %1229 = vperm.xlu0 %1228, %v1191
        %v1230 = vpop.permute.xlu0 %1229
        %1233 = vset.pattern.permute.xlu0 0
        %1234 = vperm.xlu0 %1233, %v1192
        %v1235 = vpop.permute.xlu0 %1234
        %v1237 = vmul.f32 %v1230, %v1225
        %v1238 = vmul.f32 %v1235, %v1226
        %s1239 = sadd.f32 %s1223, 1e-07
        %v1240 = vstv %s1239
        %v1241 = vrsqrt.pop %v1240
        %s1242 = vtos %v1241
        %v1243 = vstv %s1242
        %v1244 = vmul.f32 %v1237, %v1243
        %v1245 = vmul.f32 %v1238, %v1243
        %1247 = vset.pattern.permute.xlu0 0
        %1248 = vperm.xlu0 %1247, %v1194
        %v1249 = vpop.permute.xlu0 %1248
        %1252 = vset.pattern.permute.xlu0 0
        %1253 = vperm.xlu0 %1252, %v1195
        %v1254 = vpop.permute.xlu0 %1253
        %v1256 = vadd.f32 %v1244, %v1249
        %v1257 = vadd.f32 %v1245, %v1254
        %s1258 = scalar_lea.vmem %s13, 4
        %v1259 = vld [vmem:[%s1258] sm:$0xf]
        %v1260 = vpack.c.bf16 %v1257, %v1256
        %s1261 = scalar_lea.vmem %s14, 8
        %v1262 = vld [vmem:[%s1261] sm:$0xff]
        %1264 = vset.pattern.permute.xlu0 0
        %1265 = vperm.xlu0 %1264, %v1262
        %v1266 = vpop.permute.xlu0 %1265
        %v1269 = vsel %vm909, %v1259, 0
        %1271 = vmatprep.subr.bf16.mxu0 0
        %1272 = vmatpush1.bf16.msra.mxu0 %v1260
        %1273 = vmatprep.subr.bf16.mxu0 0
        %1274 = vmatpush1.bf16.msra.mxu0 0
        %1275 = vmatprep.subr.bf16.mxu0 0
        %1276 = vmatpush1.bf16.msra.mxu0 0
        %1277 = vmatprep.subr.bf16.mxu0 0
        %1278 = vmatpush1.bf16.msra.mxu0 0
        %1279 = vmatprep.subr.bf16.mxu0 0
        %1280 = vmatpush1.bf16.msra.mxu0 0
        %1281 = vmatprep.subr.bf16.mxu0 0
        %1282 = vmatpush1.bf16.msra.mxu0 0
        %1283 = vmatprep.subr.bf16.mxu0 0
        %1284 = vmatpush1.bf16.msra.mxu0 0
        %1285 = vmatprep.subr.bf16.mxu0 0
        %1286 = vmatpush1.bf16.msra.mxu0 0
        %1287 = vmatprep.subr.bf16.mxu0 0
        %1288 = vmatpush1.bf16.msra.mxu0 0
        %1289 = vmatprep.subr.bf16.mxu0 0
        %1290 = vmatpush1.bf16.msra.mxu0 0
        %1291 = vmatprep.subr.bf16.mxu0 0
        %1292 = vmatpush1.bf16.msra.mxu0 0
        %1293 = vmatprep.subr.bf16.mxu0 0
        %1294 = vmatpush1.bf16.msra.mxu0 0
        %1295 = vmatprep.subr.bf16.mxu0 0
        %1296 = vmatpush1.bf16.msra.mxu0 0
        %1297 = vmatprep.subr.bf16.mxu0 0
        %1298 = vmatpush1.bf16.msra.mxu0 0
        %1299 = vmatprep.subr.bf16.mxu0 0
        %1300 = vmatpush1.bf16.msra.mxu0 0
        %1301 = vmatprep.subr.bf16.mxu0 0
        %1302 = vmatpush1.bf16.msra.mxu0 0
        %1303 = vmatprep.mubr.bf16.mxu0 0
        %1304 = vmatmul.mubr.bf16.gmra.mrb[0].mxu0 %v1269
        %v1305 = vpop.f32.mrb[0].mxu0
        %v1306 = vadd.f32 %v1266, %v1305
        %v1307 = vpop.f32.mrb[0].mxu0
        %v1308 = vpop.f32.mrb[0].mxu0
        %v1309 = vpop.f32.mrb[0].mxu0
        %1310 = vdwg.mxu0
        %v1311 = vadd.f32 %v954, %v1306
        %v1312 = vmul.f32 %v1311, %v550
        %v1313 = vld [vmem:[%s15] sm:$0xf]
        %v1314 = vld [vmem:[%s15 + $0x4] sm:$0xf]
        %v1315 = vld [vmem:[%s15 + $0x8] sm:$0xf]
        %v1316 = vld [vmem:[%s15 + $0xc] sm:$0xf]
        %v1317 = vpack.c.bf16 %v1312, %v1312
        %v1318 = vld [vmem:[%s16] sm:$0xff]
        %v1319 = vld [vmem:[%s16 + $0x8] sm:$0xff]
        %v1320 = vld [vmem:[%s16 + $0x10] sm:$0xff]
        %v1321 = vld [vmem:[%s16 + $0x18] sm:$0xff]
        %1323 = vset.pattern.permute.xlu0 0
        %1324 = vperm.xlu0 %1323, %v1318
        %v1325 = vpop.permute.xlu0 %1324
        %1328 = vset.pattern.permute.xlu0 0
        %1329 = vperm.xlu0 %1328, %v1319
        %v1330 = vpop.permute.xlu0 %1329
        %1333 = vset.pattern.permute.xlu0 0
        %1334 = vperm.xlu0 %1333, %v1320
        %v1335 = vpop.permute.xlu0 %1334
        %1338 = vset.pattern.permute.xlu0 0
        %1339 = vperm.xlu0 %1338, %v1321
        %v1340 = vpop.permute.xlu0 %1339
        %v1346 = vunpack.c.l.b16 %v1313
        %v1347 = vunpack.c.l.b16 %v1314
        %v1348 = vunpack.c.l.b16 %v1315
        %v1349 = vunpack.c.l.b16 %v1316
        %v1350 = vpack.c.b16 %v1347, %v1346
        %v1351 = vpack.c.b16 %v1349, %v1348
        %v1353 = vsel %vm559, %v1350, 0
        %v1356 = vsel %vm559, %v1351, 0
        %v1359 = vsel %vm563, %v1317, 0
        %1361 = vmatprep.subr.bf16.mxu0 0
        %1362 = vmatpush1.bf16.msra.mxu0 %v1359
        %1363 = vmatprep.subr.bf16.mxu0 0
        %1364 = vmatpush1.bf16.msra.mxu0 0
        %1365 = vmatprep.subr.bf16.mxu0 0
        %1366 = vmatpush1.bf16.msra.mxu0 0
        %1367 = vmatprep.subr.bf16.mxu0 0
        %1368 = vmatpush1.bf16.msra.mxu0 0
        %1369 = vmatprep.subr.bf16.mxu0 0
        %1370 = vmatpush1.bf16.msra.mxu0 0
        %1371 = vmatprep.subr.bf16.mxu0 0
        %1372 = vmatpush1.bf16.msra.mxu0 0
        %1373 = vmatprep.subr.bf16.mxu0 0
        %1374 = vmatpush1.bf16.msra.mxu0 0
        %1375 = vmatprep.subr.bf16.mxu0 0
        %1376 = vmatpush1.bf16.msra.mxu0 0
        %1377 = vmatprep.subr.bf16.mxu0 0
        %1378 = vmatpush1.bf16.msra.mxu0 0
        %1379 = vmatprep.subr.bf16.mxu0 0
        %1380 = vmatpush1.bf16.msra.mxu0 0
        %1381 = vmatprep.subr.bf16.mxu0 0
        %1382 = vmatpush1.bf16.msra.mxu0 0
        %1383 = vmatprep.subr.bf16.mxu0 0
        %1384 = vmatpush1.bf16.msra.mxu0 0
        %1385 = vmatprep.subr.bf16.mxu0 0
        %1386 = vmatpush1.bf16.msra.mxu0 0
        %1387 = vmatprep.subr.bf16.mxu0 0
        %1388 = vmatpush1.bf16.msra.mxu0 0
        %1389 = vmatprep.subr.bf16.mxu0 0
        %1390 = vmatpush1.bf16.msra.mxu0 0
        %1391 = vmatprep.subr.bf16.mxu0 0
        %1392 = vmatpush1.bf16.msra.mxu0 0
        %1393 = vmatprep.mubr.bf16.mxu0 0
        %1394 = vmatmul.mubr.bf16.gmra.mrb[0].mxu0 %v1353
        %v1395 = vpop.f32.mrb[0].mxu0
        %v1396 = vadd.f32 %v1325, %v1395
        %v1397 = vpop.f32.mrb[0].mxu0
        %v1398 = vpop.f32.mrb[0].mxu0
        %v1399 = vadd.f32 %v1330, %v1398
        %v1400 = vpop.f32.mrb[0].mxu0
        %1401 = vmatprep.mubr.bf16.mxu0 0
        %1402 = vmatmul.mubr.bf16.gmra.mrb[0].mxu0 %v1356
        %v1403 = vpop.f32.mrb[0].mxu0
        %v1404 = vadd.f32 %v1335, %v1403
        %v1405 = vpop.f32.mrb[0].mxu0
        %v1406 = vpop.f32.mrb[0].mxu0
        %v1407 = vadd.f32 %v1340, %v1406
        %v1408 = vpop.f32.mrb[0].mxu0
        %1409 = vdwg.mxu0
        %v1410 = vmax.f32 %v1396, 0.0
        %v1411 = vmax.f32 %v1399, 0.0
        %v1412 = vmax.f32 %v1404, 0.0
        %v1413 = vmax.f32 %v1407, 0.0
        %v1414 = vmax.f32 %v1410, %v1412
        %v1415 = vmax.f32 %v1411, %v1413
        %v1416 = vsub.f32 %v1410, %v1414
        %v1417 = vsub.f32 %v1411, %v1415
        %v1418 = vmul.f32 %v1416, 1.442695
        %v1419 = vpow.pop %v1418
        %v1420 = vmul.f32 %v1417, 1.442695
        %v1421 = vpow.pop %v1420
        %v1422 = vsub.f32 %v1412, %v1414
        %v1423 = vsub.f32 %v1413, %v1415
        %v1424 = vmul.f32 %v1422, 1.442695
        %v1425 = vpow.pop %v1424
        %v1426 = vmul.f32 %v1423, 1.442695
        %v1427 = vpow.pop %v1426
        %v1428 = vadd.f32 %v1419, %v1425
        %v1429 = vadd.f32 %v1421, %v1427
        %v1430 = vrcp.pop %v1428
        %v1431 = vrcp.pop %v1429
        %v1432 = vmul.f32 %v1428, %v1430
        %v1433 = vmul.f32 %v1429, %v1431
        %v1434 = vsub.f32 2.0, %v1432
        %v1435 = vsub.f32 2.0, %v1433
        %v1436 = vmul.f32 %v1430, %v1434
        %v1437 = vmul.f32 %v1431, %v1435
        %v1438 = vmul.f32 %v1419, %v1436
        %v1439 = vmul.f32 %v1421, %v1437
        %1440 = vst [vmem:[%s539] sm:$0xff] %v1438
        %1441 = vst [vmem:[%s539 + $0x8] sm:$0xff] %v1439
        %v1442 = vmul.f32 %v1425, %v1436
        %v1443 = vmul.f32 %v1427, %v1437
        %s1444 = scalar_lea.vmem %s539, 16 [#allocation2]
        %1445 = vst [vmem:[%s1444] sm:$0xff] %v1442
        %1446 = vst [vmem:[%s1444 + $0x8] sm:$0xff] %v1443
        %s1447 = sand.u32 %s401, 1
        %s1448 = scalar_lea.sflag [#allocation3], %s1447
        %s1449 = sand.u32 %s401, 1
        %s1450 = smul.addr %s1449, 32
        %s1451 = scalar_lea.vmem [#allocation2], %s1450
        // Predicated region
        $region89: #{tpu_custom_call.1} parent=87 // pred_check
          %p1452 = pneg %p411
        $region90: #{tpu_custom_call.1} parent=87 // pred_check_branch
          %1454 = sbr.rel (%p1452) target = $region92
        $region91: #{tpu_custom_call.1} parent=87 // pred_region
          %s1456 = ssub.s32 512, 512
          %1457 = vsyncadd %s1448, %s1456
          %s1458 = smul.addr %s31, 4
          %s1459 = smul.addr %s1458, 128
          %s1460 = scalar_lea.hbm %s17, %s1459
          %s1461 = sshll.u32 %s1451, 4
          %s1462 = int_to_ptr.vmem [resolvable:$true] %s1461
          %1467 = dma.vmem_to_hbm [thread:$0]  %s1462, 512, %s1460, %s1448, 128, 128, 8
        $region92: #{tpu_custom_call.1} parent=87 // pred_fallthru
          _
      $region88: #{tpu_custom_call.1} parent=5 // pred_fallthru
        _
      %p1468 = scmp.le.s32.totalorder 2, %s26
      // Predicated region
      $region93: #{tpu_custom_call.1} parent=5 // pred_check
        %p1469 = pneg %p1468
      $region94: #{tpu_custom_call.1} parent=5 // pred_check_branch
        %1471 = sbr.rel (%p1469) target = $region96
      $region95: #{tpu_custom_call.1} parent=5 // pred_region
        %s1472 = ssub.s32 %s26, 2
        // Predicated region
        $region97: #{tpu_custom_call.1} parent=95 // pred_check
          %p1473 = pneg %p417
        $region98: #{tpu_custom_call.1} parent=95 // pred_check_branch
          %1475 = sbr.rel (%p1473) target = $region100
        $region99: #{tpu_custom_call.1} parent=95 // pred_region
          %s1476 = sand.u32 %s402, 1
          %s1477 = scalar_lea.sflag [#allocation3], %s1476
          %s1478 = sand.u32 %s402, 1
          %s1479 = smul.addr %s1478, 32
          %s1480 = scalar_lea.vmem [#allocation2], %s1479
          %1481 = dma.done %s1477, 512
        $region100: #{tpu_custom_call.1} parent=95 // pred_fallthru
          _
      $region96: #{tpu_custom_call.1} parent=5 // pred_fallthru
        _
    $region6: #{tpu_custom_call.1} parent=1 // loop_footer
      %s30 = sadd.s32 1, %s26
    $region7: #{tpu_custom_call.1} parent=1 // loop_footer_branch
      %25 = sbr.rel target = $region3
    $region8: #{tpu_custom_call.1} parent=1 // loop_exit
      _
    %1482 = vsyncpa [#allocation3], 1
    %s1483 = scalar_lea.sflag [#allocation3], 1
    %1484 = vsyncpa %s1483, 1

// kernel: tpu_custom_call.1
$region0: #{tpu_custom_call.1}
  #allocation0 [shape = 'u32[]', space=smem, size = 0x4, offset = 0x4, fixed_abs, tag = 'smem constant byte address 0x4 - core index']
  #allocation1 [shape = 'u32[144,128]{1,0:T(1,128)}', space=vmem, size = 0x12000, scoped, tag = 'internal scratch']
  %s0 = inlined_call_operand.vmem [shape: f32[2,8,128], index: 0, kind: input, shape index: {}]
  %s1 = inlined_call_operand.vmem [shape: bf16[8,8], index: 1, kind: input, shape index: {}]
  %s2 = inlined_call_operand.vmem [shape: f32[8,1], index: 2, kind: input, shape index: {}]
  %s3 = inlined_call_operand.vmem [shape: bf16[2,16,8], index: 3, kind: input, shape index: {}]
  %s4 = inlined_call_operand.vmem [shape: f32[2,16,1], index: 4, kind: input, shape index: {}]
  %s5 = inlined_call_operand.vmem [shape: f32[2,1,1], index: 5, kind: input, shape index: {}]
  %s6 = inlined_call_operand.vmem [shape: f32[2,16,1], index: 6, kind: input, shape index: {}]
  %s7 = inlined_call_operand.vmem [shape: f32[2,16,1], index: 7, kind: input, shape index: {}]
  %s8 = inlined_call_operand.vmem [shape: f32[2,16,3], index: 8, kind: input, shape index: {}]
  %s9 = inlined_call_operand.vmem [shape: f32[2,16,1], index: 9, kind: input, shape index: {}]
  %s10 = inlined_call_operand.vmem [shape: f32[2,1,1], index: 10, kind: input, shape index: {}]
  %s11 = inlined_call_operand.vmem [shape: f32[2,16,1], index: 11, kind: input, shape index: {}]
  %s12 = inlined_call_operand.vmem [shape: f32[2,16,1], index: 12, kind: input, shape index: {}]
  %s13 = inlined_call_operand.vmem [shape: bf16[2,8,16], index: 13, kind: input, shape index: {}]
  %s14 = inlined_call_operand.vmem [shape: f32[2,8,1], index: 14, kind: input, shape index: {}]
  %s15 = inlined_call_operand.vmem [shape: bf16[32,8], index: 15, kind: input, shape index: {}]
  %s16 = inlined_call_operand.vmem [shape: f32[32,1], index: 16, kind: input, shape index: {}]
  %s17 = inlined_call_operand.hbm [shape: f32[2,2,16,128], index: 17, kind: output, shape index: {}]
  %s18 = sld [smem:[#allocation0]]
  $region101: #{tpu_custom_call.1} parent=0
    _
  %s20 = ssub.s32 1, %s18
  %s21 = scalar_select 0, %s20, %s18
  $region1: #{tpu_custom_call.1} parent=0
    #allocation2 [shape = 'u8[32768]{0}', space=vmem, size = 0x8000, scoped, tag = 'output window, operand 0']
    #allocation3 [shape = 's32[2]{0}', space=sflag, size = 0x8, scoped, tag = 'scoped memory for tpu_custom_call.1']
    %22 = vsyncpa [#allocation3], 0
    %s23 = scalar_lea.sflag [#allocation3], 1
    %24 = vsyncpa %s23, 0
    loop: start=0, step=1, limit=4
    $region2: #{tpu_custom_call.1} parent=1 // loop_pre_header
      _
    $region3: #{tpu_custom_call.1} parent=1 // loop_header
      %s26 = sphi 0, %s30
      %p27 = scmp.ge.s32.totalorder %s26, 4
      %s36 = sphi 0, %s38
      %s39 = sphi 0, %s36
      %s40 = sphi 0, %s39
      %s56 = sphi 0, %s40
      %s60 = sphi 0, %s60
      %s62 = sphi 0, %s60
      %s63 = sphi 0, %s62
      %s77 = sphi 0, %s63
      %s81 = sphi 0, %s81
      %s83 = sphi 0, %s81
      %s84 = sphi 0, %s83
      %s98 = sphi 0, %s84
      %s102 = sphi 0, %s102
      %s104 = sphi 0, %s102
      %s105 = sphi 0, %s104
      %s119 = sphi 0, %s105
      %s123 = sphi 0, %s123
      %s125 = sphi 0, %s123
      %s126 = sphi 0, %s125
      %s140 = sphi 0, %s126
      %s144 = sphi 0, %s144
      %s146 = sphi 0, %s144
      %s147 = sphi 0, %s146
      %s161 = sphi 0, %s147
      %s165 = sphi 0, %s165
      %s167 = sphi 0, %s165
      %s168 = sphi 0, %s167
      %s182 = sphi 0, %s168
      %s186 = sphi 0, %s186
      %s188 = sphi 0, %s186
      %s189 = sphi 0, %s188
      %s203 = sphi 0, %s189
      %s207 = sphi 0, %s207
      %s209 = sphi 0, %s207
      %s210 = sphi 0, %s209
      %s224 = sphi 0, %s210
      %s228 = sphi 0, %s228
      %s230 = sphi 0, %s228
      %s231 = sphi 0, %s230
      %s245 = sphi 0, %s231
      %s249 = sphi 0, %s249
      %s251 = sphi 0, %s249
      %s252 = sphi 0, %s251
      %s266 = sphi 0, %s252
      %s270 = sphi 0, %s270
      %s272 = sphi 0, %s270
      %s273 = sphi 0, %s272
      %s287 = sphi 0, %s273
      %s291 = sphi 0, %s291
      %s293 = sphi 0, %s291
      %s294 = sphi 0, %s293
      %s308 = sphi 0, %s294
      %s312 = sphi 0, %s312
      %s314 = sphi 0, %s312
      %s315 = sphi 0, %s314
      %s329 = sphi 0, %s315
      %s333 = sphi 0, %s333
      %s335 = sphi 0, %s333
      %s336 = sphi 0, %s335
      %s350 = sphi 0, %s336
      %s354 = sphi 0, %s354
      %s356 = sphi 0, %s354
      %s357 = sphi 0, %s356
      %s371 = sphi 0, %s357
      %s375 = sphi 0, %s375
      %s377 = sphi 0, %s375
      %s378 = sphi 0, %s377
      %s392 = sphi 0, %s378
      %s398 = sphi 0, %s400
      %s401 = sphi 0, %s398
      %s402 = sphi 0, %s401
      %s418 = sphi 0, %s402
    $region4: #{tpu_custom_call.1} parent=1 // loop_header_branch
      %29 = sbr.rel (%p27) target = $region8
    $region5: #{tpu_custom_call.1} parent=1 // loop_body
      %s31 = ssub.s32 %s26, 1
      %s32 = ssub.s32 %s26, 2
      %s33 = sadd.s32 %s26, 1
      %s34 = ssub.s32 %s26, %s33
      %p35 = scmp.eq.s32.totalorder %s34, 0
      %s37 = sadd.s32 %s36, 1
      %s38 = scalar_select %p35, %s36, %s37
      %p41 = pneg %p35
      %p42 = scmp.eq.s32.totalorder %s26, 1
      %p43 = por %p41, %p42
      %p44 = scmp.ne.s32.totalorder %s36, %s39
      %p45 = scmp.eq.s32.totalorder %s26, 0
      %p46 = por %p44, %p45
      %p47 = scmp.ne.s32.totalorder %s36, %s39
      %p48 = scmp.eq.s32.totalorder %s31, 1
      %p49 = por %p47, %p48
      %p50 = scmp.ne.s32.totalorder %s39, %s40
      %p51 = scmp.eq.s32.totalorder %s31, 0
      %p52 = por %p50, %p51
      %p53 = scmp.ne.s32.totalorder %s39, %s40
      %p54 = scmp.eq.s32.totalorder %s32, 1
      %p55 = por %p53, %p54
      %p57 = scmp.ne.s32.totalorder %s40, %s56
      %p58 = scmp.eq.s32.totalorder %s32, 0
      %p59 = por %p57, %p58
      %s61 = sadd.s32 %s60, 1
      %p64 = scmp.eq.s32.totalorder %s26, 1
      %p65 = scmp.ne.s32.totalorder %s60, %s62
      %p66 = scmp.eq.s32.totalorder %s26, 0
      %p67 = por %p65, %p66
      %p68 = scmp.ne.s32.totalorder %s60, %s62
      %p69 = scmp.eq.s32.totalorder %s31, 1
      %p70 = por %p68, %p69
      %p71 = scmp.ne.s32.totalorder %s62, %s63
      %p72 = scmp.eq.s32.totalorder %s31, 0
      %p73 = por %p71, %p72
      %p74 = scmp.ne.s32.totalorder %s62, %s63
      %p75 = scmp.eq.s32.totalorder %s32, 1
      %p76 = por %p74, %p75
      %p78 = scmp.ne.s32.totalorder %s63, %s77
      %p79 = scmp.eq.s32.totalorder %s32, 0
      %p80 = por %p78, %p79
      %s82 = sadd.s32 %s81, 1
      %p85 = scmp.eq.s32.totalorder %s26, 1
      %p86 = scmp.ne.s32.totalorder %s81, %s83
      %p87 = scmp.eq.s32.totalorder %s26, 0
      %p88 = por %p86, %p87
      %p89 = scmp.ne.s32.totalorder %s81, %s83
      %p90 = scmp.eq.s32.totalorder %s31, 1
      %p91 = por %p89, %p90
      %p92 = scmp.ne.s32.totalorder %s83, %s84
      %p93 = scmp.eq.s32.totalorder %s31, 0
      %p94 = por %p92, %p93
      %p95 = scmp.ne.s32.totalorder %s83, %s84
      %p96 = scmp.eq.s32.totalorder %s32, 1
      %p97 = por %p95, %p96
      %p99 = scmp.ne.s32.totalorder %s84, %s98
      %p100 = scmp.eq.s32.totalorder %s32, 0
      %p101 = por %p99, %p100
      %s103 = sadd.s32 %s102, 1
      %p106 = scmp.eq.s32.totalorder %s26, 1
      %p107 = scmp.ne.s32.totalorder %s102, %s104
      %p108 = scmp.eq.s32.totalorder %s26, 0
      %p109 = por %p107, %p108
      %p110 = scmp.ne.s32.totalorder %s102, %s104
      %p111 = scmp.eq.s32.totalorder %s31, 1
      %p112 = por %p110, %p111
      %p113 = scmp.ne.s32.totalorder %s104, %s105
      %p114 = scmp.eq.s32.totalorder %s31, 0
      %p115 = por %p113, %p114
      %p116 = scmp.ne.s32.totalorder %s104, %s105
      %p117 = scmp.eq.s32.totalorder %s32, 1
      %p118 = por %p116, %p117
      %p120 = scmp.ne.s32.totalorder %s105, %s119
      %p121 = scmp.eq.s32.totalorder %s32, 0
      %p122 = por %p120, %p121
      %s124 = sadd.s32 %s123, 1
      %p127 = scmp.eq.s32.totalorder %s26, 1
      %p128 = scmp.ne.s32.totalorder %s123, %s125
      %p129 = scmp.eq.s32.totalorder %s26, 0
      %p130 = por %p128, %p129
      %p131 = scmp.ne.s32.totalorder %s123, %s125
      %p132 = scmp.eq.s32.totalorder %s31, 1
      %p133 = por %p131, %p132
      %p134 = scmp.ne.s32.totalorder %s125, %s126
      %p135 = scmp.eq.s32.totalorder %s31, 0
      %p136 = por %p134, %p135
      %p137 = scmp.ne.s32.totalorder %s125, %s126
      %p138 = scmp.eq.s32.totalorder %s32, 1
      %p139 = por %p137, %p138
      %p141 = scmp.ne.s32.totalorder %s126, %s140
      %p142 = scmp.eq.s32.totalorder %s32, 0
      %p143 = por %p141, %p142
      %s145 = sadd.s32 %s144, 1
      %p148 = scmp.eq.s32.totalorder %s26, 1
      %p149 = scmp.ne.s32.totalorder %s144, %s146
      %p150 = scmp.eq.s32.totalorder %s26, 0
      %p151 = por %p149, %p150
      %p152 = scmp.ne.s32.totalorder %s144, %s146
      %p153 = scmp.eq.s32.totalorder %s31, 1
      %p154 = por %p152, %p153
      %p155 = scmp.ne.s32.totalorder %s146, %s147
      %p156 = scmp.eq.s32.totalorder %s31, 0
      %p157 = por %p155, %p156
      %p158 = scmp.ne.s32.totalorder %s146, %s147
      %p159 = scmp.eq.s32.totalorder %s32, 1
      %p160 = por %p158, %p159
      %p162 = scmp.ne.s32.totalorder %s147, %s161
      %p163 = scmp.eq.s32.totalorder %s32, 0
      %p164 = por %p162, %p163
      %s166 = sadd.s32 %s165, 1
      %p169 = scmp.eq.s32.totalorder %s26, 1
      %p170 = scmp.ne.s32.totalorder %s165, %s167
      %p171 = scmp.eq.s32.totalorder %s26, 0
      %p172 = por %p170, %p171
      %p173 = scmp.ne.s32.totalorder %s165, %s167
      %p174 = scmp.eq.s32.totalorder %s31, 1
      %p175 = por %p173, %p174
      %p176 = scmp.ne.s32.totalorder %s167, %s168
      %p177 = scmp.eq.s32.totalorder %s31, 0
      %p178 = por %p176, %p177
      %p179 = scmp.ne.s32.totalorder %s167, %s168
      %p180 = scmp.eq.s32.totalorder %s32, 1
      %p181 = por %p179, %p180
      %p183 = scmp.ne.s32.totalorder %s168, %s182
      %p184 = scmp.eq.s32.totalorder %s32, 0
      %p185 = por %p183, %p184
      %s187 = sadd.s32 %s186, 1
      %p190 = scmp.eq.s32.totalorder %s26, 1
      %p191 = scmp.ne.s32.totalorder %s186, %s188
      %p192 = scmp.eq.s32.totalorder %s26, 0
      %p193 = por %p191, %p192
      %p194 = scmp.ne.s32.totalorder %s186, %s188
      %p195 = scmp.eq.s32.totalorder %s31, 1
      %p196 = por %p194, %p195
      %p197 = scmp.ne.s32.totalorder %s188, %s189
      %p198 = scmp.eq.s32.totalorder %s31, 0
      %p199 = por %p197, %p198
      %p200 = scmp.ne.s32.totalorder %s188, %s189
      %p201 = scmp.eq.s32.totalorder %s32, 1
      %p202 = por %p200, %p201
      %p204 = scmp.ne.s32.totalorder %s189, %s203
      %p205 = scmp.eq.s32.totalorder %s32, 0
      %p206 = por %p204, %p205
      %s208 = sadd.s32 %s207, 1
      %p211 = scmp.eq.s32.totalorder %s26, 1
      %p212 = scmp.ne.s32.totalorder %s207, %s209
      %p213 = scmp.eq.s32.totalorder %s26, 0
      %p214 = por %p212, %p213
      %p215 = scmp.ne.s32.totalorder %s207, %s209
      %p216 = scmp.eq.s32.totalorder %s31, 1
      %p217 = por %p215, %p216
      %p218 = scmp.ne.s32.totalorder %s209, %s210
      %p219 = scmp.eq.s32.totalorder %s31, 0
      %p220 = por %p218, %p219
      %p221 = scmp.ne.s32.totalorder %s209, %s210
      %p222 = scmp.eq.s32.totalorder %s32, 1
      %p223 = por %p221, %p222
      %p225 = scmp.ne.s32.totalorder %s210, %s224
      %p226 = scmp.eq.s32.totalorder %s32, 0
      %p227 = por %p225, %p226
      %s229 = sadd.s32 %s228, 1
      %p232 = scmp.eq.s32.totalorder %s26, 1
      %p233 = scmp.ne.s32.totalorder %s228, %s230
      %p234 = scmp.eq.s32.totalorder %s26, 0
      %p235 = por %p233, %p234
      %p236 = scmp.ne.s32.totalorder %s228, %s230
      %p237 = scmp.eq.s32.totalorder %s31, 1
      %p238 = por %p236, %p237
      %p239 = scmp.ne.s32.totalorder %s230, %s231
      %p240 = scmp.eq.s32.totalorder %s31, 0
      %p241 = por %p239, %p240
      %p242 = scmp.ne.s32.totalorder %s230, %s231
      %p243 = scmp.eq.s32.totalorder %s32, 1
      %p244 = por %p242, %p243
      %p246 = scmp.ne.s32.totalorder %s231, %s245
      %p247 = scmp.eq.s32.totalorder %s32, 0
      %p248 = por %p246, %p247
      %s250 = sadd.s32 %s249, 1
      %p253 = scmp.eq.s32.totalorder %s26, 1
      %p254 = scmp.ne.s32.totalorder %s249, %s251
      %p255 = scmp.eq.s32.totalorder %s26, 0
      %p256 = por %p254, %p255
      %p257 = scmp.ne.s32.totalorder %s249, %s251
      %p258 = scmp.eq.s32.totalorder %s31, 1
      %p259 = por %p257, %p258
      %p260 = scmp.ne.s32.totalorder %s251, %s252
      %p261 = scmp.eq.s32.totalorder %s31, 0
      %p262 = por %p260, %p261
      %p263 = scmp.ne.s32.totalorder %s251, %s252
      %p264 = scmp.eq.s32.totalorder %s32, 1
      %p265 = por %p263, %p264
      %p267 = scmp.ne.s32.totalorder %s252, %s266
      %p268 = scmp.eq.s32.totalorder %s32, 0
      %p269 = por %p267, %p268
      %s271 = sadd.s32 %s270, 1
      %p274 = scmp.eq.s32.totalorder %s26, 1
      %p275 = scmp.ne.s32.totalorder %s270, %s272
      %p276 = scmp.eq.s32.totalorder %s26, 0
      %p277 = por %p275, %p276
      %p278 = scmp.ne.s32.totalorder %s270, %s272
      %p279 = scmp.eq.s32.totalorder %s31, 1
      %p280 = por %p278, %p279
      %p281 = scmp.ne.s32.totalorder %s272, %s273
      %p282 = scmp.eq.s32.totalorder %s31, 0
      %p283 = por %p281, %p282
      %p284 = scmp.ne.s32.totalorder %s272, %s273
      %p285 = scmp.eq.s32.totalorder %s32, 1
      %p286 = por %p284, %p285
      %p288 = scmp.ne.s32.totalorder %s273, %s287
      %p289 = scmp.eq.s32.totalorder %s32, 0
      %p290 = por %p288, %p289
      %s292 = sadd.s32 %s291, 1
      %p295 = scmp.eq.s32.totalorder %s26, 1
      %p296 = scmp.ne.s32.totalorder %s291, %s293
      %p297 = scmp.eq.s32.totalorder %s26, 0
      %p298 = por %p296, %p297
      %p299 = scmp.ne.s32.totalorder %s291, %s293
      %p300 = scmp.eq.s32.totalorder %s31, 1
      %p301 = por %p299, %p300
      %p302 = scmp.ne.s32.totalorder %s293, %s294
      %p303 = scmp.eq.s32.totalorder %s31, 0
      %p304 = por %p302, %p303
      %p305 = scmp.ne.s32.totalorder %s293, %s294
      %p306 = scmp.eq.s32.totalorder %s32, 1
      %p307 = por %p305, %p306
      %p309 = scmp.ne.s32.totalorder %s294, %s308
      %p310 = scmp.eq.s32.totalorder %s32, 0
      %p311 = por %p309, %p310
      %s313 = sadd.s32 %s312, 1
      %p316 = scmp.eq.s32.totalorder %s26, 1
      %p317 = scmp.ne.s32.totalorder %s312, %s314
      %p318 = scmp.eq.s32.totalorder %s26, 0
      %p319 = por %p317, %p318
      %p320 = scmp.ne.s32.totalorder %s312, %s314
      %p321 = scmp.eq.s32.totalorder %s31, 1
      %p322 = por %p320, %p321
      %p323 = scmp.ne.s32.totalorder %s314, %s315
      %p324 = scmp.eq.s32.totalorder %s31, 0
      %p325 = por %p323, %p324
      %p326 = scmp.ne.s32.totalorder %s314, %s315
      %p327 = scmp.eq.s32.totalorder %s32, 1
      %p328 = por %p326, %p327
      %p330 = scmp.ne.s32.totalorder %s315, %s329
      %p331 = scmp.eq.s32.totalorder %s32, 0
      %p332 = por %p330, %p331
      %s334 = sadd.s32 %s333, 1
      %p337 = scmp.eq.s32.totalorder %s26, 1
      %p338 = scmp.ne.s32.totalorder %s333, %s335
      %p339 = scmp.eq.s32.totalorder %s26, 0
      %p340 = por %p338, %p339
      %p341 = scmp.ne.s32.totalorder %s333, %s335
      %p342 = scmp.eq.s32.totalorder %s31, 1
      %p343 = por %p341, %p342
      %p344 = scmp.ne.s32.totalorder %s335, %s336
      %p345 = scmp.eq.s32.totalorder %s31, 0
      %p346 = por %p344, %p345
      %p347 = scmp.ne.s32.totalorder %s335, %s336
      %p348 = scmp.eq.s32.totalorder %s32, 1
      %p349 = por %p347, %p348
      %p351 = scmp.ne.s32.totalorder %s336, %s350
      %p352 = scmp.eq.s32.totalorder %s32, 0
      %p353 = por %p351, %p352
      %s355 = sadd.s32 %s354, 1
      %p358 = scmp.eq.s32.totalorder %s26, 1
      %p359 = scmp.ne.s32.totalorder %s354, %s356
      %p360 = scmp.eq.s32.totalorder %s26, 0
      %p361 = por %p359, %p360
      %p362 = scmp.ne.s32.totalorder %s354, %s356
      %p363 = scmp.eq.s32.totalorder %s31, 1
      %p364 = por %p362, %p363
      %p365 = scmp.ne.s32.totalorder %s356, %s357
      %p366 = scmp.eq.s32.totalorder %s31, 0
      %p367 = por %p365, %p366
      %p368 = scmp.ne.s32.totalorder %s356, %s357
      %p369 = scmp.eq.s32.totalorder %s32, 1
      %p370 = por %p368, %p369
      %p372 = scmp.ne.s32.totalorder %s357, %s371
      %p373 = scmp.eq.s32.totalorder %s32, 0
      %p374 = por %p372, %p373
      %s376 = sadd.s32 %s375, 1
      %p379 = scmp.eq.s32.totalorder %s26, 1
      %p380 = scmp.ne.s32.totalorder %s375, %s377
      %p381 = scmp.eq.s32.totalorder %s26, 0
      %p382 = por %p380, %p381
      %p383 = scmp.ne.s32.totalorder %s375, %s377
      %p384 = scmp.eq.s32.totalorder %s31, 1
      %p385 = por %p383, %p384
      %p386 = scmp.ne.s32.totalorder %s377, %s378
      %p387 = scmp.eq.s32.totalorder %s31, 0
      %p388 = por %p386, %p387
      %p389 = scmp.ne.s32.totalorder %s377, %s378
      %p390 = scmp.eq.s32.totalorder %s32, 1
      %p391 = por %p389, %p390
      %p393 = scmp.ne.s32.totalorder %s378, %s392
      %p394 = scmp.eq.s32.totalorder %s32, 0
      %p395 = por %p393, %p394
      %s396 = ssub.s32 %s26, %s33
      %p397 = scmp.eq.s32.totalorder %s396, 0
      %s399 = sadd.s32 %s398, 1
      %s400 = scalar_select %p397, %s398, %s399
      %p403 = pneg %p397
      %p404 = scmp.eq.s32.totalorder %s26, 1
      %p405 = por %p403, %p404
      %p406 = scmp.ne.s32.totalorder %s398, %s401
      %p407 = scmp.eq.s32.totalorder %s26, 0
      %p408 = por %p406, %p407
      %p409 = scmp.ne.s32.totalorder %s398, %s401
      %p410 = scmp.eq.s32.totalorder %s31, 1
      %p411 = por %p409, %p410
      %p412 = scmp.ne.s32.totalorder %s401, %s402
      %p413 = scmp.eq.s32.totalorder %s31, 0
      %p414 = por %p412, %p413
      %p415 = scmp.ne.s32.totalorder %s401, %s402
      %p416 = scmp.eq.s32.totalorder %s32, 1
      %p417 = por %p415, %p416
      %p419 = scmp.ne.s32.totalorder %s402, %s418
      %p420 = scmp.eq.s32.totalorder %s32, 0
      %p421 = por %p419, %p420
      %p422 = scmp.le.s32.totalorder 1, %s26
      %p423 = scmp.lt.s32.totalorder %s26, 3
      %p424 = pnand %p422, %p423
      %p425 = pneg %p424
      // Predicated region
      $region9: #{tpu_custom_call.1} parent=5 // pred_check
        _
      $region10: #{tpu_custom_call.1} parent=5 // pred_check_branch
        %427 = sbr.rel (%p424) target = $region12
      $region11: #{tpu_custom_call.1} parent=5 // pred_region
        %s428 = ssub.s32 %s26, 1
        // Predicated region
        $region13: #{tpu_custom_call.1} parent=11 // pred_check
          %p429 = pneg %p73
        $region14: #{tpu_custom_call.1} parent=11 // pred_check_branch
          %431 = sbr.rel (%p429) target = $region16
        $region15: #{tpu_custom_call.1} parent=11 // pred_region
          _
        $region16: #{tpu_custom_call.1} parent=11 // pred_fallthru
          _
        // Predicated region
        $region17: #{tpu_custom_call.1} parent=11 // pred_check
          %p432 = pneg %p94
        $region18: #{tpu_custom_call.1} parent=11 // pred_check_branch
          %434 = sbr.rel (%p432) target = $region20
        $region19: #{tpu_custom_call.1} parent=11 // pred_region
          _
        $region20: #{tpu_custom_call.1} parent=11 // pred_fallthru
          _
        // Predicated region
        $region21: #{tpu_custom_call.1} parent=11 // pred_check
          %p435 = pneg %p115
        $region22: #{tpu_custom_call.1} parent=11 // pred_check_branch
          %437 = sbr.rel (%p435) target = $region24
        $region23: #{tpu_custom_call.1} parent=11 // pred_region
          _
        $region24: #{tpu_custom_call.1} parent=11 // pred_fallthru
          _
        // Predicated region
        $region25: #{tpu_custom_call.1} parent=11 // pred_check
          %p438 = pneg %p136
        $region26: #{tpu_custom_call.1} parent=11 // pred_check_branch
          %440 = sbr.rel (%p438) target = $region28
        $region27: #{tpu_custom_call.1} parent=11 // pred_region
          _
        $region28: #{tpu_custom_call.1} parent=11 // pred_fallthru
          _
        // Predicated region
        $region29: #{tpu_custom_call.1} parent=11 // pred_check
          %p441 = pneg %p157
        $region30: #{tpu_custom_call.1} parent=11 // pred_check_branch
          %443 = sbr.rel (%p441) target = $region32
        $region31: #{tpu_custom_call.1} parent=11 // pred_region
          _
        $region32: #{tpu_custom_call.1} parent=11 // pred_fallthru
          _
        // Predicated region
        $region33: #{tpu_custom_call.1} parent=11 // pred_check
          %p444 = pneg %p178
        $region34: #{tpu_custom_call.1} parent=11 // pred_check_branch
          %446 = sbr.rel (%p444) target = $region36
        $region35: #{tpu_custom_call.1} parent=11 // pred_region
          _
        $region36: #{tpu_custom_call.1} parent=11 // pred_fallthru
          _
        // Predicated region
        $region37: #{tpu_custom_call.1} parent=11 // pred_check
          %p447 = pneg %p199
        $region38: #{tpu_custom_call.1} parent=11 // pred_check_branch
          %449 = sbr.rel (%p447) target = $region40
        $region39: #{tpu_custom_call.1} parent=11 // pred_region
          _
        $region40: #{tpu_custom_call.1} parent=11 // pred_fallthru
          _
        // Predicated region
        $region41: #{tpu_custom_call.1} parent=11 // pred_check
          %p450 = pneg %p220
        $region42: #{tpu_custom_call.1} parent=11 // pred_check_branch
          %452 = sbr.rel (%p450) target = $region44
        $region43: #{tpu_custom_call.1} parent=11 // pred_region
          _
        $region44: #{tpu_custom_call.1} parent=11 // pred_fallthru
          _
        // Predicated region
        $region45: #{tpu_custom_call.1} parent=11 // pred_check
          %p453 = pneg %p241
        $region46: #{tpu_custom_call.1} parent=11 // pred_check_branch
          %455 = sbr.rel (%p453) target = $region48
        $region47: #{tpu_custom_call.1} parent=11 // pred_region
          _
        $region48: #{tpu_custom_call.1} parent=11 // pred_fallthru
          _
        // Predicated region
        $region49: #{tpu_custom_call.1} parent=11 // pred_check
          %p456 = pneg %p262
        $region50: #{tpu_custom_call.1} parent=11 // pred_check_branch
          %458 = sbr.rel (%p456) target = $region52
        $region51: #{tpu_custom_call.1} parent=11 // pred_region
          _
        $region52: #{tpu_custom_call.1} parent=11 // pred_fallthru
          _
        // Predicated region
        $region53: #{tpu_custom_call.1} parent=11 // pred_check
          %p459 = pneg %p283
        $region54: #{tpu_custom_call.1} parent=11 // pred_check_branch
          %461 = sbr.rel (%p459) target = $region56
        $region55: #{tpu_custom_call.1} parent=11 // pred_region
          _
        $region56: #{tpu_custom_call.1} parent=11 // pred_fallthru
          _
        // Predicated region
        $region57: #{tpu_custom_call.1} parent=11 // pred_check
          %p462 = pneg %p304
        $region58: #{tpu_custom_call.1} parent=11 // pred_check_branch
          %464 = sbr.rel (%p462) target = $region60
        $region59: #{tpu_custom_call.1} parent=11 // pred_region
          _
        $region60: #{tpu_custom_call.1} parent=11 // pred_fallthru
          _
        // Predicated region
        $region61: #{tpu_custom_call.1} parent=11 // pred_check
          %p465 = pneg %p325
        $region62: #{tpu_custom_call.1} parent=11 // pred_check_branch
          %467 = sbr.rel (%p465) target = $region64
        $region63: #{tpu_custom_call.1} parent=11 // pred_region
          _
        $region64: #{tpu_custom_call.1} parent=11 // pred_fallthru
          _
        // Predicated region
        $region65: #{tpu_custom_call.1} parent=11 // pred_check
          %p468 = pneg %p346
        $region66: #{tpu_custom_call.1} parent=11 // pred_check_branch
          %470 = sbr.rel (%p468) target = $region68
        $region67: #{tpu_custom_call.1} parent=11 // pred_region
          _
        $region68: #{tpu_custom_call.1} parent=11 // pred_fallthru
          _
        // Predicated region
        $region69: #{tpu_custom_call.1} parent=11 // pred_check
          %p471 = pneg %p367
        $region70: #{tpu_custom_call.1} parent=11 // pred_check_branch
          %473 = sbr.rel (%p471) target = $region72
        $region71: #{tpu_custom_call.1} parent=11 // pred_region
          _
        $region72: #{tpu_custom_call.1} parent=11 // pred_fallthru
          _
        // Predicated region
        $region73: #{tpu_custom_call.1} parent=11 // pred_check
          %p474 = pneg %p388
        $region74: #{tpu_custom_call.1} parent=11 // pred_check_branch
          %476 = sbr.rel (%p474) target = $region76
        $region75: #{tpu_custom_call.1} parent=11 // pred_region
          _
        $region76: #{tpu_custom_call.1} parent=11 // pred_fallthru
          _
      $region12: #{tpu_custom_call.1} parent=5 // pred_fallthru
        _
      %p477 = scmp.lt.s32.totalorder %s26, 2
      // Predicated region
      $region77: #{tpu_custom_call.1} parent=5 // pred_check
        %p478 = pneg %p477
      $region78: #{tpu_custom_call.1} parent=5 // pred_check_branch
        %480 = sbr.rel (%p478) target = $region80
      $region79: #{tpu_custom_call.1} parent=5 // pred_region
        // Predicated region
        $region81: #{tpu_custom_call.1} parent=79 // pred_check
          %p481 = pneg %p46
        $region82: #{tpu_custom_call.1} parent=79 // pred_check_branch
          %483 = sbr.rel (%p481) target = $region84
        $region83: #{tpu_custom_call.1} parent=79 // pred_region
          %p484 = scmp.lt.s32.totalorder %s26, 1
          %s485 = scalar_select %p484, %s26, 1
          %s486 = smul.addr %s485, 8
          %s487 = scalar_lea.vmem %s0, %s486
        $region84: #{tpu_custom_call.1} parent=79 // pred_fallthru
          _
      $region80: #{tpu_custom_call.1} parent=5 // pred_fallthru
        _
      %p488 = scmp.le.s32.totalorder 1, %s26
      %p489 = scmp.lt.s32.totalorder %s26, 3
      %p490 = pnand %p488, %p489
      %p491 = pneg %p490
      // Predicated region
      $region85: #{tpu_custom_call.1} parent=5 // pred_check
        _
      $region86: #{tpu_custom_call.1} parent=5 // pred_check_branch
        %493 = sbr.rel (%p490) target = $region88
      $region87: #{tpu_custom_call.1} parent=5 // pred_region
        %s494 = ssub.s32 %s26, 1
        %p495 = scmp.lt.s32.totalorder %s31, 1
        %s496 = scalar_select %p495, %s31, 1
        %s497 = smul.addr %s496, 8
        %s498 = scalar_lea.vmem %s0, %s497
        %p499 = pneg %p52
        %p500 = pneg %p49
        %p501 = pneg %p73
        %p502 = pneg %p70
        %p503 = pneg %p94
        %p504 = pneg %p91
        %p505 = pneg %p115
        %p506 = pneg %p112
        %p507 = pneg %p136
        %p508 = pneg %p133
        %p509 = pneg %p157
        %p510 = pneg %p154
        %p511 = pneg %p178
        %p512 = pneg %p175
        %p513 = pneg %p199
        %p514 = pneg %p196
        %p515 = pneg %p220
        %p516 = pneg %p217
        %p517 = pneg %p241
        %p518 = pneg %p238
        %p519 = pneg %p262
        %p520 = pneg %p259
        %p521 = pneg %p283
        %p522 = pneg %p280
        %p523 = pneg %p304
        %p524 = pneg %p301
        %p525 = pneg %p325
        %p526 = pneg %p322
        %p527 = pneg %p346
        %p528 = pneg %p343
        %p529 = pneg %p367
        %p530 = pneg %p364
        %p531 = pneg %p388
        %p532 = pneg %p385
        %p533 = pneg %p414
        %p534 = pneg %p411
        %s535 = sand.u32 %s401, 1
        %s536 = scalar_lea.sflag [#allocation3], %s535
        %s537 = sand.u32 %s401, 1
        %s538 = smul.addr %s537, 32
        %s539 = scalar_lea.vmem [#allocation2], %s538
        %p540 = scmp.lt.s32.totalorder %s31, 1
        %s541 = scalar_select %p540, %s31, 1
        %s542 = smul.addr %s541, 8
        %s543 = scalar_lea.vmem %s0, %s542
        %v545 = vld [vmem:[%s543] sm:$0xff]
        %v546 = vlaneseq
        %v547 = vand.u32 %v546, 127
        %vm548 = vcmp.lt.s32.totalorder %v547, 16
        %v549 = vsel %vm548, 1, 0
        %v550 = vcvt.s32.f32 %v549
        %v551 = vld [vmem:[%s1] sm:$0xf]
        %v552 = vpack.c.bf16 %v545, %v545
        %v553 = vld [vmem:[%s2] sm:$0xff]
        %555 = vset.pattern.permute.xlu0 0
        %556 = vperm.xlu0 %555, %v553
        %v557 = vpop.permute.xlu0 %556
        %vm559 = vcmask 64512
        %v561 = vsel %vm559, %v551, 0
        %vm563 = vcmask 1043456
        %v565 = vsel %vm563, %v552, 0
        %567 = vmatprep.subr.bf16.mxu0 0
        %568 = vmatpush1.bf16.msra.mxu0 %v565
        %569 = vmatprep.subr.bf16.mxu0 0
        %570 = vmatpush1.bf16.msra.mxu0 0
        %571 = vmatprep.subr.bf16.mxu0 0
        %572 = vmatpush1.bf16.msra.mxu0 0
        %573 = vmatprep.subr.bf16.mxu0 0
        %574 = vmatpush1.bf16.msra.mxu0 0
        %575 = vmatprep.subr.bf16.mxu0 0
        %576 = vmatpush1.bf16.msra.mxu0 0
        %577 = vmatprep.subr.bf16.mxu0 0
        %578 = vmatpush1.bf16.msra.mxu0 0
        %579 = vmatprep.subr.bf16.mxu0 0
        %580 = vmatpush1.bf16.msra.mxu0 0
        %581 = vmatprep.subr.bf16.mxu0 0
        %582 = vmatpush1.bf16.msra.mxu0 0
        %583 = vmatprep.subr.bf16.mxu0 0
        %584 = vmatpush1.bf16.msra.mxu0 0
        %585 = vmatprep.subr.bf16.mxu0 0
        %586 = vmatpush1.bf16.msra.mxu0 0
        %587 = vmatprep.subr.bf16.mxu0 0
        %588 = vmatpush1.bf16.msra.mxu0 0
        %589 = vmatprep.subr.bf16.mxu0 0
        %590 = vmatpush1.bf16.msra.mxu0 0
        %591 = vmatprep.subr.bf16.mxu0 0
        %592 = vmatpush1.bf16.msra.mxu0 0
        %593 = vmatprep.subr.bf16.mxu0 0
        %594 = vmatpush1.bf16.msra.mxu0 0
        %595 = vmatprep.subr.bf16.mxu0 0
        %596 = vmatpush1.bf16.msra.mxu0 0
        %597 = vmatprep.subr.bf16.mxu0 0
        %598 = vmatpush1.bf16.msra.mxu0 0
        %599 = vmatprep.mubr.bf16.mxu0 0
        %600 = vmatmul.mubr.bf16.gmra.mrb[0].mxu0 %v561
        %v601 = vpop.f32.mrb[0].mxu0
        %v602 = vadd.f32 %v557, %v601
        %v603 = vpop.f32.mrb[0].mxu0
        %v604 = vpop.f32.mrb[0].mxu0
        %v605 = vpop.f32.mrb[0].mxu0
        %606 = vdwg.mxu0
        %v607 = vmul.f32 %v602, %v550
        %v608 = vld [vmem:[%s3] sm:$0xf]
        %v609 = vld [vmem:[%s3 + $0x4] sm:$0xf]
        %v610 = vpack.c.bf16 %v607, %v607
        %v611 = vld [vmem:[%s4] sm:$0xff]
        %v612 = vld [vmem:[%s4 + $0x8] sm:$0xff]
        %614 = vset.pattern.permute.xlu0 0
        %615 = vperm.xlu0 %614, %v611
        %v616 = vpop.permute.xlu0 %615
        %619 = vset.pattern.permute.xlu0 0
        %620 = vperm.xlu0 %619, %v612
        %v621 = vpop.permute.xlu0 %620
        %v625 = vunpack.c.l.b16 %v608
        %v626 = vunpack.c.l.b16 %v609
        %v627 = vpack.c.b16 %v626, %v625
        %v629 = vsel %vm559, %v627, 0
        %v632 = vsel %vm563, %v610, 0
        %634 = vmatprep.subr.bf16.mxu0 0
        %635 = vmatpush1.bf16.msra.mxu0 %v632
        %636 = vmatprep.subr.bf16.mxu0 0
        %637 = vmatpush1.bf16.msra.mxu0 0
        %638 = vmatprep.subr.bf16.mxu0 0
        %639 = vmatpush1.bf16.msra.mxu0 0
        %640 = vmatprep.subr.bf16.mxu0 0
        %641 = vmatpush1.bf16.msra.mxu0 0
        %642 = vmatprep.subr.bf16.mxu0 0
        %643 = vmatpush1.bf16.msra.mxu0 0
        %644 = vmatprep.subr.bf16.mxu0 0
        %645 = vmatpush1.bf16.msra.mxu0 0
        %646 = vmatprep.subr.bf16.mxu0 0
        %647 = vmatpush1.bf16.msra.mxu0 0
        %648 = vmatprep.subr.bf16.mxu0 0
        %649 = vmatpush1.bf16.msra.mxu0 0
        %650 = vmatprep.subr.bf16.mxu0 0
        %651 = vmatpush1.bf16.msra.mxu0 0
        %652 = vmatprep.subr.bf16.mxu0 0
        %653 = vmatpush1.bf16.msra.mxu0 0
        %654 = vmatprep.subr.bf16.mxu0 0
        %655 = vmatpush1.bf16.msra.mxu0 0
        %656 = vmatprep.subr.bf16.mxu0 0
        %657 = vmatpush1.bf16.msra.mxu0 0
        %658 = vmatprep.subr.bf16.mxu0 0
        %659 = vmatpush1.bf16.msra.mxu0 0
        %660 = vmatprep.subr.bf16.mxu0 0
        %661 = vmatpush1.bf16.msra.mxu0 0
        %662 = vmatprep.subr.bf16.mxu0 0
        %663 = vmatpush1.bf16.msra.mxu0 0
        %664 = vmatprep.subr.bf16.mxu0 0
        %665 = vmatpush1.bf16.msra.mxu0 0
        %666 = vmatprep.mubr.bf16.mxu0 0
        %667 = vmatmul.mubr.bf16.gmra.mrb[0].mxu0 %v629
        %v668 = vpop.f32.mrb[0].mxu0
        %v669 = vadd.f32 %v616, %v668
        %v670 = vpop.f32.mrb[0].mxu0
        %v671 = vpop.f32.mrb[0].mxu0
        %v672 = vadd.f32 %v621, %v671
        %v673 = vpop.f32.mrb[0].mxu0
        %674 = vdwg.mxu0
        %v675 = vld [vmem:[%s5] sm:$0x1]
        %vm676 = vcmp.gt.f32.partialorder %v669, 0.0
        %vm677 = vcmp.gt.f32.partialorder %v672, 0.0
        %v679 = vlaneseq
        %v680 = vshrl.u32 %v679, 7
        %v681 = vsub.s32 0, %v680
        %v682 = vrot.slane %v675, %v681
        %683 = vset.pattern.permute.xlu0 0
        %684 = vperm.xlu0 %683, %v682
        %v685 = vpop.permute.xlu0 %684
        %v687 = vmul.f32 %v685, %v669
        %v688 = vmul.f32 %v685, %v672
        %v689 = vsel %vm676, %v669, %v687
        %v690 = vsel %vm677, %v672, %v688
        %v691 = vld [vmem:[%s6] sm:$0xff]
        %v692 = vld [vmem:[%s6 + $0x8] sm:$0xff]
        %v693 = vld [vmem:[%s7] sm:$0xff]
        %v694 = vld [vmem:[%s7 + $0x8] sm:$0xff]
        %v695 = vmul.f32 %v689, %v550
        %v696 = vmul.f32 %v690, %v550
        %v697 = vadd.f32 %v695, %v696
        %698 = vadd.xlane.f32.xlu0 %v697
        %v699 = vpop.xlane.xlu0 %698
        %v700 = vrot.slane %v699, 4
        %v701 = vadd.f32 %v699, %v700
        %v702 = vrot.slane %v701, 2
        %v703 = vadd.f32 %v701, %v702
        %v704 = vrot.slane %v703, 1
        %v705 = vadd.f32 %v703, %v704
        %s706 = vtos %v705
        %v707 = vmul.f32 %v695, %v695
        %v708 = vmul.f32 %v696, %v696
        %v709 = vadd.f32 %v707, %v708
        %710 = vadd.xlane.f32.xlu0 %v709
        %v711 = vpop.xlane.xlu0 %710
        %v712 = vrot.slane %v711, 4
        %v713 = vadd.f32 %v711, %v712
        %v714 = vrot.slane %v713, 2
        %v715 = vadd.f32 %v713, %v714
        %v716 = vrot.slane %v715, 1
        %v717 = vadd.f32 %v715, %v716
        %s718 = vtos %v717
        %s719 = smul.f32 %s706, 0.00390625
        %s720 = smul.f32 %s718, 0.00390625
        %s721 = smul.f32 %s719, %s719
        %s722 = ssub.f32 %s720, %s721
        %v723 = vstv %s719
        %v724 = vsub.f32 %v689, %v723
        %v725 = vsub.f32 %v690, %v723
        %727 = vset.pattern.permute.xlu0 0
        %728 = vperm.xlu0 %727, %v691
        %v729 = vpop.permute.xlu0 %728
        %732 = vset.pattern.permute.xlu0 0
        %733 = vperm.xlu0 %732, %v692
        %v734 = vpop.permute.xlu0 %733
        %v736 = vmul.f32 %v729, %v724
        %v737 = vmul.f32 %v734, %v725
        %s738 = sadd.f32 %s722, 1e-07
        %v739 = vstv %s738
        %v740 = vrsqrt.pop %v739
        %s741 = vtos %v740
        %v742 = vstv %s741
        %v743 = vmul.f32 %v736, %v742
        %v744 = vmul.f32 %v737, %v742
        %746 = vset.pattern.permute.xlu0 0
        %747 = vperm.xlu0 %746, %v693
        %v748 = vpop.permute.xlu0 %747
        %751 = vset.pattern.permute.xlu0 0
        %752 = vperm.xlu0 %751, %v694
        %v753 = vpop.permute.xlu0 %752
        %v755 = vadd.f32 %v743, %v748
        %v756 = vadd.f32 %v744, %v753
        %v757 = vmul.f32 %v755, %v550
        %v758 = vmul.f32 %v756, %v550
        %v759 = vld [vmem:[%s8] sm:$0xff]
        %v760 = vld [vmem:[%s8 + $0x8] sm:$0xff]
        %761 = vrot.lane.b32.xlu0 %v757, 1
        %v762 = vpop.permute.xlu0 %761
        %763 = vrot.lane.b32.xlu0 %v758, 1
        %v764 = vpop.permute.xlu0 %763
        %766 = vset.pattern.permute.xlu0 0
        %767 = vperm.xlu0 %766, %v759
        %v768 = vpop.permute.xlu0 %767
        %771 = vset.pattern.permute.xlu0 0
        %772 = vperm.xlu0 %771, %v760
        %v773 = vpop.permute.xlu0 %772
        %v775 = vmul.f32 %v768, %v762
        %v776 = vmul.f32 %v773, %v764
        %777 = vset.pattern.permute.xlu0 1
        %778 = vperm.xlu0 %777, %v759
        %v779 = vpop.permute.xlu0 %778
        %781 = vset.pattern.permute.xlu0 1
        %782 = vperm.xlu0 %781, %v760
        %v783 = vpop.permute.xlu0 %782
        %v785 = vmul.f32 %v779, %v757
        %v786 = vmul.f32 %v783, %v758
        %v787 = vadd.f32 %v775, %v785
        %v788 = vadd.f32 %v776, %v786
        %789 = vrot.lane.b32.xlu0 %v757, 127
        %v790 = vpop.permute.xlu0 %789
        %791 = vrot.lane.b32.xlu0 %v758, 127
        %v792 = vpop.permute.xlu0 %791
        %793 = vset.pattern.permute.xlu0 2
        %794 = vperm.xlu0 %793, %v759
        %v795 = vpop.permute.xlu0 %794
        %797 = vset.pattern.permute.xlu0 2
        %798 = vperm.xlu0 %797, %v760
        %v799 = vpop.permute.xlu0 %798
        %v801 = vmul.f32 %v795, %v790
        %v802 = vmul.f32 %v799, %v792
        %v803 = vadd.f32 %v787, %v801
        %v804 = vadd.f32 %v788, %v802
        %v805 = vld [vmem:[%s9] sm:$0xff]
        %v806 = vld [vmem:[%s9 + $0x8] sm:$0xff]
        %808 = vset.pattern.permute.xlu0 0
        %809 = vperm.xlu0 %808, %v805
        %v810 = vpop.permute.xlu0 %809
        %813 = vset.pattern.permute.xlu0 0
        %814 = vperm.xlu0 %813, %v806
        %v815 = vpop.permute.xlu0 %814
        %v817 = vadd.f32 %v803, %v810
        %v818 = vadd.f32 %v804, %v815
        %v819 = vld [vmem:[%s10] sm:$0x1]
        %vm820 = vcmp.gt.f32.partialorder %v817, 0.0
        %vm821 = vcmp.gt.f32.partialorder %v818, 0.0
        %v823 = vlaneseq
        %v824 = vshrl.u32 %v823, 7
        %v825 = vsub.s32 0, %v824
        %v826 = vrot.slane %v819, %v825
        %827 = vset.pattern.permute.xlu0 0
        %828 = vperm.xlu0 %827, %v826
        %v829 = vpop.permute.xlu0 %828
        %v831 = vmul.f32 %v829, %v817
        %v832 = vmul.f32 %v829, %v818
        %v833 = vsel %vm820, %v817, %v831
        %v834 = vsel %vm821, %v818, %v832
        %v835 = vld [vmem:[%s11] sm:$0xff]
        %v836 = vld [vmem:[%s11 + $0x8] sm:$0xff]
        %v837 = vld [vmem:[%s12] sm:$0xff]
        %v838 = vld [vmem:[%s12 + $0x8] sm:$0xff]
        %v839 = vmul.f32 %v833, %v550
        %v840 = vmul.f32 %v834, %v550
        %v841 = vadd.f32 %v839, %v840
        %842 = vadd.xlane.f32.xlu0 %v841
        %v843 = vpop.xlane.xlu0 %842
        %v844 = vrot.slane %v843, 4
        %v845 = vadd.f32 %v843, %v844
        %v846 = vrot.slane %v845, 2
        %v847 = vadd.f32 %v845, %v846
        %v848 = vrot.slane %v847, 1
        %v849 = vadd.f32 %v847, %v848
        %s850 = vtos %v849
        %v851 = vmul.f32 %v839, %v839
        %v852 = vmul.f32 %v840, %v840
        %v853 = vadd.f32 %v851, %v852
        %854 = vadd.xlane.f32.xlu0 %v853
        %v855 = vpop.xlane.xlu0 %854
        %v856 = vrot.slane %v855, 4
        %v857 = vadd.f32 %v855, %v856
        %v858 = vrot.slane %v857, 2
        %v859 = vadd.f32 %v857, %v858
        %v860 = vrot.slane %v859, 1
        %v861 = vadd.f32 %v859, %v860
        %s862 = vtos %v861
        %s863 = smul.f32 %s850, 0.00390625
        %s864 = smul.f32 %s862, 0.00390625
        %s865 = smul.f32 %s863, %s863
        %s866 = ssub.f32 %s864, %s865
        %v867 = vstv %s863
        %v868 = vsub.f32 %v833, %v867
        %v869 = vsub.f32 %v834, %v867
        %871 = vset.pattern.permute.xlu0 0
        %872 = vperm.xlu0 %871, %v835
        %v873 = vpop.permute.xlu0 %872
        %876 = vset.pattern.permute.xlu0 0
        %877 = vperm.xlu0 %876, %v836
        %v878 = vpop.permute.xlu0 %877
        %v880 = vmul.f32 %v873, %v868
        %v881 = vmul.f32 %v878, %v869
        %s882 = sadd.f32 %s866, 1e-07
        %v883 = vstv %s882
        %v884 = vrsqrt.pop %v883
        %s885 = vtos %v884
        %v886 = vstv %s885
        %v887 = vmul.f32 %v880, %v886
        %v888 = vmul.f32 %v881, %v886
        %890 = vset.pattern.permute.xlu0 0
        %891 = vperm.xlu0 %890, %v837
        %v892 = vpop.permute.xlu0 %891
        %895 = vset.pattern.permute.xlu0 0
        %896 = vperm.xlu0 %895, %v838
        %v897 = vpop.permute.xlu0 %896
        %v899 = vadd.f32 %v887, %v892
        %v900 = vadd.f32 %v888, %v897
        %v901 = vld [vmem:[%s13] sm:$0xf]
        %v902 = vpack.c.bf16 %v900, %v899
        %v903 = vld [vmem:[%s14] sm:$0xff]
        %905 = vset.pattern.permute.xlu0 0
        %906 = vperm.xlu0 %905, %v903
        %v907 = vpop.permute.xlu0 %906
        %vm909 = vcmask 130048
        %v911 = vsel %vm909, %v901, 0
        %913 = vmatprep.subr.bf16.mxu0 0
        %914 = vmatpush1.bf16.msra.mxu0 %v902
        %915 = vmatprep.subr.bf16.mxu0 0
        %916 = vmatpush1.bf16.msra.mxu0 0
        %917 = vmatprep.subr.bf16.mxu0 0
        %918 = vmatpush1.bf16.msra.mxu0 0
        %919 = vmatprep.subr.bf16.mxu0 0
        %920 = vmatpush1.bf16.msra.mxu0 0
        %921 = vmatprep.subr.bf16.mxu0 0
        %922 = vmatpush1.bf16.msra.mxu0 0
        %923 = vmatprep.subr.bf16.mxu0 0
        %924 = vmatpush1.bf16.msra.mxu0 0
        %925 = vmatprep.subr.bf16.mxu0 0
        %926 = vmatpush1.bf16.msra.mxu0 0
        %927 = vmatprep.subr.bf16.mxu0 0
        %928 = vmatpush1.bf16.msra.mxu0 0
        %929 = vmatprep.subr.bf16.mxu0 0
        %930 = vmatpush1.bf16.msra.mxu0 0
        %931 = vmatprep.subr.bf16.mxu0 0
        %932 = vmatpush1.bf16.msra.mxu0 0
        %933 = vmatprep.subr.bf16.mxu0 0
        %934 = vmatpush1.bf16.msra.mxu0 0
        %935 = vmatprep.subr.bf16.mxu0 0
        %936 = vmatpush1.bf16.msra.mxu0 0
        %937 = vmatprep.subr.bf16.mxu0 0
        %938 = vmatpush1.bf16.msra.mxu0 0
        %939 = vmatprep.subr.bf16.mxu0 0
        %940 = vmatpush1.bf16.msra.mxu0 0
        %941 = vmatprep.subr.bf16.mxu0 0
        %942 = vmatpush1.bf16.msra.mxu0 0
        %943 = vmatprep.subr.bf16.mxu0 0
        %944 = vmatpush1.bf16.msra.mxu0 0
        %945 = vmatprep.mubr.bf16.mxu0 0
        %946 = vmatmul.mubr.bf16.gmra.mrb[0].mxu0 %v911
        %v947 = vpop.f32.mrb[0].mxu0
        %v948 = vadd.f32 %v907, %v947
        %v949 = vpop.f32.mrb[0].mxu0
        %v950 = vpop.f32.mrb[0].mxu0
        %v951 = vpop.f32.mrb[0].mxu0
        %952 = vdwg.mxu0
        %v953 = vadd.f32 %v607, %v948
        %v954 = vmul.f32 %v953, %v550
        %s955 = scalar_lea.vmem %s3, 8
        %v956 = vld [vmem:[%s955] sm:$0xf]
        %v957 = vld [vmem:[%s955 + $0x4] sm:$0xf]
        %v958 = vpack.c.bf16 %v954, %v954
        %s959 = scalar_lea.vmem %s4, 16
        %v960 = vld [vmem:[%s959] sm:$0xff]
        %v961 = vld [vmem:[%s959 + $0x8] sm:$0xff]
        %963 = vset.pattern.permute.xlu0 0
        %964 = vperm.xlu0 %963, %v960
        %v965 = vpop.permute.xlu0 %964
        %968 = vset.pattern.permute.xlu0 0
        %969 = vperm.xlu0 %968, %v961
        %v970 = vpop.permute.xlu0 %969
        %v974 = vunpack.c.l.b16 %v956
        %v975 = vunpack.c.l.b16 %v957
        %v976 = vpack.c.b16 %v975, %v974
        %v978 = vsel %vm559, %v976, 0
        %v981 = vsel %vm563, %v958, 0
        %983 = vmatprep.subr.bf16.mxu0 0
        %984 = vmatpush1.bf16.msra.mxu0 %v981
        %985 = vmatprep.subr.bf16.mxu0 0
        %986 = vmatpush1.bf16.msra.mxu0 0
        %987 = vmatprep.subr.bf16.mxu0 0
        %988 = vmatpush1.bf16.msra.mxu0 0
        %989 = vmatprep.subr.bf16.mxu0 0
        %990 = vmatpush1.bf16.msra.mxu0 0
        %991 = vmatprep.subr.bf16.mxu0 0
        %992 = vmatpush1.bf16.msra.mxu0 0
        %993 = vmatprep.subr.bf16.mxu0 0
        %994 = vmatpush1.bf16.msra.mxu0 0
        %995 = vmatprep.subr.bf16.mxu0 0
        %996 = vmatpush1.bf16.msra.mxu0 0
        %997 = vmatprep.subr.bf16.mxu0 0
        %998 = vmatpush1.bf16.msra.mxu0 0
        %999 = vmatprep.subr.bf16.mxu0 0
        %1000 = vmatpush1.bf16.msra.mxu0 0
        %1001 = vmatprep.subr.bf16.mxu0 0
        %1002 = vmatpush1.bf16.msra.mxu0 0
        %1003 = vmatprep.subr.bf16.mxu0 0
        %1004 = vmatpush1.bf16.msra.mxu0 0
        %1005 = vmatprep.subr.bf16.mxu0 0
        %1006 = vmatpush1.bf16.msra.mxu0 0
        %1007 = vmatprep.subr.bf16.mxu0 0
        %1008 = vmatpush1.bf16.msra.mxu0 0
        %1009 = vmatprep.subr.bf16.mxu0 0
        %1010 = vmatpush1.bf16.msra.mxu0 0
        %1011 = vmatprep.subr.bf16.mxu0 0
        %1012 = vmatpush1.bf16.msra.mxu0 0
        %1013 = vmatprep.subr.bf16.mxu0 0
        %1014 = vmatpush1.bf16.msra.mxu0 0
        %1015 = vmatprep.mubr.bf16.mxu0 0
        %1016 = vmatmul.mubr.bf16.gmra.mrb[0].mxu0 %v978
        %v1017 = vpop.f32.mrb[0].mxu0
        %v1018 = vadd.f32 %v965, %v1017
        %v1019 = vpop.f32.mrb[0].mxu0
        %v1020 = vpop.f32.mrb[0].mxu0
        %v1021 = vadd.f32 %v970, %v1020
        %v1022 = vpop.f32.mrb[0].mxu0
        %1023 = vdwg.mxu0
        %s1024 = scalar_lea.vmem %s5, 1
        %v1025 = vld [vmem:[%s1024] sm:$0x1]
        %vm1026 = vcmp.gt.f32.partialorder %v1018, 0.0
        %vm1027 = vcmp.gt.f32.partialorder %v1021, 0.0
        %v1029 = vlaneseq
        %v1030 = vshrl.u32 %v1029, 7
        %v1031 = vsub.s32 0, %v1030
        %v1032 = vrot.slane %v1025, %v1031
        %1033 = vset.pattern.permute.xlu0 0
        %1034 = vperm.xlu0 %1033, %v1032
        %v1035 = vpop.permute.xlu0 %1034
        %v1037 = vmul.f32 %v1035, %v1018
        %v1038 = vmul.f32 %v1035, %v1021
        %v1039 = vsel %vm1026, %v1018, %v1037
        %v1040 = vsel %vm1027, %v1021, %v1038
        %s1041 = scalar_lea.vmem %s6, 16
        %v1042 = vld [vmem:[%s1041] sm:$0xff]
        %v1043 = vld [vmem:[%s1041 + $0x8] sm:$0xff]
        %s1044 = scalar_lea.vmem %s7, 16
        %v1045 = vld [vmem:[%s1044] sm:$0xff]
        %v1046 = vld [vmem:[%s1044 + $0x8] sm:$0xff]
        %v1047 = vmul.f32 %v1039, %v550
        %v1048 = vmul.f32 %v1040, %v550
        %v1049 = vadd.f32 %v1047, %v1048
        %1050 = vadd.xlane.f32.xlu0 %v1049
        %v1051 = vpop.xlane.xlu0 %1050
        %v1052 = vrot.slane %v1051, 4
        %v1053 = vadd.f32 %v1051, %v1052
        %v1054 = vrot.slane %v1053, 2
        %v1055 = vadd.f32 %v1053, %v1054
        %v1056 = vrot.slane %v1055, 1
        %v1057 = vadd.f32 %v1055, %v1056
        %s1058 = vtos %v1057
        %v1059 = vmul.f32 %v1047, %v1047
        %v1060 = vmul.f32 %v1048, %v1048
        %v1061 = vadd.f32 %v1059, %v1060
        %1062 = vadd.xlane.f32.xlu0 %v1061
        %v1063 = vpop.xlane.xlu0 %1062
        %v1064 = vrot.slane %v1063, 4
        %v1065 = vadd.f32 %v1063, %v1064
        %v1066 = vrot.slane %v1065, 2
        %v1067 = vadd.f32 %v1065, %v1066
        %v1068 = vrot.slane %v1067, 1
        %v1069 = vadd.f32 %v1067, %v1068
        %s1070 = vtos %v1069
        %s1071 = smul.f32 %s1058, 0.00390625
        %s1072 = smul.f32 %s1070, 0.00390625
        %s1073 = smul.f32 %s1071, %s1071
        %s1074 = ssub.f32 %s1072, %s1073
        %v1075 = vstv %s1071
        %v1076 = vsub.f32 %v1039, %v1075
        %v1077 = vsub.f32 %v1040, %v1075
        %1079 = vset.pattern.permute.xlu0 0
        %1080 = vperm.xlu0 %1079, %v1042
        %v1081 = vpop.permute.xlu0 %1080
        %1084 = vset.pattern.permute.xlu0 0
        %1085 = vperm.xlu0 %1084, %v1043
        %v1086 = vpop.permute.xlu0 %1085
        %v1088 = vmul.f32 %v1081, %v1076
        %v1089 = vmul.f32 %v1086, %v1077
        %s1090 = sadd.f32 %s1074, 1e-07
        %v1091 = vstv %s1090
        %v1092 = vrsqrt.pop %v1091
        %s1093 = vtos %v1092
        %v1094 = vstv %s1093
        %v1095 = vmul.f32 %v1088, %v1094
        %v1096 = vmul.f32 %v1089, %v1094
        %1098 = vset.pattern.permute.xlu0 0
        %1099 = vperm.xlu0 %1098, %v1045
        %v1100 = vpop.permute.xlu0 %1099
        %1103 = vset.pattern.permute.xlu0 0
        %1104 = vperm.xlu0 %1103, %v1046
        %v1105 = vpop.permute.xlu0 %1104
        %v1107 = vadd.f32 %v1095, %v1100
        %v1108 = vadd.f32 %v1096, %v1105
        %v1109 = vmul.f32 %v1107, %v550
        %v1110 = vmul.f32 %v1108, %v550
        %s1111 = scalar_lea.vmem %s8, 16
        %v1112 = vld [vmem:[%s1111] sm:$0xff]
        %v1113 = vld [vmem:[%s1111 + $0x8] sm:$0xff]
        %1114 = vrot.lane.b32.xlu0 %v1109, 2
        %v1115 = vpop.permute.xlu0 %1114
        %1116 = vrot.lane.b32.xlu0 %v1110, 2
        %v1117 = vpop.permute.xlu0 %1116
        %1119 = vset.pattern.permute.xlu0 0
        %1120 = vperm.xlu0 %1119, %v1112
        %v1121 = vpop.permute.xlu0 %1120
        %1124 = vset.pattern.permute.xlu0 0
        %1125 = vperm.xlu0 %1124, %v1113
        %v1126 = vpop.permute.xlu0 %1125
        %v1128 = vmul.f32 %v1121, %v1115
        %v1129 = vmul.f32 %v1126, %v1117
        %1130 = vset.pattern.permute.xlu0 1
        %1131 = vperm.xlu0 %1130, %v1112
        %v1132 = vpop.permute.xlu0 %1131
        %1134 = vset.pattern.permute.xlu0 1
        %1135 = vperm.xlu0 %1134, %v1113
        %v1136 = vpop.permute.xlu0 %1135
        %v1138 = vmul.f32 %v1132, %v1109
        %v1139 = vmul.f32 %v1136, %v1110
        %v1140 = vadd.f32 %v1128, %v1138
        %v1141 = vadd.f32 %v1129, %v1139
        %1142 = vrot.lane.b32.xlu0 %v1109, 126
        %v1143 = vpop.permute.xlu0 %1142
        %1144 = vrot.lane.b32.xlu0 %v1110, 126
        %v1145 = vpop.permute.xlu0 %1144
        %1146 = vset.pattern.permute.xlu0 2
        %1147 = vperm.xlu0 %1146, %v1112
        %v1148 = vpop.permute.xlu0 %1147
        %1150 = vset.pattern.permute.xlu0 2
        %1151 = vperm.xlu0 %1150, %v1113
        %v1152 = vpop.permute.xlu0 %1151
        %v1154 = vmul.f32 %v1148, %v1143
        %v1155 = vmul.f32 %v1152, %v1145
        %v1156 = vadd.f32 %v1140, %v1154
        %v1157 = vadd.f32 %v1141, %v1155
        %s1158 = scalar_lea.vmem %s9, 16
        %v1159 = vld [vmem:[%s1158] sm:$0xff]
        %v1160 = vld [vmem:[%s1158 + $0x8] sm:$0xff]
        %1162 = vset.pattern.permute.xlu0 0
        %1163 = vperm.xlu0 %1162, %v1159
        %v1164 = vpop.permute.xlu0 %1163
        %1167 = vset.pattern.permute.xlu0 0
        %1168 = vperm.xlu0 %1167, %v1160
        %v1169 = vpop.permute.xlu0 %1168
        %v1171 = vadd.f32 %v1156, %v1164
        %v1172 = vadd.f32 %v1157, %v1169
        %s1173 = scalar_lea.vmem %s10, 1
        %v1174 = vld [vmem:[%s1173] sm:$0x1]
        %vm1175 = vcmp.gt.f32.partialorder %v1171, 0.0
        %vm1176 = vcmp.gt.f32.partialorder %v1172, 0.0
        %v1178 = vlaneseq
        %v1179 = vshrl.u32 %v1178, 7
        %v1180 = vsub.s32 0, %v1179
        %v1181 = vrot.slane %v1174, %v1180
        %1182 = vset.pattern.permute.xlu0 0
        %1183 = vperm.xlu0 %1182, %v1181
        %v1184 = vpop.permute.xlu0 %1183
        %v1186 = vmul.f32 %v1184, %v1171
        %v1187 = vmul.f32 %v1184, %v1172
        %v1188 = vsel %vm1175, %v1171, %v1186
        %v1189 = vsel %vm1176, %v1172, %v1187
        %s1190 = scalar_lea.vmem %s11, 16
        %v1191 = vld [vmem:[%s1190] sm:$0xff]
        %v1192 = vld [vmem:[%s1190 + $0x8] sm:$0xff]
        %s1193 = scalar_lea.vmem %s12, 16
        %v1194 = vld [vmem:[%s1193] sm:$0xff]
        %v1195 = vld [vmem:[%s1193 + $0x8] sm:$0xff]
        %v1196 = vmul.f32 %v1188, %v550
        %v1197 = vmul.f32 %v1189, %v550
        %v1198 = vadd.f32 %v1196, %v1197
        %1199 = vadd.xlane.f32.xlu0 %v1198
        %v1200 = vpop.xlane.xlu0 %1199
        %v1201 = vrot.slane %v1200, 4
        %v1202 = vadd.f32 %v1200, %v1201
        %v1203 = vrot.slane %v1202, 2
        %v1204 = vadd.f32 %v1202, %v1203
        %v1205 = vrot.slane %v1204, 1
        %v1206 = vadd.f32 %v1204, %v1205
        %s1207 = vtos %v1206
        %v1208 = vmul.f32 %v1196, %v1196
        %v1209 = vmul.f32 %v1197, %v1197
        %v1210 = vadd.f32 %v1208, %v1209
        %1211 = vadd.xlane.f32.xlu0 %v1210
        %v1212 = vpop.xlane.xlu0 %1211
        %v1213 = vrot.slane %v1212, 4
        %v1214 = vadd.f32 %v1212, %v1213
        %v1215 = vrot.slane %v1214, 2
        %v1216 = vadd.f32 %v1214, %v1215
        %v1217 = vrot.slane %v1216, 1
        %v1218 = vadd.f32 %v1216, %v1217
        %s1219 = vtos %v1218
        %s1220 = smul.f32 %s1207, 0.00390625
        %s1221 = smul.f32 %s1219, 0.00390625
        %s1222 = smul.f32 %s1220, %s1220
        %s1223 = ssub.f32 %s1221, %s1222
        %v1224 = vstv %s1220
        %v1225 = vsub.f32 %v1188, %v1224
        %v1226 = vsub.f32 %v1189, %v1224
        %1228 = vset.pattern.permute.xlu0 0
        %1229 = vperm.xlu0 %1228, %v1191
        %v1230 = vpop.permute.xlu0 %1229
        %1233 = vset.pattern.permute.xlu0 0
        %1234 = vperm.xlu0 %1233, %v1192
        %v1235 = vpop.permute.xlu0 %1234
        %v1237 = vmul.f32 %v1230, %v1225
        %v1238 = vmul.f32 %v1235, %v1226
        %s1239 = sadd.f32 %s1223, 1e-07
        %v1240 = vstv %s1239
        %v1241 = vrsqrt.pop %v1240
        %s1242 = vtos %v1241
        %v1243 = vstv %s1242
        %v1244 = vmul.f32 %v1237, %v1243
        %v1245 = vmul.f32 %v1238, %v1243
        %1247 = vset.pattern.permute.xlu0 0
        %1248 = vperm.xlu0 %1247, %v1194
        %v1249 = vpop.permute.xlu0 %1248
        %1252 = vset.pattern.permute.xlu0 0
        %1253 = vperm.xlu0 %1252, %v1195
        %v1254 = vpop.permute.xlu0 %1253
        %v1256 = vadd.f32 %v1244, %v1249
        %v1257 = vadd.f32 %v1245, %v1254
        %s1258 = scalar_lea.vmem %s13, 4
        %v1259 = vld [vmem:[%s1258] sm:$0xf]
        %v1260 = vpack.c.bf16 %v1257, %v1256
        %s1261 = scalar_lea.vmem %s14, 8
        %v1262 = vld [vmem:[%s1261] sm:$0xff]
        %1264 = vset.pattern.permute.xlu0 0
        %1265 = vperm.xlu0 %1264, %v1262
        %v1266 = vpop.permute.xlu0 %1265
        %v1269 = vsel %vm909, %v1259, 0
        %1271 = vmatprep.subr.bf16.mxu0 0
        %1272 = vmatpush1.bf16.msra.mxu0 %v1260
        %1273 = vmatprep.subr.bf16.mxu0 0
        %1274 = vmatpush1.bf16.msra.mxu0 0
        %1275 = vmatprep.subr.bf16.mxu0 0
        %1276 = vmatpush1.bf16.msra.mxu0 0
        %1277 = vmatprep.subr.bf16.mxu0 0
        %1278 = vmatpush1.bf16.msra.mxu0 0
        %1279 = vmatprep.subr.bf16.mxu0 0
        %1280 = vmatpush1.bf16.msra.mxu0 0
        %1281 = vmatprep.subr.bf16.mxu0 0
        %1282 = vmatpush1.bf16.msra.mxu0 0
        %1283 = vmatprep.subr.bf16.mxu0 0
        %1284 = vmatpush1.bf16.msra.mxu0 0
        %1285 = vmatprep.subr.bf16.mxu0 0
        %1286 = vmatpush1.bf16.msra.mxu0 0
        %1287 = vmatprep.subr.bf16.mxu0 0
        %1288 = vmatpush1.bf16.msra.mxu0 0
        %1289 = vmatprep.subr.bf16.mxu0 0
        %1290 = vmatpush1.bf16.msra.mxu0 0
        %1291 = vmatprep.subr.bf16.mxu0 0
        %1292 = vmatpush1.bf16.msra.mxu0 0
        %1293 = vmatprep.subr.bf16.mxu0 0
        %1294 = vmatpush1.bf16.msra.mxu0 0
        %1295 = vmatprep.subr.bf16.mxu0 0
        %1296 = vmatpush1.bf16.msra.mxu0 0
        %1297 = vmatprep.subr.bf16.mxu0 0
        %1298 = vmatpush1.bf16.msra.mxu0 0
        %1299 = vmatprep.subr.bf16.mxu0 0
        %1300 = vmatpush1.bf16.msra.mxu0 0
        %1301 = vmatprep.subr.bf16.mxu0 0
        %1302 = vmatpush1.bf16.msra.mxu0 0
        %1303 = vmatprep.mubr.bf16.mxu0 0
        %1304 = vmatmul.mubr.bf16.gmra.mrb[0].mxu0 %v1269
        %v1305 = vpop.f32.mrb[0].mxu0
        %v1306 = vadd.f32 %v1266, %v1305
        %v1307 = vpop.f32.mrb[0].mxu0
        %v1308 = vpop.f32.mrb[0].mxu0
        %v1309 = vpop.f32.mrb[0].mxu0
        %1310 = vdwg.mxu0
        %v1311 = vadd.f32 %v954, %v1306
        %v1312 = vmul.f32 %v1311, %v550
        %v1313 = vld [vmem:[%s15] sm:$0xf]
        %v1314 = vld [vmem:[%s15 + $0x4] sm:$0xf]
        %v1315 = vld [vmem:[%s15 + $0x8] sm:$0xf]
        %v1316 = vld [vmem:[%s15 + $0xc] sm:$0xf]
        %v1317 = vpack.c.bf16 %v1312, %v1312
        %v1318 = vld [vmem:[%s16] sm:$0xff]
        %v1319 = vld [vmem:[%s16 + $0x8] sm:$0xff]
        %v1320 = vld [vmem:[%s16 + $0x10] sm:$0xff]
        %v1321 = vld [vmem:[%s16 + $0x18] sm:$0xff]
        %1323 = vset.pattern.permute.xlu0 0
        %1324 = vperm.xlu0 %1323, %v1318
        %v1325 = vpop.permute.xlu0 %1324
        %1328 = vset.pattern.permute.xlu0 0
        %1329 = vperm.xlu0 %1328, %v1319
        %v1330 = vpop.permute.xlu0 %1329
        %1333 = vset.pattern.permute.xlu0 0
        %1334 = vperm.xlu0 %1333, %v1320
        %v1335 = vpop.permute.xlu0 %1334
        %1338 = vset.pattern.permute.xlu0 0
        %1339 = vperm.xlu0 %1338, %v1321
        %v1340 = vpop.permute.xlu0 %1339
        %v1346 = vunpack.c.l.b16 %v1313
        %v1347 = vunpack.c.l.b16 %v1314
        %v1348 = vunpack.c.l.b16 %v1315
        %v1349 = vunpack.c.l.b16 %v1316
        %v1350 = vpack.c.b16 %v1347, %v1346
        %v1351 = vpack.c.b16 %v1349, %v1348
        %v1353 = vsel %vm559, %v1350, 0
        %v1356 = vsel %vm559, %v1351, 0
        %v1359 = vsel %vm563, %v1317, 0
        %1361 = vmatprep.subr.bf16.mxu0 0
        %1362 = vmatpush1.bf16.msra.mxu0 %v1359
        %1363 = vmatprep.subr.bf16.mxu0 0
        %1364 = vmatpush1.bf16.msra.mxu0 0
        %1365 = vmatprep.subr.bf16.mxu0 0
        %1366 = vmatpush1.bf16.msra.mxu0 0
        %1367 = vmatprep.subr.bf16.mxu0 0
        %1368 = vmatpush1.bf16.msra.mxu0 0
        %1369 = vmatprep.subr.bf16.mxu0 0
        %1370 = vmatpush1.bf16.msra.mxu0 0
        %1371 = vmatprep.subr.bf16.mxu0 0
        %1372 = vmatpush1.bf16.msra.mxu0 0
        %1373 = vmatprep.subr.bf16.mxu0 0
        %1374 = vmatpush1.bf16.msra.mxu0 0
        %1375 = vmatprep.subr.bf16.mxu0 0
        %1376 = vmatpush1.bf16.msra.mxu0 0
        %1377 = vmatprep.subr.bf16.mxu0 0
        %1378 = vmatpush1.bf16.msra.mxu0 0
        %1379 = vmatprep.subr.bf16.mxu0 0
        %1380 = vmatpush1.bf16.msra.mxu0 0
        %1381 = vmatprep.subr.bf16.mxu0 0
        %1382 = vmatpush1.bf16.msra.mxu0 0
        %1383 = vmatprep.subr.bf16.mxu0 0
        %1384 = vmatpush1.bf16.msra.mxu0 0
        %1385 = vmatprep.subr.bf16.mxu0 0
        %1386 = vmatpush1.bf16.msra.mxu0 0
        %1387 = vmatprep.subr.bf16.mxu0 0
        %1388 = vmatpush1.bf16.msra.mxu0 0
        %1389 = vmatprep.subr.bf16.mxu0 0
        %1390 = vmatpush1.bf16.msra.mxu0 0
        %1391 = vmatprep.subr.bf16.mxu0 0
        %1392 = vmatpush1.bf16.msra.mxu0 0
        %1393 = vmatprep.mubr.bf16.mxu0 0
        %1394 = vmatmul.mubr.bf16.gmra.mrb[0].mxu0 %v1353
        %v1395 = vpop.f32.mrb[0].mxu0
        %v1396 = vadd.f32 %v1325, %v1395
        %v1397 = vpop.f32.mrb[0].mxu0
        %v1398 = vpop.f32.mrb[0].mxu0
        %v1399 = vadd.f32 %v1330, %v1398
        %v1400 = vpop.f32.mrb[0].mxu0
        %1401 = vmatprep.mubr.bf16.mxu0 0
        %1402 = vmatmul.mubr.bf16.gmra.mrb[0].mxu0 %v1356
        %v1403 = vpop.f32.mrb[0].mxu0
        %v1404 = vadd.f32 %v1335, %v1403
        %v1405 = vpop.f32.mrb[0].mxu0
        %v1406 = vpop.f32.mrb[0].mxu0
        %v1407 = vadd.f32 %v1340, %v1406
        %v1408 = vpop.f32.mrb[0].mxu0
        %1409 = vdwg.mxu0
        %v1410 = vmax.f32 %v1396, 0.0
        %v1411 = vmax.f32 %v1399, 0.0
        %v1412 = vmax.f32 %v1404, 0.0
        %v1413 = vmax.f32 %v1407, 0.0
        %v1414 = vmax.f32 %v1410, %v1412
        %v1415 = vmax.f32 %v1411, %v1413
        %v1416 = vsub.f32 %v1410, %v1414
        %v1417 = vsub.f32 %v1411, %v1415
        %v1418 = vmul.f32 %v1416, 1.442695
        %v1419 = vpow.pop %v1418
        %v1420 = vmul.f32 %v1417, 1.442695
        %v1421 = vpow.pop %v1420
        %v1422 = vsub.f32 %v1412, %v1414
        %v1423 = vsub.f32 %v1413, %v1415
        %v1424 = vmul.f32 %v1422, 1.442695
        %v1425 = vpow.pop %v1424
        %v1426 = vmul.f32 %v1423, 1.442695
        %v1427 = vpow.pop %v1426
        %v1428 = vadd.f32 %v1419, %v1425
        %v1429 = vadd.f32 %v1421, %v1427
        %v1430 = vrcp.pop %v1428
        %v1431 = vrcp.pop %v1429
        %v1432 = vmul.f32 %v1428, %v1430
        %v1433 = vmul.f32 %v1429, %v1431
        %v1434 = vsub.f32 2.0, %v1432
        %v1435 = vsub.f32 2.0, %v1433
        %v1436 = vmul.f32 %v1430, %v1434
        %v1437 = vmul.f32 %v1431, %v1435
        %v1438 = vmul.f32 %v1419, %v1436
        %v1439 = vmul.f32 %v1421, %v1437
        %1440 = vst [vmem:[%s539] sm:$0xff] %v1438
        %1441 = vst [vmem:[%s539 + $0x8] sm:$0xff] %v1439
        %v1442 = vmul.f32 %v1425, %v1436
        %v1443 = vmul.f32 %v1427, %v1437
        %s1444 = scalar_lea.vmem %s539, 16 [#allocation2]
        %1445 = vst [vmem:[%s1444] sm:$0xff] %v1442
        %1446 = vst [vmem:[%s1444 + $0x8] sm:$0xff] %v1443
        %s1447 = sand.u32 %s401, 1
        %s1448 = scalar_lea.sflag [#allocation3], %s1447
        %s1449 = sand.u32 %s401, 1
        %s1450 = smul.addr %s1449, 32
        %s1451 = scalar_lea.vmem [#allocation2], %s1450
        // Predicated region
        $region89: #{tpu_custom_call.1} parent=87 // pred_check
          %p1452 = pneg %p411
        $region90: #{tpu_custom_call.1} parent=87 // pred_check_branch
          %1454 = sbr.rel (%p1452) target = $region92
        $region91: #{tpu_custom_call.1} parent=87 // pred_region
          %s1456 = ssub.s32 512, 512
          %1457 = vsyncadd %s1448, %s1456
          %s1458 = smul.addr %s31, 4
          %s1459 = smul.addr %s1458, 128
          %s1460 = scalar_lea.hbm %s17, %s1459
          %s1461 = sshll.u32 %s1451, 4
          %s1462 = int_to_ptr.vmem [resolvable:$true] %s1461
          %1467 = dma.vmem_to_hbm [thread:$0]  %s1462, 512, %s1460, %s1448, 128, 128, 8
        $region92: #{tpu_custom_call.1} parent=87 // pred_fallthru
          _
      $region88: #{tpu_custom_call.1} parent=5 // pred_fallthru
        _
      %p1468 = scmp.le.s32.totalorder 2, %s26
      // Predicated region
      $region93: #{tpu_custom_call.1} parent=5 // pred_check
        %p1469 = pneg %p1468
      $region94: #{tpu_custom_call.1} parent=5 // pred_check_branch
        %1471 = sbr.rel (%p1469) target = $region96
      $region95: #{tpu_custom_call.1} parent=5 // pred_region
        %s1472 = ssub.s32 %s26, 2
        // Predicated region
        $region97: #{tpu_custom_call.1} parent=95 // pred_check
          %p1473 = pneg %p417
        $region98: #{tpu_custom_call.1} parent=95 // pred_check_branch
          %1475 = sbr.rel (%p1473) target = $region100
        $region99: #{tpu_custom_call.1} parent=95 // pred_region
          %s1476 = sand.u32 %s402, 1
          %s1477 = scalar_lea.sflag [#allocation3], %s1476
          %s1478 = sand.u32 %s402, 1
          %s1479 = smul.addr %s1478, 32
          %s1480 = scalar_lea.vmem [#allocation2], %s1479
          %1481 = dma.done %s1477, 512
        $region100: #{tpu_custom_call.1} parent=95 // pred_fallthru
          _
      $region96: #{tpu_custom_call.1} parent=5 // pred_fallthru
        _
    $region6: #{tpu_custom_call.1} parent=1 // loop_footer
      %s30 = sadd.s32 1, %s26
    $region7: #{tpu_custom_call.1} parent=1 // loop_footer_branch
      %25 = sbr.rel target = $region3
    $region8: #{tpu_custom_call.1} parent=1 // loop_exit
      _
    %1482 = vsyncpa [#allocation3], 1
    %s1483 = scalar_lea.sflag [#allocation3], 1
    %1484 = vsyncpa %s1483, 1

</llo_original>
